<compile_context>
chip_gen: v6e
topology: v6e:2x2x1
jax: 0.10.0
libtpu: 0.0.40
codegen_flags: <defaults>
</compile_context>

<pallas_src>
import functools

import jax
import jax.numpy as jnp
from jax import lax
from jax.experimental import pallas as pl
from jax.experimental.pallas import tpu as pltpu


def _xproj_kernel(xp_ref, w_ref, b_ref, o_ref):
    # (B*H*W, K*K*Cin) bf16 @ (K*K*Cin, 4*Cout) bf16 -> f32, bias folded in.
    o_ref[...] = (jnp.dot(xp_ref[...], w_ref[...],
                          preferred_element_type=jnp.float32)
                  + b_ref[...])


def _recurrent_kernel(xg_ref, wh_ref, wci_ref, wcf_ref, wco_ref,
                      out_ref, h_pad, c_st, hs_buf,
                      *, H, W, Cout, K, P, band_h):
    t = pl.program_id(1)

    # A new batch element starts at t == 0: reset the recurrent state.
    @pl.when(t == 0)
    def _():
        h_pad[...] = jnp.zeros_like(h_pad)
        c_st[...] = jnp.zeros_like(c_st)

    wh = wh_ref[...]                                  # (K*K*Cout, 4*Cout) bf16
    n_bands = H // band_h
    band_rows = band_h * W

    for band in range(n_bands):
        r0 = band * band_h            # image-row offset of this band
        m0 = r0 * W                   # flattened-row offset of this band

        # im2col of the recurrent taps for this band -> (band_rows, K*K*Cout)
        # staged in VMEM, so the conv becomes one deep-contraction matmul.
        for kh in range(K):
            for kw in range(K):
                tap = kh * K + kw
                hs_buf[:, tap * Cout:(tap + 1) * Cout] = (
                    h_pad[r0 + kh:r0 + kh + band_h, kw:kw + W, :]
                    .reshape(band_rows, Cout))

        # Single MXU matmul (contraction K*K*Cout), bf16 operands, f32 acc.
        gates = jnp.dot(hs_buf[...].astype(jnp.bfloat16), wh,
                        preferred_element_type=jnp.float32)
        # Precomputed X projection already contains the bias.
        gates = gates + xg_ref[m0:m0 + band_rows, :]

        # torch.chunk(conv, 4, dim=channel) -> i, f, C, o
        i_c = gates[:, 0 * Cout:1 * Cout]
        f_c = gates[:, 1 * Cout:2 * Cout]
        g_c = gates[:, 2 * Cout:3 * Cout]
        o_c = gates[:, 3 * Cout:4 * Cout]

        c_prev = c_st[m0:m0 + band_rows, :]
        i_g = jax.nn.sigmoid(i_c + wci_ref[m0:m0 + band_rows, :] * c_prev)
        f_g = jax.nn.sigmoid(f_c + wcf_ref[m0:m0 + band_rows, :] * c_prev)
        c_new = f_g * c_prev + i_g * jnp.tanh(g_c)      # activation == 'tanh'
        o_g = jax.nn.sigmoid(o_c + wco_ref[m0:m0 + band_rows, :] * c_new)
        h_new = o_g * jnp.tanh(c_new)

        c_st[m0:m0 + band_rows, :] = c_new
        out_ref[m0:m0 + band_rows, :] = h_new

    # Update the padded H canvas only after every band has read the previous
    # step's H (the conv must see strictly t-1 state). Border stays zero.
    h_pad[P:P + H, P:P + W, :] = out_ref[...].reshape(H, W, Cout)


def conv_lstm_forward(x, wx, wh, b, wci, wcf, wco, *, K=3, P=1):
    """x: (B, Cin, T, H, W) -> (B, Cout, T, H, W), matching the PyTorch module.

    wx: (K, K, Cin, 4*Cout) HWIO (X part of the cat([X, H]) conv weight)
    wh: (K, K, Cout, 4*Cout) HWIO (H part)
    b:  (4*Cout,) conv bias
    wci/wcf/wco: (H, W, Cout) peephole weights, channels-last.
    """
    B, Cin, T, H, W = x.shape
    Cout = wh.shape[2]
    Hp, Wp = H + 2 * P, W + 2 * P
    HW = H * W

    # ------- Stage 1: time-parallel X projection (hoisted out of the RNN). ----
    x_tl = jnp.transpose(x, (2, 0, 3, 4, 1))                   # (T,B,H,W,Cin)
    x_pad = jnp.pad(x_tl, ((0, 0), (0, 0), (P, P), (P, P), (0, 0)))
    patches = jnp.concatenate(
        [x_pad[:, :, kh:kh + H, kw:kw + W, :]
         for kh in range(K) for kw in range(K)], axis=-1)      # (T,B,H,W,KKCin)
    patches = patches.reshape(T, B * HW, K * K * Cin).astype(jnp.bfloat16)
    wx_mat = wx.reshape(K * K * Cin, 4 * Cout).astype(jnp.bfloat16)
    b_row = b.reshape(1, 4 * Cout).astype(jnp.float32)

    xg = pl.pallas_call(
        _xproj_kernel,
        out_shape=jax.ShapeDtypeStruct((T, B * HW, 4 * Cout), jnp.float32),
        grid_spec=pltpu.PrefetchScalarGridSpec(
            num_scalar_prefetch=0,
            grid=(T,),
            in_specs=[
                pl.BlockSpec((None, B * HW, K * K * Cin), lambda t: (t, 0, 0)),
                pl.BlockSpec((K * K * Cin, 4 * Cout), lambda t: (0, 0)),
                pl.BlockSpec((1, 4 * Cout), lambda t: (0, 0)),
            ],
            out_specs=pl.BlockSpec((None, B * HW, 4 * Cout),
                                   lambda t: (t, 0, 0)),
        ),
        compiler_params=pltpu.CompilerParams(
            dimension_semantics=("parallel",)),
    )(patches, wx_mat, b_row)
    xg = xg.reshape(T, B, HW, 4 * Cout)

    # ------- Stage 2: sequential recurrence, batch-parallel grid. -------------
    wh_mat = wh.reshape(K * K * Cout, 4 * Cout).astype(jnp.bfloat16)
    wci2 = wci.reshape(HW, Cout).astype(jnp.float32)
    wcf2 = wcf.reshape(HW, Cout).astype(jnp.float32)
    wco2 = wco.reshape(HW, Cout).astype(jnp.float32)

    band_h = min(H, max(1, 128 // W))     # ~128 rows of gate math per MXU call
    if H % band_h != 0:
        band_h = H                        # fall back to a single band

    kern = functools.partial(_recurrent_kernel, H=H, W=W, Cout=Cout,
                             K=K, P=P, band_h=band_h)

    out = pl.pallas_call(
        kern,
        out_shape=jax.ShapeDtypeStruct((T, B, HW, Cout), jnp.float32),
        grid_spec=pltpu.PrefetchScalarGridSpec(
            num_scalar_prefetch=0,
            grid=(B, T),
            in_specs=[
                # per-(b,t) precomputed X gates (bias included)
                pl.BlockSpec((None, None, HW, 4 * Cout),
                             lambda bb, tt: (tt, bb, 0, 0)),
                # resident parameters
                pl.BlockSpec((K * K * Cout, 4 * Cout), lambda bb, tt: (0, 0)),
                pl.BlockSpec((HW, Cout), lambda bb, tt: (0, 0)),
                pl.BlockSpec((HW, Cout), lambda bb, tt: (0, 0)),
                pl.BlockSpec((HW, Cout), lambda bb, tt: (0, 0)),
            ],
            out_specs=pl.BlockSpec((None, None, HW, Cout),
                                   lambda bb, tt: (tt, bb, 0, 0)),
            scratch_shapes=[
                pltpu.VMEM((Hp, Wp, Cout), jnp.float32),            # padded H
                pltpu.VMEM((HW, Cout), jnp.float32),                # C state
                pltpu.VMEM((band_h * W, K * K * Cout), jnp.float32),  # im2col
            ],
        ),
        compiler_params=pltpu.CompilerParams(
            dimension_semantics=("parallel", "arbitrary")),
    )(xg, wh_mat, wci2, wcf2, wco2)

    out = out.reshape(T, B, H, W, Cout)
    return jnp.transpose(out, (1, 4, 0, 2, 3))                  # (B,Cout,T,H,W)


def conv_lstm_reference(x, wx, wh, b, wci, wcf, wco):
    """Pure-JAX f32 reference mirroring the PyTorch ConvLSTM/ConvLSTMCell."""
    B, Cin, T, H, W = x.shape
    Cout = wh.shape[2]
    w = jnp.concatenate([wx, wh], axis=2)        # (K,K,Cin+Cout,4Cout)  HWIO
    x_tl = jnp.transpose(x, (2, 0, 3, 4, 1))     # (T,B,H,W,Cin)
    h = jnp.zeros((B, H, W, Cout), jnp.float32)
    c = jnp.zeros((B, H, W, Cout), jnp.float32)
    outs = []
    for t in range(T):
        inp = jnp.concatenate([x_tl[t], h], axis=-1)
        conv = lax.conv_general_dilated(
            inp, w, window_strides=(1, 1), padding="SAME",
            dimension_numbers=("NHWC", "HWIO", "NHWC")) + b
        i_c, f_c, c_c, o_c = jnp.split(conv, 4, axis=-1)
        i_g = jax.nn.sigmoid(i_c + wci * c)
        f_g = jax.nn.sigmoid(f_c + wcf * c)
        c = f_g * c + i_g * jnp.tanh(c_c)
        o_g = jax.nn.sigmoid(o_c + wco * c)
        h = o_g * jnp.tanh(c)
        outs.append(h)
    out = jnp.stack(outs, axis=0)                # (T,B,H,W,Cout)
    return jnp.transpose(out, (1, 4, 0, 2, 3))


if __name__ == "__main__":
    # Small shapes consistent with the module's forward signature.
    B, Cin, T, H, W = 2, 4, 8, 16, 16
    Cout, K, P = 32, 3, 1                        # kernel_size=3, padding='same'

    key = jax.random.PRNGKey(0)
    kx, kw, kb = jax.random.split(key, 3)

    # Input: (batch, channels, seq_len, height, width), like the PyTorch module.
    x = jax.random.normal(kx, (B, Cin, T, H, W), dtype=jnp.float32)

    # nn.Conv2d(in=Cin+Cout, out=4*Cout, k=K) weights, PyTorch-default uniform
    # bound 1/sqrt(fan_in); stored HWIO and split into X / H parts (cat order
    # [X, H] along input channels).
    fan_in = (Cin + Cout) * K * K
    bound = 1.0 / jnp.sqrt(jnp.float32(fan_in))
    w_full = jax.random.uniform(kw, (K, K, Cin + Cout, 4 * Cout),
                                minval=-bound, maxval=bound, dtype=jnp.float32)
    wx = w_full[:, :, :Cin, :]                   # (K,K,Cin,4Cout)
    wh = w_full[:, :, Cin:, :]                   # (K,K,Cout,4Cout)
    bias = jax.random.uniform(kb, (4 * Cout,), minval=-bound, maxval=bound,
                              dtype=jnp.float32)

    # Peephole weights W_ci, W_cf, W_co: WeightsInitializer.Zeros (module
    # default), shape (out_channels, H, W) -> stored channels-last (H, W, Cout).
    wci = jnp.zeros((H, W, Cout), jnp.float32)
    wcf = jnp.zeros((H, W, Cout), jnp.float32)
    wco = jnp.zeros((H, W, Cout), jnp.float32)

    fwd = jax.jit(functools.partial(conv_lstm_forward, K=K, P=P))
    out = jax.block_until_ready(fwd(x, wx, wh, bias, wci, wcf, wco))

    ref = jax.block_until_ready(
        conv_lstm_reference(x, wx, wh, bias, wci, wcf, wco))

    assert out.shape == (B, Cout, T, H, W), out.shape
    # bf16 MXU operands (f32 accumulation) drift slightly vs. the f32 reference.
    assert jnp.allclose(out, ref, rtol=2e-2, atol=2e-2), (
        float(jnp.max(jnp.abs(out - ref))))

    print("KERNEL_OK")
</pallas_src>

<mosaic_0001>
module attributes {stable_mosaic.version = 11 : i64} {
  func.func @_xproj_kernel(%arg0: i32, %arg1: memref<1x512x36xbf16, #tpu.memory_space<vmem>>, %arg2: memref<36x128xbf16, #tpu.memory_space<vmem>>, %arg3: memref<1x128xf32, #tpu.memory_space<vmem>>, %arg4: memref<1x512x128xf32, #tpu.memory_space<vmem>>) attributes {dimension_semantics = [#tpu.dimension_semantics<parallel>], iteration_bounds = array<i64: 8>, scalar_prefetch = 0 : i64, scratch_operands = 0 : i64, tpu.core_type = #tpu.core_type<tc>, window_params = [{transform_indices = @transform_0, window_bounds = array<i64: 1, 512, 36>}, {pipeline_mode = #tpu.pipeline_mode<synchronous>, transform_indices = @transform_1, window_bounds = array<i64: 36, 128>}, {pipeline_mode = #tpu.pipeline_mode<synchronous>, transform_indices = @transform_2, window_bounds = array<i64: 1, 128>}, {transform_indices = @transform_3, window_bounds = array<i64: 1, 512, 128>}]} {
    %c0 = arith.constant 0 : index
    %c0_0 = arith.constant 0 : index
    %c0_1 = arith.constant 0 : index
    %0 = vector.load %arg1[%c0, %c0_0, %c0_1] : memref<1x512x36xbf16, #tpu.memory_space<vmem>>, vector<1x512x36xbf16>
    %1 = vector.shape_cast %0 : vector<1x512x36xbf16> to vector<512x36xbf16>
    %c0_2 = arith.constant 0 : index
    %c0_3 = arith.constant 0 : index
    %2 = vector.load %arg2[%c0_2, %c0_3] : memref<36x128xbf16, #tpu.memory_space<vmem>>, vector<36x128xbf16>
    %cst = arith.constant dense<0.000000e+00> : vector<512x128xf32>
    %3 = tpu.matmul %1, %2, %cst {dimension_numbers = #tpu.dot_dimension_numbers<[1], [0], [0], [1], [0, 0, 1, 1], [], []>} : vector<512x36xbf16>, vector<36x128xbf16>, vector<512x128xf32> -> vector<512x128xf32>
    %c0_4 = arith.constant 0 : index
    %c0_5 = arith.constant 0 : index
    %4 = vector.load %arg3[%c0_4, %c0_5] : memref<1x128xf32, #tpu.memory_space<vmem>>, vector<1x128xf32>
    %5 = vector.broadcast %4 : vector<1x128xf32> to vector<512x128xf32>
    %6 = arith.addf %3, %5 : vector<512x128xf32>
    %c0_6 = arith.constant 0 : index
    %c0_7 = arith.constant 0 : index
    %c0_8 = arith.constant 0 : index
    %7 = vector.load %arg4[%c0_6, %c0_7, %c0_8] : memref<1x512x128xf32, #tpu.memory_space<vmem>>, vector<1x512x128xf32>
    %8 = vector.shape_cast %7 : vector<1x512x128xf32> to vector<512x128xf32>
    %9 = vector.shape_cast %6 : vector<512x128xf32> to vector<1x512x128xf32>
    tpu.vector_store %arg4[%c0_6, %c0_7, %c0_8], %9 {strides = array<i32>} : memref<1x512x128xf32, #tpu.memory_space<vmem>>, vector<1x512x128xf32>,
    return
  }
  func.func @transform_0(%arg0: i32) -> (i32, i32, i32) {
    %c0_i32 = arith.constant 0 : i32
    %c0_i32_0 = arith.constant 0 : i32
    %c0_i32_1 = arith.constant 0 : i32
    return %arg0, %c0_i32, %c0_i32_0 : i32, i32, i32
  }
  func.func @transform_1(%arg0: i32) -> (i32, i32) {
    %c0_i32 = arith.constant 0 : i32
    %c0_i32_0 = arith.constant 0 : i32
    %c0_i32_1 = arith.constant 0 : i32
    return %c0_i32, %c0_i32_0 : i32, i32
  }
  func.func @transform_2(%arg0: i32) -> (i32, i32) {
    %c0_i32 = arith.constant 0 : i32
    %c0_i32_0 = arith.constant 0 : i32
    %c0_i32_1 = arith.constant 0 : i32
    return %c0_i32, %c0_i32_0 : i32, i32
  }
  func.func @transform_3(%arg0: i32) -> (i32, i32, i32) {
    %c0_i32 = arith.constant 0 : i32
    %c0_i32_0 = arith.constant 0 : i32
    %c0_i32_1 = arith.constant 0 : i32
    return %arg0, %c0_i32, %c0_i32_0 : i32, i32, i32
  }
}

module attributes {stable_mosaic.version = 11 : i64} {
  func.func @_recurrent_kernel(%arg0: i32, %arg1: i32, %arg2: memref<1x1x256x128xf32, #tpu.memory_space<vmem>>, %arg3: memref<288x128xbf16, #tpu.memory_space<vmem>>, %arg4: memref<256x32xf32, #tpu.memory_space<vmem>>, %arg5: memref<256x32xf32, #tpu.memory_space<vmem>>, %arg6: memref<256x32xf32, #tpu.memory_space<vmem>>, %arg7: memref<1x1x256x32xf32, #tpu.memory_space<vmem>>, %arg8: memref<18x18x32xf32, #tpu.memory_space<vmem>>, %arg9: memref<256x32xf32, #tpu.memory_space<vmem>>, %arg10: memref<128x288xf32, #tpu.memory_space<vmem>>) attributes {dimension_semantics = [#tpu.dimension_semantics<parallel>, #tpu.dimension_semantics<arbitrary>], iteration_bounds = array<i64: 2, 8>, scalar_prefetch = 0 : i64, scratch_operands = 3 : i64, tpu.core_type = #tpu.core_type<tc>, window_params = [{transform_indices = @transform_0, window_bounds = array<i64: 1, 1, 256, 128>}, {pipeline_mode = #tpu.pipeline_mode<synchronous>, transform_indices = @transform_1, window_bounds = array<i64: 288, 128>}, {pipeline_mode = #tpu.pipeline_mode<synchronous>, transform_indices = @transform_2, window_bounds = array<i64: 256, 32>}, {pipeline_mode = #tpu.pipeline_mode<synchronous>, transform_indices = @transform_3, window_bounds = array<i64: 256, 32>}, {pipeline_mode = #tpu.pipeline_mode<synchronous>, transform_indices = @transform_4, window_bounds = array<i64: 256, 32>}, {transform_indices = @transform_5, window_bounds = array<i64: 1, 1, 256, 32>}]} {
    %c0_i32 = arith.constant 0 : i32
    %0 = arith.cmpi eq, %arg1, %c0_i32 : i32
    %1 = arith.extui %0 : i1 to i32
    %c0_i32_0 = arith.constant 0 : i32
    %2 = arith.cmpi ne, %1, %c0_i32_0 : i32
    scf.if %2 {
      %cst_133 = arith.constant 0.000000e+00 : f32
      %152 = vector.broadcast %cst_133 : f32 to vector<18x18x32xf32>
      %c0_134 = arith.constant 0 : index
      %c0_135 = arith.constant 0 : index
      %c0_136 = arith.constant 0 : index
      %153 = vector.load %arg8[%c0_134, %c0_135, %c0_136] : memref<18x18x32xf32, #tpu.memory_space<vmem>>, vector<18x18x32xf32>
      tpu.vector_store %arg8[%c0_134, %c0_135, %c0_136], %152 {strides = array<i32>} : memref<18x18x32xf32, #tpu.memory_space<vmem>>, vector<18x18x32xf32>,
      %cst_137 = arith.constant 0.000000e+00 : f32
      %154 = vector.broadcast %cst_137 : f32 to vector<256x32xf32>
      %c0_138 = arith.constant 0 : index
      %c0_139 = arith.constant 0 : index
      %155 = vector.load %arg9[%c0_138, %c0_139] : memref<256x32xf32, #tpu.memory_space<vmem>>, vector<256x32xf32>
      tpu.vector_store %arg9[%c0_138, %c0_139], %154 {strides = array<i32>} : memref<256x32xf32, #tpu.memory_space<vmem>>, vector<256x32xf32>,
    } else {
    }
    %c0 = arith.constant 0 : index
    %c0_1 = arith.constant 0 : index
    %3 = vector.load %arg3[%c0, %c0_1] : memref<288x128xbf16, #tpu.memory_space<vmem>>, vector<288x128xbf16>
    %c0_2 = arith.constant 0 : index
    %c0_3 = arith.constant 0 : index
    %c0_4 = arith.constant 0 : index
    %4 = vector.load %arg8[%c0_2, %c0_3, %c0_4] : memref<18x18x32xf32, #tpu.memory_space<vmem>>, vector<8x16x32xf32>
    %5 = vector.shape_cast %4 : vector<8x16x32xf32> to vector<128x32xf32>
    %c0_5 = arith.constant 0 : index
    %c0_6 = arith.constant 0 : index
    %6 = vector.load %arg10[%c0_5, %c0_6] : memref<128x288xf32, #tpu.memory_space<vmem>>, vector<128x32xf32>
    tpu.vector_store %arg10[%c0_5, %c0_6], %5 {strides = array<i32>} : memref<128x288xf32, #tpu.memory_space<vmem>>, vector<128x32xf32>,
    %c0_7 = arith.constant 0 : index
    %c1 = arith.constant 1 : index
    %c0_8 = arith.constant 0 : index
    %7 = vector.load %arg8[%c0_7, %c1, %c0_8] : memref<18x18x32xf32, #tpu.memory_space<vmem>>, vector<8x16x32xf32>
    %8 = vector.shape_cast %7 : vector<8x16x32xf32> to vector<128x32xf32>
    %c0_9 = arith.constant 0 : index
    %c32 = arith.constant 32 : index
    %9 = vector.load %arg10[%c0_9, %c32] : memref<128x288xf32, #tpu.memory_space<vmem>>, vector<128x32xf32>
    tpu.vector_store %arg10[%c0_9, %c32], %8 {strides = array<i32>} : memref<128x288xf32, #tpu.memory_space<vmem>>, vector<128x32xf32>,
    %c0_10 = arith.constant 0 : index
    %c2 = arith.constant 2 : index
    %c0_11 = arith.constant 0 : index
    %10 = vector.load %arg8[%c0_10, %c2, %c0_11] : memref<18x18x32xf32, #tpu.memory_space<vmem>>, vector<8x16x32xf32>
    %11 = vector.shape_cast %10 : vector<8x16x32xf32> to vector<128x32xf32>
    %c0_12 = arith.constant 0 : index
    %c64 = arith.constant 64 : index
    %12 = vector.load %arg10[%c0_12, %c64] : memref<128x288xf32, #tpu.memory_space<vmem>>, vector<128x32xf32>
    tpu.vector_store %arg10[%c0_12, %c64], %11 {strides = array<i32>} : memref<128x288xf32, #tpu.memory_space<vmem>>, vector<128x32xf32>,
    %c1_13 = arith.constant 1 : index
    %c0_14 = arith.constant 0 : index
    %c0_15 = arith.constant 0 : index
    %13 = vector.load %arg8[%c1_13, %c0_14, %c0_15] : memref<18x18x32xf32, #tpu.memory_space<vmem>>, vector<8x16x32xf32>
    %14 = vector.shape_cast %13 : vector<8x16x32xf32> to vector<128x32xf32>
    %c0_16 = arith.constant 0 : index
    %c96 = arith.constant 96 : index
    %15 = vector.load %arg10[%c0_16, %c96] : memref<128x288xf32, #tpu.memory_space<vmem>>, vector<128x32xf32>
    tpu.vector_store %arg10[%c0_16, %c96], %14 {strides = array<i32>} : memref<128x288xf32, #tpu.memory_space<vmem>>, vector<128x32xf32>,
    %c1_17 = arith.constant 1 : index
    %c1_18 = arith.constant 1 : index
    %c0_19 = arith.constant 0 : index
    %16 = vector.load %arg8[%c1_17, %c1_18, %c0_19] : memref<18x18x32xf32, #tpu.memory_space<vmem>>, vector<8x16x32xf32>
    %17 = vector.shape_cast %16 : vector<8x16x32xf32> to vector<128x32xf32>
    %c0_20 = arith.constant 0 : index
    %c128 = arith.constant 128 : index
    %18 = vector.load %arg10[%c0_20, %c128] : memref<128x288xf32, #tpu.memory_space<vmem>>, vector<128x32xf32>
    tpu.vector_store %arg10[%c0_20, %c128], %17 {strides = array<i32>} : memref<128x288xf32, #tpu.memory_space<vmem>>, vector<128x32xf32>,
    %c1_21 = arith.constant 1 : index
    %c2_22 = arith.constant 2 : index
    %c0_23 = arith.constant 0 : index
    %19 = vector.load %arg8[%c1_21, %c2_22, %c0_23] : memref<18x18x32xf32, #tpu.memory_space<vmem>>, vector<8x16x32xf32>
    %20 = vector.shape_cast %19 : vector<8x16x32xf32> to vector<128x32xf32>
    %c0_24 = arith.constant 0 : index
    %c160 = arith.constant 160 : index
    %21 = vector.load %arg10[%c0_24, %c160] : memref<128x288xf32, #tpu.memory_space<vmem>>, vector<128x32xf32>
    tpu.vector_store %arg10[%c0_24, %c160], %20 {strides = array<i32>} : memref<128x288xf32, #tpu.memory_space<vmem>>, vector<128x32xf32>,
    %c2_25 = arith.constant 2 : index
    %c0_26 = arith.constant 0 : index
    %c0_27 = arith.constant 0 : index
    %22 = vector.load %arg8[%c2_25, %c0_26, %c0_27] : memref<18x18x32xf32, #tpu.memory_space<vmem>>, vector<8x16x32xf32>
    %23 = vector.shape_cast %22 : vector<8x16x32xf32> to vector<128x32xf32>
    %c0_28 = arith.constant 0 : index
    %c192 = arith.constant 192 : index
    %24 = vector.load %arg10[%c0_28, %c192] : memref<128x288xf32, #tpu.memory_space<vmem>>, vector<128x32xf32>
    tpu.vector_store %arg10[%c0_28, %c192], %23 {strides = array<i32>} : memref<128x288xf32, #tpu.memory_space<vmem>>, vector<128x32xf32>,
    %c2_29 = arith.constant 2 : index
    %c1_30 = arith.constant 1 : index
    %c0_31 = arith.constant 0 : index
    %25 = vector.load %arg8[%c2_29, %c1_30, %c0_31] : memref<18x18x32xf32, #tpu.memory_space<vmem>>, vector<8x16x32xf32>
    %26 = vector.shape_cast %25 : vector<8x16x32xf32> to vector<128x32xf32>
    %c0_32 = arith.constant 0 : index
    %c224 = arith.constant 224 : index
    %27 = vector.load %arg10[%c0_32, %c224] : memref<128x288xf32, #tpu.memory_space<vmem>>, vector<128x32xf32>
    tpu.vector_store %arg10[%c0_32, %c224], %26 {strides = array<i32>} : memref<128x288xf32, #tpu.memory_space<vmem>>, vector<128x32xf32>,
    %c2_33 = arith.constant 2 : index
    %c2_34 = arith.constant 2 : index
    %c0_35 = arith.constant 0 : index
    %28 = vector.load %arg8[%c2_33, %c2_34, %c0_35] : memref<18x18x32xf32, #tpu.memory_space<vmem>>, vector<8x16x32xf32>
    %29 = vector.shape_cast %28 : vector<8x16x32xf32> to vector<128x32xf32>
    %c0_36 = arith.constant 0 : index
    %c256 = arith.constant 256 : index
    %30 = vector.load %arg10[%c0_36, %c256] : memref<128x288xf32, #tpu.memory_space<vmem>>, vector<128x32xf32>
    tpu.vector_store %arg10[%c0_36, %c256], %29 {strides = array<i32>} : memref<128x288xf32, #tpu.memory_space<vmem>>, vector<128x32xf32>,
    %c0_37 = arith.constant 0 : index
    %c0_38 = arith.constant 0 : index
    %31 = vector.load %arg10[%c0_37, %c0_38] : memref<128x288xf32, #tpu.memory_space<vmem>>, vector<128x288xf32>
    %32 = arith.truncf %31 : vector<128x288xf32> to vector<128x288xbf16>
    %cst = arith.constant dense<0.000000e+00> : vector<128x128xf32>
    %33 = tpu.matmul %32, %3, %cst {dimension_numbers = #tpu.dot_dimension_numbers<[1], [0], [0], [1], [0, 0, 1, 1], [], []>} : vector<128x288xbf16>, vector<288x128xbf16>, vector<128x128xf32> -> vector<128x128xf32>
    %c0_39 = arith.constant 0 : index
    %c0_40 = arith.constant 0 : index
    %c0_41 = arith.constant 0 : index
    %c0_42 = arith.constant 0 : index
    %34 = vector.load %arg2[%c0_39, %c0_40, %c0_41, %c0_42] : memref<1x1x256x128xf32, #tpu.memory_space<vmem>>, vector<1x1x128x128xf32>
    %35 = vector.shape_cast %34 : vector<1x1x128x128xf32> to vector<128x128xf32>
    %36 = arith.addf %33, %35 : vector<128x128xf32>
    %37 = vector.extract_strided_slice %36 {offsets = [0, 0], sizes = [128, 32], strides = [1, 1]} : vector<128x128xf32> to vector<128x32xf32>
    %38 = vector.extract_strided_slice %36 {offsets = [0, 32], sizes = [128, 32], strides = [1, 1]} : vector<128x128xf32> to vector<128x32xf32>
    %39 = vector.extract_strided_slice %36 {offsets = [0, 64], sizes = [128, 32], strides = [1, 1]} : vector<128x128xf32> to vector<128x32xf32>
    %40 = vector.extract_strided_slice %36 {offsets = [0, 96], sizes = [128, 32], strides = [1, 1]} : vector<128x128xf32> to vector<128x32xf32>
    %c0_43 = arith.constant 0 : index
    %c0_44 = arith.constant 0 : index
    %41 = vector.load %arg9[%c0_43, %c0_44] : memref<256x32xf32, #tpu.memory_space<vmem>>, vector<128x32xf32>
    %c0_45 = arith.constant 0 : index
    %c0_46 = arith.constant 0 : index
    %42 = vector.load %arg4[%c0_45, %c0_46] : memref<256x32xf32, #tpu.memory_space<vmem>>, vector<128x32xf32>
    %43 = arith.mulf %42, %41 : vector<128x32xf32>
    %44 = arith.addf %37, %43 : vector<128x32xf32>
    %45 = arith.negf %44 : vector<128x32xf32>
    %46 = math.exp %45 : vector<128x32xf32>
    %cst_47 = arith.constant 1.000000e+00 : f32
    %47 = vector.broadcast %cst_47 : f32 to vector<128x32xf32>
    %48 = arith.addf %47, %46 : vector<128x32xf32>
    %49 = arith.divf %47, %48 : vector<128x32xf32>
    %c0_48 = arith.constant 0 : index
    %c0_49 = arith.constant 0 : index
    %50 = vector.load %arg5[%c0_48, %c0_49] : memref<256x32xf32, #tpu.memory_space<vmem>>, vector<128x32xf32>
    %51 = arith.mulf %50, %41 : vector<128x32xf32>
    %52 = arith.addf %38, %51 : vector<128x32xf32>
    %53 = arith.negf %52 : vector<128x32xf32>
    %54 = math.exp %53 : vector<128x32xf32>
    %cst_50 = arith.constant 1.000000e+00 : f32
    %55 = vector.broadcast %cst_50 : f32 to vector<128x32xf32>
    %56 = arith.addf %55, %54 : vector<128x32xf32>
    %57 = arith.divf %55, %56 : vector<128x32xf32>
    %58 = arith.mulf %57, %41 : vector<128x32xf32>
    %59 = math.tanh %39 : vector<128x32xf32>
    %60 = arith.mulf %49, %59 : vector<128x32xf32>
    %61 = arith.addf %58, %60 : vector<128x32xf32>
    %c0_51 = arith.constant 0 : index
    %c0_52 = arith.constant 0 : index
    %62 = vector.load %arg6[%c0_51, %c0_52] : memref<256x32xf32, #tpu.memory_space<vmem>>, vector<128x32xf32>
    %63 = arith.mulf %62, %61 : vector<128x32xf32>
    %64 = arith.addf %40, %63 : vector<128x32xf32>
    %65 = arith.negf %64 : vector<128x32xf32>
    %66 = math.exp %65 : vector<128x32xf32>
    %cst_53 = arith.constant 1.000000e+00 : f32
    %67 = vector.broadcast %cst_53 : f32 to vector<128x32xf32>
    %68 = arith.addf %67, %66 : vector<128x32xf32>
    %69 = arith.divf %67, %68 : vector<128x32xf32>
    %70 = math.tanh %61 : vector<128x32xf32>
    %71 = arith.mulf %69, %70 : vector<128x32xf32>
    %c0_54 = arith.constant 0 : index
    %c0_55 = arith.constant 0 : index
    %72 = vector.load %arg9[%c0_54, %c0_55] : memref<256x32xf32, #tpu.memory_space<vmem>>, vector<128x32xf32>
    tpu.vector_store %arg9[%c0_54, %c0_55], %61 {strides = array<i32>} : memref<256x32xf32, #tpu.memory_space<vmem>>, vector<128x32xf32>,
    %c0_56 = arith.constant 0 : index
    %c0_57 = arith.constant 0 : index
    %c0_58 = arith.constant 0 : index
    %c0_59 = arith.constant 0 : index
    %73 = vector.load %arg7[%c0_56, %c0_57, %c0_58, %c0_59] : memref<1x1x256x32xf32, #tpu.memory_space<vmem>>, vector<1x1x128x32xf32>
    %74 = vector.shape_cast %73 : vector<1x1x128x32xf32> to vector<128x32xf32>
    %75 = vector.shape_cast %71 : vector<128x32xf32> to vector<1x1x128x32xf32>
    tpu.vector_store %arg7[%c0_56, %c0_57, %c0_58, %c0_59], %75 {strides = array<i32>} : memref<1x1x256x32xf32, #tpu.memory_space<vmem>>, vector<1x1x128x32xf32>,
    %c8 = arith.constant 8 : index
    %c0_60 = arith.constant 0 : index
    %c0_61 = arith.constant 0 : index
    %76 = vector.load %arg8[%c8, %c0_60, %c0_61] : memref<18x18x32xf32, #tpu.memory_space<vmem>>, vector<8x16x32xf32>
    %77 = vector.shape_cast %76 : vector<8x16x32xf32> to vector<128x32xf32>
    %c0_62 = arith.constant 0 : index
    %c0_63 = arith.constant 0 : index
    %78 = vector.load %arg10[%c0_62, %c0_63] : memref<128x288xf32, #tpu.memory_space<vmem>>, vector<128x32xf32>
    tpu.vector_store %arg10[%c0_62, %c0_63], %77 {strides = array<i32>} : memref<128x288xf32, #tpu.memory_space<vmem>>, vector<128x32xf32>,
    %c8_64 = arith.constant 8 : index
    %c1_65 = arith.constant 1 : index
    %c0_66 = arith.constant 0 : index
    %79 = vector.load %arg8[%c8_64, %c1_65, %c0_66] : memref<18x18x32xf32, #tpu.memory_space<vmem>>, vector<8x16x32xf32>
    %80 = vector.shape_cast %79 : vector<8x16x32xf32> to vector<128x32xf32>
    %c0_67 = arith.constant 0 : index
    %c32_68 = arith.constant 32 : index
    %81 = vector.load %arg10[%c0_67, %c32_68] : memref<128x288xf32, #tpu.memory_space<vmem>>, vector<128x32xf32>
    tpu.vector_store %arg10[%c0_67, %c32_68], %80 {strides = array<i32>} : memref<128x288xf32, #tpu.memory_space<vmem>>, vector<128x32xf32>,
    %c8_69 = arith.constant 8 : index
    %c2_70 = arith.constant 2 : index
    %c0_71 = arith.constant 0 : index
    %82 = vector.load %arg8[%c8_69, %c2_70, %c0_71] : memref<18x18x32xf32, #tpu.memory_space<vmem>>, vector<8x16x32xf32>
    %83 = vector.shape_cast %82 : vector<8x16x32xf32> to vector<128x32xf32>
    %c0_72 = arith.constant 0 : index
    %c64_73 = arith.constant 64 : index
    %84 = vector.load %arg10[%c0_72, %c64_73] : memref<128x288xf32, #tpu.memory_space<vmem>>, vector<128x32xf32>
    tpu.vector_store %arg10[%c0_72, %c64_73], %83 {strides = array<i32>} : memref<128x288xf32, #tpu.memory_space<vmem>>, vector<128x32xf32>,
    %c9 = arith.constant 9 : index
    %c0_74 = arith.constant 0 : index
    %c0_75 = arith.constant 0 : index
    %85 = vector.load %arg8[%c9, %c0_74, %c0_75] : memref<18x18x32xf32, #tpu.memory_space<vmem>>, vector<8x16x32xf32>
    %86 = vector.shape_cast %85 : vector<8x16x32xf32> to vector<128x32xf32>
    %c0_76 = arith.constant 0 : index
    %c96_77 = arith.constant 96 : index
    %87 = vector.load %arg10[%c0_76, %c96_77] : memref<128x288xf32, #tpu.memory_space<vmem>>, vector<128x32xf32>
    tpu.vector_store %arg10[%c0_76, %c96_77], %86 {strides = array<i32>} : memref<128x288xf32, #tpu.memory_space<vmem>>, vector<128x32xf32>,
    %c9_78 = arith.constant 9 : index
    %c1_79 = arith.constant 1 : index
    %c0_80 = arith.constant 0 : index
    %88 = vector.load %arg8[%c9_78, %c1_79, %c0_80] : memref<18x18x32xf32, #tpu.memory_space<vmem>>, vector<8x16x32xf32>
    %89 = vector.shape_cast %88 : vector<8x16x32xf32> to vector<128x32xf32>
    %c0_81 = arith.constant 0 : index
    %c128_82 = arith.constant 128 : index
    %90 = vector.load %arg10[%c0_81, %c128_82] : memref<128x288xf32, #tpu.memory_space<vmem>>, vector<128x32xf32>
    tpu.vector_store %arg10[%c0_81, %c128_82], %89 {strides = array<i32>} : memref<128x288xf32, #tpu.memory_space<vmem>>, vector<128x32xf32>,
    %c9_83 = arith.constant 9 : index
    %c2_84 = arith.constant 2 : index
    %c0_85 = arith.constant 0 : index
    %91 = vector.load %arg8[%c9_83, %c2_84, %c0_85] : memref<18x18x32xf32, #tpu.memory_space<vmem>>, vector<8x16x32xf32>
    %92 = vector.shape_cast %91 : vector<8x16x32xf32> to vector<128x32xf32>
    %c0_86 = arith.constant 0 : index
    %c160_87 = arith.constant 160 : index
    %93 = vector.load %arg10[%c0_86, %c160_87] : memref<128x288xf32, #tpu.memory_space<vmem>>, vector<128x32xf32>
    tpu.vector_store %arg10[%c0_86, %c160_87], %92 {strides = array<i32>} : memref<128x288xf32, #tpu.memory_space<vmem>>, vector<128x32xf32>,
    %c10 = arith.constant 10 : index
    %c0_88 = arith.constant 0 : index
    %c0_89 = arith.constant 0 : index
    %94 = vector.load %arg8[%c10, %c0_88, %c0_89] : memref<18x18x32xf32, #tpu.memory_space<vmem>>, vector<8x16x32xf32>
    %95 = vector.shape_cast %94 : vector<8x16x32xf32> to vector<128x32xf32>
    %c0_90 = arith.constant 0 : index
    %c192_91 = arith.constant 192 : index
    %96 = vector.load %arg10[%c0_90, %c192_91] : memref<128x288xf32, #tpu.memory_space<vmem>>, vector<128x32xf32>
    tpu.vector_store %arg10[%c0_90, %c192_91], %95 {strides = array<i32>} : memref<128x288xf32, #tpu.memory_space<vmem>>, vector<128x32xf32>,
    %c10_92 = arith.constant 10 : index
    %c1_93 = arith.constant 1 : index
    %c0_94 = arith.constant 0 : index
    %97 = vector.load %arg8[%c10_92, %c1_93, %c0_94] : memref<18x18x32xf32, #tpu.memory_space<vmem>>, vector<8x16x32xf32>
    %98 = vector.shape_cast %97 : vector<8x16x32xf32> to vector<128x32xf32>
    %c0_95 = arith.constant 0 : index
    %c224_96 = arith.constant 224 : index
    %99 = vector.load %arg10[%c0_95, %c224_96] : memref<128x288xf32, #tpu.memory_space<vmem>>, vector<128x32xf32>
    tpu.vector_store %arg10[%c0_95, %c224_96], %98 {strides = array<i32>} : memref<128x288xf32, #tpu.memory_space<vmem>>, vector<128x32xf32>,
    %c10_97 = arith.constant 10 : index
    %c2_98 = arith.constant 2 : index
    %c0_99 = arith.constant 0 : index
    %100 = vector.load %arg8[%c10_97, %c2_98, %c0_99] : memref<18x18x32xf32, #tpu.memory_space<vmem>>, vector<8x16x32xf32>
    %101 = vector.shape_cast %100 : vector<8x16x32xf32> to vector<128x32xf32>
    %c0_100 = arith.constant 0 : index
    %c256_101 = arith.constant 256 : index
    %102 = vector.load %arg10[%c0_100, %c256_101] : memref<128x288xf32, #tpu.memory_space<vmem>>, vector<128x32xf32>
    tpu.vector_store %arg10[%c0_100, %c256_101], %101 {strides = array<i32>} : memref<128x288xf32, #tpu.memory_space<vmem>>, vector<128x32xf32>,
    %c0_102 = arith.constant 0 : index
    %c0_103 = arith.constant 0 : index
    %103 = vector.load %arg10[%c0_102, %c0_103] : memref<128x288xf32, #tpu.memory_space<vmem>>, vector<128x288xf32>
    %104 = arith.truncf %103 : vector<128x288xf32> to vector<128x288xbf16>
    %cst_104 = arith.constant dense<0.000000e+00> : vector<128x128xf32>
    %105 = tpu.matmul %104, %3, %cst_104 {dimension_numbers = #tpu.dot_dimension_numbers<[1], [0], [0], [1], [0, 0, 1, 1], [], []>} : vector<128x288xbf16>, vector<288x128xbf16>, vector<128x128xf32> -> vector<128x128xf32>
    %c0_105 = arith.constant 0 : index
    %c0_106 = arith.constant 0 : index
    %c128_107 = arith.constant 128 : index
    %c0_108 = arith.constant 0 : index
    %106 = vector.load %arg2[%c0_105, %c0_106, %c128_107, %c0_108] : memref<1x1x256x128xf32, #tpu.memory_space<vmem>>, vector<1x1x128x128xf32>
    %107 = vector.shape_cast %106 : vector<1x1x128x128xf32> to vector<128x128xf32>
    %108 = arith.addf %105, %107 : vector<128x128xf32>
    %109 = vector.extract_strided_slice %108 {offsets = [0, 0], sizes = [128, 32], strides = [1, 1]} : vector<128x128xf32> to vector<128x32xf32>
    %110 = vector.extract_strided_slice %108 {offsets = [0, 32], sizes = [128, 32], strides = [1, 1]} : vector<128x128xf32> to vector<128x32xf32>
    %111 = vector.extract_strided_slice %108 {offsets = [0, 64], sizes = [128, 32], strides = [1, 1]} : vector<128x128xf32> to vector<128x32xf32>
    %112 = vector.extract_strided_slice %108 {offsets = [0, 96], sizes = [128, 32], strides = [1, 1]} : vector<128x128xf32> to vector<128x32xf32>
    %c128_109 = arith.constant 128 : index
    %c0_110 = arith.constant 0 : index
    %113 = vector.load %arg9[%c128_109, %c0_110] : memref<256x32xf32, #tpu.memory_space<vmem>>, vector<128x32xf32>
    %c128_111 = arith.constant 128 : index
    %c0_112 = arith.constant 0 : index
    %114 = vector.load %arg4[%c128_111, %c0_112] : memref<256x32xf32, #tpu.memory_space<vmem>>, vector<128x32xf32>
    %115 = arith.mulf %114, %113 : vector<128x32xf32>
    %116 = arith.addf %109, %115 : vector<128x32xf32>
    %117 = arith.negf %116 : vector<128x32xf32>
    %118 = math.exp %117 : vector<128x32xf32>
    %cst_113 = arith.constant 1.000000e+00 : f32
    %119 = vector.broadcast %cst_113 : f32 to vector<128x32xf32>
    %120 = arith.addf %119, %118 : vector<128x32xf32>
    %121 = arith.divf %119, %120 : vector<128x32xf32>
    %c128_114 = arith.constant 128 : index
    %c0_115 = arith.constant 0 : index
    %122 = vector.load %arg5[%c128_114, %c0_115] : memref<256x32xf32, #tpu.memory_space<vmem>>, vector<128x32xf32>
    %123 = arith.mulf %122, %113 : vector<128x32xf32>
    %124 = arith.addf %110, %123 : vector<128x32xf32>
    %125 = arith.negf %124 : vector<128x32xf32>
    %126 = math.exp %125 : vector<128x32xf32>
    %cst_116 = arith.constant 1.000000e+00 : f32
    %127 = vector.broadcast %cst_116 : f32 to vector<128x32xf32>
    %128 = arith.addf %127, %126 : vector<128x32xf32>
    %129 = arith.divf %127, %128 : vector<128x32xf32>
    %130 = arith.mulf %129, %113 : vector<128x32xf32>
    %131 = math.tanh %111 : vector<128x32xf32>
    %132 = arith.mulf %121, %131 : vector<128x32xf32>
    %133 = arith.addf %130, %132 : vector<128x32xf32>
    %c128_117 = arith.constant 128 : index
    %c0_118 = arith.constant 0 : index
    %134 = vector.load %arg6[%c128_117, %c0_118] : memref<256x32xf32, #tpu.memory_space<vmem>>, vector<128x32xf32>
    %135 = arith.mulf %134, %133 : vector<128x32xf32>
    %136 = arith.addf %112, %135 : vector<128x32xf32>
    %137 = arith.negf %136 : vector<128x32xf32>
    %138 = math.exp %137 : vector<128x32xf32>
    %cst_119 = arith.constant 1.000000e+00 : f32
    %139 = vector.broadcast %cst_119 : f32 to vector<128x32xf32>
    %140 = arith.addf %139, %138 : vector<128x32xf32>
    %141 = arith.divf %139, %140 : vector<128x32xf32>
    %142 = math.tanh %133 : vector<128x32xf32>
    %143 = arith.mulf %141, %142 : vector<128x32xf32>
    %c128_120 = arith.constant 128 : index
    %c0_121 = arith.constant 0 : index
    %144 = vector.load %arg9[%c128_120, %c0_121] : memref<256x32xf32, #tpu.memory_space<vmem>>, vector<128x32xf32>
    tpu.vector_store %arg9[%c128_120, %c0_121], %133 {strides = array<i32>} : memref<256x32xf32, #tpu.memory_space<vmem>>, vector<128x32xf32>,
    %c0_122 = arith.constant 0 : index
    %c0_123 = arith.constant 0 : index
    %c128_124 = arith.constant 128 : index
    %c0_125 = arith.constant 0 : index
    %145 = vector.load %arg7[%c0_122, %c0_123, %c128_124, %c0_125] : memref<1x1x256x32xf32, #tpu.memory_space<vmem>>, vector<1x1x128x32xf32>
    %146 = vector.shape_cast %145 : vector<1x1x128x32xf32> to vector<128x32xf32>
    %147 = vector.shape_cast %143 : vector<128x32xf32> to vector<1x1x128x32xf32>
    tpu.vector_store %arg7[%c0_122, %c0_123, %c128_124, %c0_125], %147 {strides = array<i32>} : memref<1x1x256x32xf32, #tpu.memory_space<vmem>>, vector<1x1x128x32xf32>,
    %c0_126 = arith.constant 0 : index
    %c0_127 = arith.constant 0 : index
    %c0_128 = arith.constant 0 : index
    %c0_129 = arith.constant 0 : index
    %148 = vector.load %arg7[%c0_126, %c0_127, %c0_128, %c0_129] : memref<1x1x256x32xf32, #tpu.memory_space<vmem>>, vector<1x1x256x32xf32>
    %149 = vector.shape_cast %148 : vector<1x1x256x32xf32> to vector<256x32xf32>
    %150 = vector.shape_cast %149 : vector<256x32xf32> to vector<16x16x32xf32>
    %c1_130 = arith.constant 1 : index
    %c1_131 = arith.constant 1 : index
    %c0_132 = arith.constant 0 : index
    %151 = vector.load %arg8[%c1_130, %c1_131, %c0_132] : memref<18x18x32xf32, #tpu.memory_space<vmem>>, vector<16x16x32xf32>
    tpu.vector_store %arg8[%c1_130, %c1_131, %c0_132], %150 {strides = array<i32>} : memref<18x18x32xf32, #tpu.memory_space<vmem>>, vector<16x16x32xf32>,
    return
  }
  func.func @transform_0(%arg0: i32, %arg1: i32) -> (i32, i32, i32, i32) {
    %c0_i32 = arith.constant 0 : i32
    %c0_i32_0 = arith.constant 0 : i32
    %c0_i32_1 = arith.constant 0 : i32
    return %arg1, %arg0, %c0_i32, %c0_i32_0 : i32, i32, i32, i32
  }
  func.func @transform_1(%arg0: i32, %arg1: i32) -> (i32, i32) {
    %c0_i32 = arith.constant 0 : i32
    %c0_i32_0 = arith.constant 0 : i32
    %c0_i32_1 = arith.constant 0 : i32
    return %c0_i32, %c0_i32_0 : i32, i32
  }
  func.func @transform_2(%arg0: i32, %arg1: i32) -> (i32, i32) {
    %c0_i32 = arith.constant 0 : i32
    %c0_i32_0 = arith.constant 0 : i32
    %c0_i32_1 = arith.constant 0 : i32
    return %c0_i32, %c0_i32_0 : i32, i32
  }
  func.func @transform_3(%arg0: i32, %arg1: i32) -> (i32, i32) {
    %c0_i32 = arith.constant 0 : i32
    %c0_i32_0 = arith.constant 0 : i32
    %c0_i32_1 = arith.constant 0 : i32
    return %c0_i32, %c0_i32_0 : i32, i32
  }
  func.func @transform_4(%arg0: i32, %arg1: i32) -> (i32, i32) {
    %c0_i32 = arith.constant 0 : i32
    %c0_i32_0 = arith.constant 0 : i32
    %c0_i32_1 = arith.constant 0 : i32
    return %c0_i32, %c0_i32_0 : i32, i32
  }
  func.func @transform_5(%arg0: i32, %arg1: i32) -> (i32, i32, i32, i32) {
    %c0_i32 = arith.constant 0 : i32
    %c0_i32_0 = arith.constant 0 : i32
    %c0_i32_1 = arith.constant 0 : i32
    return %arg1, %arg0, %c0_i32, %c0_i32_0 : i32, i32, i32, i32
  }
}

</mosaic_0001>

<llo_original>
// kernel: conv_lstm_forward.2
$region0: #{conv_lstm_forward.2}
  #allocation0 [shape = 'u32[]', space=smem, size = 0x4, offset = 0x4, fixed_abs, tag = 'smem constant byte address 0x4 - core index']
  #allocation1 [shape = 'u32[144,128]{1,0:T(1,128)}', space=vmem, size = 0x12000, scoped, tag = 'internal scratch']
  %s0 = inlined_call_operand.vmem [shape: bf16[8,512,36], index: 0, kind: input, shape index: {}]
  %s1 = inlined_call_operand.vmem [shape: bf16[36,128], index: 1, kind: input, shape index: {}]
  %s2 = inlined_call_operand.vmem [shape: f32[1,128], index: 2, kind: input, shape index: {}]
  %s3 = inlined_call_operand.vmem [shape: f32[8,512,128], index: 3, kind: output, shape index: {}]
  %s4 = sld [smem:[#allocation0]]
  $region45: #{conv_lstm_forward.2} parent=0
    _
  %s6 = ssub.s32 1, %s4
  %s7 = scalar_select 0, %s6, %s4
  loop: start=0, step=1, limit=10
  $region2: #{conv_lstm_forward.2} parent=0 // loop_pre_header
    _
  $region3: #{conv_lstm_forward.2} parent=0 // loop_header
    %s9 = sphi 0, %s13
    %p10 = scmp.ge.s32.totalorder %s9, 10
    %s19 = sphi 0, %s21
    %s22 = sphi 0, %s19
    %s23 = sphi 0, %s22
    %s39 = sphi 0, %s23
    %s43 = sphi 0, %s43
    %s45 = sphi 0, %s43
    %s46 = sphi 0, %s45
    %s60 = sphi 0, %s46
    %s64 = sphi 0, %s64
    %s66 = sphi 0, %s64
    %s67 = sphi 0, %s66
    %s81 = sphi 0, %s67
    %s87 = sphi 0, %s89
    %s90 = sphi 0, %s87
    %s91 = sphi 0, %s90
    %s107 = sphi 0, %s91
  $region4: #{conv_lstm_forward.2} parent=0 // loop_header_branch
    %12 = sbr.rel (%p10) target = $region8
  $region5: #{conv_lstm_forward.2} parent=0 // loop_body
    %s14 = ssub.s32 %s9, 1
    %s15 = ssub.s32 %s9, 2
    %s16 = sadd.s32 %s9, 1
    %s17 = ssub.s32 %s9, %s16
    %p18 = scmp.eq.s32.totalorder %s17, 0
    %s20 = sadd.s32 %s19, 1
    %s21 = scalar_select %p18, %s19, %s20
    %p24 = pneg %p18
    %p25 = scmp.eq.s32.totalorder %s9, 7
    %p26 = por %p24, %p25
    %p27 = scmp.ne.s32.totalorder %s19, %s22
    %p28 = scmp.eq.s32.totalorder %s9, 0
    %p29 = por %p27, %p28
    %p30 = scmp.ne.s32.totalorder %s19, %s22
    %p31 = scmp.eq.s32.totalorder %s14, 7
    %p32 = por %p30, %p31
    %p33 = scmp.ne.s32.totalorder %s22, %s23
    %p34 = scmp.eq.s32.totalorder %s14, 0
    %p35 = por %p33, %p34
    %p36 = scmp.ne.s32.totalorder %s22, %s23
    %p37 = scmp.eq.s32.totalorder %s15, 7
    %p38 = por %p36, %p37
    %p40 = scmp.ne.s32.totalorder %s23, %s39
    %p41 = scmp.eq.s32.totalorder %s15, 0
    %p42 = por %p40, %p41
    %s44 = sadd.s32 %s43, 1
    %p47 = scmp.eq.s32.totalorder %s9, 7
    %p48 = scmp.ne.s32.totalorder %s43, %s45
    %p49 = scmp.eq.s32.totalorder %s9, 0
    %p50 = por %p48, %p49
    %p51 = scmp.ne.s32.totalorder %s43, %s45
    %p52 = scmp.eq.s32.totalorder %s14, 7
    %p53 = por %p51, %p52
    %p54 = scmp.ne.s32.totalorder %s45, %s46
    %p55 = scmp.eq.s32.totalorder %s14, 0
    %p56 = por %p54, %p55
    %p57 = scmp.ne.s32.totalorder %s45, %s46
    %p58 = scmp.eq.s32.totalorder %s15, 7
    %p59 = por %p57, %p58
    %p61 = scmp.ne.s32.totalorder %s46, %s60
    %p62 = scmp.eq.s32.totalorder %s15, 0
    %p63 = por %p61, %p62
    %s65 = sadd.s32 %s64, 1
    %p68 = scmp.eq.s32.totalorder %s9, 7
    %p69 = scmp.ne.s32.totalorder %s64, %s66
    %p70 = scmp.eq.s32.totalorder %s9, 0
    %p71 = por %p69, %p70
    %p72 = scmp.ne.s32.totalorder %s64, %s66
    %p73 = scmp.eq.s32.totalorder %s14, 7
    %p74 = por %p72, %p73
    %p75 = scmp.ne.s32.totalorder %s66, %s67
    %p76 = scmp.eq.s32.totalorder %s14, 0
    %p77 = por %p75, %p76
    %p78 = scmp.ne.s32.totalorder %s66, %s67
    %p79 = scmp.eq.s32.totalorder %s15, 7
    %p80 = por %p78, %p79
    %p82 = scmp.ne.s32.totalorder %s67, %s81
    %p83 = scmp.eq.s32.totalorder %s15, 0
    %p84 = por %p82, %p83
    %s85 = ssub.s32 %s9, %s16
    %p86 = scmp.eq.s32.totalorder %s85, 0
    %s88 = sadd.s32 %s87, 1
    %s89 = scalar_select %p86, %s87, %s88
    %p92 = pneg %p86
    %p93 = scmp.eq.s32.totalorder %s9, 7
    %p94 = por %p92, %p93
    %p95 = scmp.ne.s32.totalorder %s87, %s90
    %p96 = scmp.eq.s32.totalorder %s9, 0
    %p97 = por %p95, %p96
    %p98 = scmp.ne.s32.totalorder %s87, %s90
    %p99 = scmp.eq.s32.totalorder %s14, 7
    %p100 = por %p98, %p99
    %p101 = scmp.ne.s32.totalorder %s90, %s91
    %p102 = scmp.eq.s32.totalorder %s14, 0
    %p103 = por %p101, %p102
    %p104 = scmp.ne.s32.totalorder %s90, %s91
    %p105 = scmp.eq.s32.totalorder %s15, 7
    %p106 = por %p104, %p105
    %p108 = scmp.ne.s32.totalorder %s91, %s107
    %p109 = scmp.eq.s32.totalorder %s15, 0
    %p110 = por %p108, %p109
    %p111 = scmp.le.s32.totalorder 1, %s9
    %p112 = scmp.lt.s32.totalorder %s9, 9
    %p113 = pnand %p111, %p112
    %p114 = pneg %p113
    // Predicated region
    $region9: #{conv_lstm_forward.2} parent=5 // pred_check
      _
    $region10: #{conv_lstm_forward.2} parent=5 // pred_check_branch
      %116 = sbr.rel (%p113) target = $region12
    $region11: #{conv_lstm_forward.2} parent=5 // pred_region
      %s117 = ssub.s32 %s9, 1
      // Predicated region
      $region13: #{conv_lstm_forward.2} parent=11 // pred_check
        %p118 = pneg %p56
      $region14: #{conv_lstm_forward.2} parent=11 // pred_check_branch
        %120 = sbr.rel (%p118) target = $region16
      $region15: #{conv_lstm_forward.2} parent=11 // pred_region
        _
      $region16: #{conv_lstm_forward.2} parent=11 // pred_fallthru
        _
      // Predicated region
      $region17: #{conv_lstm_forward.2} parent=11 // pred_check
        %p121 = pneg %p77
      $region18: #{conv_lstm_forward.2} parent=11 // pred_check_branch
        %123 = sbr.rel (%p121) target = $region20
      $region19: #{conv_lstm_forward.2} parent=11 // pred_region
        _
      $region20: #{conv_lstm_forward.2} parent=11 // pred_fallthru
        _
    $region12: #{conv_lstm_forward.2} parent=5 // pred_fallthru
      _
    %p124 = scmp.lt.s32.totalorder %s9, 8
    // Predicated region
    $region21: #{conv_lstm_forward.2} parent=5 // pred_check
      %p125 = pneg %p124
    $region22: #{conv_lstm_forward.2} parent=5 // pred_check_branch
      %127 = sbr.rel (%p125) target = $region24
    $region23: #{conv_lstm_forward.2} parent=5 // pred_region
      // Predicated region
      $region25: #{conv_lstm_forward.2} parent=23 // pred_check
        %p128 = pneg %p29
      $region26: #{conv_lstm_forward.2} parent=23 // pred_check_branch
        %130 = sbr.rel (%p128) target = $region28
      $region27: #{conv_lstm_forward.2} parent=23 // pred_region
        %p131 = scmp.lt.s32.totalorder %s9, 7
        %s132 = scalar_select %p131, %s9, 7
        %s133 = smul.addr %s132, 64
        %s134 = smul.addr %s133, 4
        %s135 = scalar_lea.vmem %s0, %s134
      $region28: #{conv_lstm_forward.2} parent=23 // pred_fallthru
        _
    $region24: #{conv_lstm_forward.2} parent=5 // pred_fallthru
      _
    %p136 = scmp.le.s32.totalorder 1, %s9
    %p137 = scmp.lt.s32.totalorder %s9, 9
    %p138 = pnand %p136, %p137
    %p139 = pneg %p138
    // Predicated region
    $region29: #{conv_lstm_forward.2} parent=5 // pred_check
      _
    $region30: #{conv_lstm_forward.2} parent=5 // pred_check_branch
      %141 = sbr.rel (%p138) target = $region32
    $region31: #{conv_lstm_forward.2} parent=5 // pred_region
      %s142 = ssub.s32 %s9, 1
      %p143 = scmp.lt.s32.totalorder %s14, 7
      %s144 = scalar_select %p143, %s14, 7
      %s145 = smul.addr %s144, 64
      %s146 = smul.addr %s145, 4
      %s147 = scalar_lea.vmem %s0, %s146
      %p148 = pneg %p35
      %p149 = pneg %p32
      %p150 = pneg %p56
      %p151 = pneg %p53
      %p152 = pneg %p77
      %p153 = pneg %p74
      %p154 = pneg %p103
      %p155 = pneg %p100
      %p156 = scmp.lt.s32.totalorder %s14, 7
      %s157 = scalar_select %p156, %s14, 7
      %s158 = smul.addr %s157, 64
      %s159 = smul.addr %s158, 8
      %s160 = scalar_lea.vmem %s3, %s159
      %p161 = scmp.lt.s32.totalorder %s14, 7
      %s162 = scalar_select %p161, %s14, 7
      %s163 = smul.addr %s162, 64
      %s164 = smul.addr %s163, 4
      %s165 = scalar_lea.vmem %s0, %s164
      %p166 = scmp.lt.s32.totalorder %s14, 7
      %s167 = scalar_select %p166, %s14, 7
      %s168 = smul.addr %s167, 64
      %s169 = smul.addr %s168, 8
      %s170 = scalar_lea.vmem %s3, %s169
      %v172 = vld [vmem:[%s165] sm:$0xf]
      %v173 = vld [vmem:[%s165 + $0x4] sm:$0xf]
      %v174 = vld [vmem:[%s165 + $0x8] sm:$0xf]
      %v175 = vld [vmem:[%s165 + $0xc] sm:$0xf]
      %v176 = vld [vmem:[%s165 + $0x10] sm:$0xf]
      %v177 = vld [vmem:[%s165 + $0x14] sm:$0xf]
      %v178 = vld [vmem:[%s165 + $0x18] sm:$0xf]
      %v179 = vld [vmem:[%s165 + $0x1c] sm:$0xf]
      %v180 = vld [vmem:[%s165 + $0x20] sm:$0xf]
      %v181 = vld [vmem:[%s165 + $0x24] sm:$0xf]
      %v182 = vld [vmem:[%s165 + $0x28] sm:$0xf]
      %v183 = vld [vmem:[%s165 + $0x2c] sm:$0xf]
      %v184 = vld [vmem:[%s165 + $0x30] sm:$0xf]
      %v185 = vld [vmem:[%s165 + $0x34] sm:$0xf]
      %v186 = vld [vmem:[%s165 + $0x38] sm:$0xf]
      %v187 = vld [vmem:[%s165 + $0x3c] sm:$0xf]
      %v188 = vld [vmem:[%s165 + $0x40] sm:$0xf]
      %v189 = vld [vmem:[%s165 + $0x44] sm:$0xf]
      %v190 = vld [vmem:[%s165 + $0x48] sm:$0xf]
      %v191 = vld [vmem:[%s165 + $0x4c] sm:$0xf]
      %v192 = vld [vmem:[%s165 + $0x50] sm:$0xf]
      %v193 = vld [vmem:[%s165 + $0x54] sm:$0xf]
      %v194 = vld [vmem:[%s165 + $0x58] sm:$0xf]
      %v195 = vld [vmem:[%s165 + $0x5c] sm:$0xf]
      %v196 = vld [vmem:[%s165 + $0x60] sm:$0xf]
      %v197 = vld [vmem:[%s165 + $0x64] sm:$0xf]
      %v198 = vld [vmem:[%s165 + $0x68] sm:$0xf]
      %v199 = vld [vmem:[%s165 + $0x6c] sm:$0xf]
      %v200 = vld [vmem:[%s165 + $0x70] sm:$0xf]
      %v201 = vld [vmem:[%s165 + $0x74] sm:$0xf]
      %v202 = vld [vmem:[%s165 + $0x78] sm:$0xf]
      %v203 = vld [vmem:[%s165 + $0x7c] sm:$0xf]
      %v204 = vld [vmem:[%s165 + $0x80] sm:$0xf]
      %v205 = vld [vmem:[%s165 + $0x84] sm:$0xf]
      %v206 = vld [vmem:[%s165 + $0x88] sm:$0xf]
      %v207 = vld [vmem:[%s165 + $0x8c] sm:$0xf]
      %v208 = vld [vmem:[%s165 + $0x90] sm:$0xf]
      %v209 = vld [vmem:[%s165 + $0x94] sm:$0xf]
      %v210 = vld [vmem:[%s165 + $0x98] sm:$0xf]
      %v211 = vld [vmem:[%s165 + $0x9c] sm:$0xf]
      %v212 = vld [vmem:[%s165 + $0xa0] sm:$0xf]
      %v213 = vld [vmem:[%s165 + $0xa4] sm:$0xf]
      %v214 = vld [vmem:[%s165 + $0xa8] sm:$0xf]
      %v215 = vld [vmem:[%s165 + $0xac] sm:$0xf]
      %v216 = vld [vmem:[%s165 + $0xb0] sm:$0xf]
      %v217 = vld [vmem:[%s165 + $0xb4] sm:$0xf]
      %v218 = vld [vmem:[%s165 + $0xb8] sm:$0xf]
      %v219 = vld [vmem:[%s165 + $0xbc] sm:$0xf]
      %v220 = vld [vmem:[%s165 + $0xc0] sm:$0xf]
      %v221 = vld [vmem:[%s165 + $0xc4] sm:$0xf]
      %v222 = vld [vmem:[%s165 + $0xc8] sm:$0xf]
      %v223 = vld [vmem:[%s165 + $0xcc] sm:$0xf]
      %v224 = vld [vmem:[%s165 + $0xd0] sm:$0xf]
      %v225 = vld [vmem:[%s165 + $0xd4] sm:$0xf]
      %v226 = vld [vmem:[%s165 + $0xd8] sm:$0xf]
      %v227 = vld [vmem:[%s165 + $0xdc] sm:$0xf]
      %v228 = vld [vmem:[%s165 + $0xe0] sm:$0xf]
      %v229 = vld [vmem:[%s165 + $0xe4] sm:$0xf]
      %v230 = vld [vmem:[%s165 + $0xe8] sm:$0xf]
      %v231 = vld [vmem:[%s165 + $0xec] sm:$0xf]
      %v232 = vld [vmem:[%s165 + $0xf0] sm:$0xf]
      %v233 = vld [vmem:[%s165 + $0xf4] sm:$0xf]
      %v234 = vld [vmem:[%s165 + $0xf8] sm:$0xf]
      %v235 = vld [vmem:[%s165 + $0xfc] sm:$0xf]
      %v236 = vld [vmem:[%s1] sm:$0xf]
      %v237 = vld [vmem:[%s1 + $0x4] sm:$0xf]
      %v238 = vld [vmem:[%s1 + $0x8] sm:$0xf]
      %v239 = vld [vmem:[%s1 + $0xc] sm:$0xf]
      %v240 = vld [vmem:[%s1 + $0x10] sm:$0x3]
      %v241 = vld [vmem:[%s2] sm:$0x1]
      %v243 = vlaneseq
      %v244 = vshrl.u32 %v243, 7
      %v245 = vsub.s32 0, %v244
      %v246 = vrot.slane %v241, %v245
      %v312 = vunpack.c.l.b16 %v172
      %v313 = vunpack.c.l.b16 %v173
      %v314 = vunpack.c.l.b16 %v174
      %v315 = vunpack.c.l.b16 %v175
      %v316 = vunpack.c.l.b16 %v176
      %v317 = vunpack.c.l.b16 %v177
      %v318 = vunpack.c.l.b16 %v178
      %v319 = vunpack.c.l.b16 %v179
      %v320 = vunpack.c.l.b16 %v180
      %v321 = vunpack.c.l.b16 %v181
      %v322 = vunpack.c.l.b16 %v182
      %v323 = vunpack.c.l.b16 %v183
      %v324 = vunpack.c.l.b16 %v184
      %v325 = vunpack.c.l.b16 %v185
      %v326 = vunpack.c.l.b16 %v186
      %v327 = vunpack.c.l.b16 %v187
      %v328 = vunpack.c.l.b16 %v188
      %v329 = vunpack.c.l.b16 %v189
      %v330 = vunpack.c.l.b16 %v190
      %v331 = vunpack.c.l.b16 %v191
      %v332 = vunpack.c.l.b16 %v192
      %v333 = vunpack.c.l.b16 %v193
      %v334 = vunpack.c.l.b16 %v194
      %v335 = vunpack.c.l.b16 %v195
      %v336 = vunpack.c.l.b16 %v196
      %v337 = vunpack.c.l.b16 %v197
      %v338 = vunpack.c.l.b16 %v198
      %v339 = vunpack.c.l.b16 %v199
      %v340 = vunpack.c.l.b16 %v200
      %v341 = vunpack.c.l.b16 %v201
      %v342 = vunpack.c.l.b16 %v202
      %v343 = vunpack.c.l.b16 %v203
      %v344 = vunpack.c.l.b16 %v204
      %v345 = vunpack.c.l.b16 %v205
      %v346 = vunpack.c.l.b16 %v206
      %v347 = vunpack.c.l.b16 %v207
      %v348 = vunpack.c.l.b16 %v208
      %v349 = vunpack.c.l.b16 %v209
      %v350 = vunpack.c.l.b16 %v210
      %v351 = vunpack.c.l.b16 %v211
      %v352 = vunpack.c.l.b16 %v212
      %v353 = vunpack.c.l.b16 %v213
      %v354 = vunpack.c.l.b16 %v214
      %v355 = vunpack.c.l.b16 %v215
      %v356 = vunpack.c.l.b16 %v216
      %v357 = vunpack.c.l.b16 %v217
      %v358 = vunpack.c.l.b16 %v218
      %v359 = vunpack.c.l.b16 %v219
      %v360 = vunpack.c.l.b16 %v220
      %v361 = vunpack.c.l.b16 %v221
      %v362 = vunpack.c.l.b16 %v222
      %v363 = vunpack.c.l.b16 %v223
      %v364 = vunpack.c.l.b16 %v224
      %v365 = vunpack.c.l.b16 %v225
      %v366 = vunpack.c.l.b16 %v226
      %v367 = vunpack.c.l.b16 %v227
      %v368 = vunpack.c.l.b16 %v228
      %v369 = vunpack.c.l.b16 %v229
      %v370 = vunpack.c.l.b16 %v230
      %v371 = vunpack.c.l.b16 %v231
      %v372 = vunpack.c.l.b16 %v232
      %v373 = vunpack.c.l.b16 %v233
      %v374 = vunpack.c.l.b16 %v234
      %v375 = vunpack.c.l.b16 %v235
      %v376 = vpack.c.b16 %v313, %v312
      %v377 = vpack.c.b16 %v315, %v314
      %v378 = vpack.c.b16 %v317, %v316
      %v379 = vpack.c.b16 %v319, %v318
      %v380 = vpack.c.b16 %v321, %v320
      %v381 = vpack.c.b16 %v323, %v322
      %v382 = vpack.c.b16 %v325, %v324
      %v383 = vpack.c.b16 %v327, %v326
      %v384 = vpack.c.b16 %v329, %v328
      %v385 = vpack.c.b16 %v331, %v330
      %v386 = vpack.c.b16 %v333, %v332
      %v387 = vpack.c.b16 %v335, %v334
      %v388 = vpack.c.b16 %v337, %v336
      %v389 = vpack.c.b16 %v339, %v338
      %v390 = vpack.c.b16 %v341, %v340
      %v391 = vpack.c.b16 %v343, %v342
      %v392 = vpack.c.b16 %v345, %v344
      %v393 = vpack.c.b16 %v347, %v346
      %v394 = vpack.c.b16 %v349, %v348
      %v395 = vpack.c.b16 %v351, %v350
      %v396 = vpack.c.b16 %v353, %v352
      %v397 = vpack.c.b16 %v355, %v354
      %v398 = vpack.c.b16 %v357, %v356
      %v399 = vpack.c.b16 %v359, %v358
      %v400 = vpack.c.b16 %v361, %v360
      %v401 = vpack.c.b16 %v363, %v362
      %v402 = vpack.c.b16 %v365, %v364
      %v403 = vpack.c.b16 %v367, %v366
      %v404 = vpack.c.b16 %v369, %v368
      %v405 = vpack.c.b16 %v371, %v370
      %v406 = vpack.c.b16 %v373, %v372
      %v407 = vpack.c.b16 %v375, %v374
      %v413 = vunpack.c.l.b16 %v236
      %v414 = vunpack.c.l.b16 %v237
      %v415 = vunpack.c.l.b16 %v238
      %v416 = vunpack.c.l.b16 %v239
      %v417 = vunpack.c.l.b16 %v240
      %v418 = vpack.c.b16 %v414, %v413
      %v419 = vpack.c.b16 %v416, %v415
      %v420 = vpack.c.b16 %v417, %v417
      %vm423 = vcmask 293888
      %v425 = vsel %vm423, %v376, 0
      %v428 = vsel %vm423, %v377, 0
      %v431 = vsel %vm423, %v378, 0
      %v434 = vsel %vm423, %v379, 0
      %v437 = vsel %vm423, %v380, 0
      %v440 = vsel %vm423, %v381, 0
      %v443 = vsel %vm423, %v382, 0
      %v446 = vsel %vm423, %v383, 0
      %v449 = vsel %vm423, %v384, 0
      %v452 = vsel %vm423, %v385, 0
      %v455 = vsel %vm423, %v386, 0
      %v458 = vsel %vm423, %v387, 0
      %v461 = vsel %vm423, %v388, 0
      %v464 = vsel %vm423, %v389, 0
      %v467 = vsel %vm423, %v390, 0
      %v470 = vsel %vm423, %v391, 0
      %v473 = vsel %vm423, %v392, 0
      %v476 = vsel %vm423, %v393, 0
      %v479 = vsel %vm423, %v394, 0
      %v482 = vsel %vm423, %v395, 0
      %v485 = vsel %vm423, %v396, 0
      %v488 = vsel %vm423, %v397, 0
      %v491 = vsel %vm423, %v398, 0
      %v494 = vsel %vm423, %v399, 0
      %v497 = vsel %vm423, %v400, 0
      %v500 = vsel %vm423, %v401, 0
      %v503 = vsel %vm423, %v402, 0
      %v506 = vsel %vm423, %v403, 0
      %v509 = vsel %vm423, %v404, 0
      %v512 = vsel %vm423, %v405, 0
      %v515 = vsel %vm423, %v406, 0
      %v518 = vsel %vm423, %v407, 0
      %vm520 = vcmask 1041408
      %v522 = vsel %vm520, %v420, 0
      %524 = vmatprep.subr.bf16.mxu0 0
      %525 = vmatpush1.bf16.msra.mxu0 0
      %526 = vmatprep.subr.bf16.mxu0 0
      %527 = vmatpush1.bf16.msra.mxu0 0
      %528 = vmatprep.subr.bf16.mxu0 0
      %529 = vmatpush1.bf16.msra.mxu0 0
      %530 = vmatprep.subr.bf16.mxu0 0
      %531 = vmatpush1.bf16.msra.mxu0 0
      %532 = vmatprep.subr.bf16.mxu0 0
      %533 = vmatpush1.bf16.msra.mxu0 0
      %534 = vmatprep.subr.bf16.mxu0 0
      %535 = vmatpush1.bf16.msra.mxu0 %v522
      %536 = vmatprep.subr.bf16.mxu0 0
      %537 = vmatpush1.bf16.msra.mxu0 %v419
      %538 = vmatprep.subr.bf16.mxu0 0
      %539 = vmatpush1.bf16.msra.mxu0 %v418
      %540 = vmatprep.subr.bf16.mxu0 0
      %541 = vmatpush2.bf16.msra.mxu0 0
      %542 = vmatprep.subr.bf16.mxu0 0
      %543 = vmatpush2.bf16.msra.mxu0 0
      %544 = vmatprep.subr.bf16.mxu0 0
      %545 = vmatpush2.bf16.msra.mxu0 0
      %546 = vmatprep.subr.bf16.mxu0 0
      %547 = vmatpush2.bf16.msra.mxu0 0
      %548 = vmatprep.subr.bf16.mxu0 0
      %549 = vmatpush2.bf16.msra.mxu0 0
      %550 = vmatprep.subr.bf16.mxu0 0
      %551 = vmatpush2.bf16.msra.mxu0 0
      %552 = vmatprep.subr.bf16.mxu0 0
      %553 = vmatpush2.bf16.msra.mxu0 0
      %554 = vmatprep.subr.bf16.mxu0 0
      %555 = vmatpush2.bf16.msra.mxu0 0
      %556 = vmatprep.mubr.bf16.mxu0 0
      %557 = vmatmul.mubr.bf16.gmra.mxu0 %v425
      %v558 = vpop.f32.mrf.mxu0
      %v559 = vadd.f32 %v246, %v558
      %v560 = vpop.f32.mrf.mxu0
      %v561 = vpop.f32.mrf.mxu0
      %v562 = vadd.f32 %v246, %v561
      %v563 = vpop.f32.mrf.mxu0
      %564 = vmatprep.mubr.bf16.mxu0 0
      %565 = vmatmul.mubr.bf16.gmra.mxu0 %v428
      %v566 = vpop.f32.mrf.mxu0
      %v567 = vadd.f32 %v246, %v566
      %v568 = vpop.f32.mrf.mxu0
      %v569 = vpop.f32.mrf.mxu0
      %v570 = vadd.f32 %v246, %v569
      %v571 = vpop.f32.mrf.mxu0
      %572 = vmatprep.mubr.bf16.mxu0 0
      %573 = vmatmul.mubr.bf16.gmra.mxu0 %v431
      %v574 = vpop.f32.mrf.mxu0
      %v575 = vadd.f32 %v246, %v574
      %v576 = vpop.f32.mrf.mxu0
      %v577 = vpop.f32.mrf.mxu0
      %v578 = vadd.f32 %v246, %v577
      %v579 = vpop.f32.mrf.mxu0
      %580 = vmatprep.mubr.bf16.mxu0 0
      %581 = vmatmul.mubr.bf16.gmra.mxu0 %v434
      %v582 = vpop.f32.mrf.mxu0
      %v583 = vadd.f32 %v246, %v582
      %v584 = vpop.f32.mrf.mxu0
      %v585 = vpop.f32.mrf.mxu0
      %v586 = vadd.f32 %v246, %v585
      %v587 = vpop.f32.mrf.mxu0
      %588 = vmatprep.mubr.bf16.mxu0 0
      %589 = vmatmul.mubr.bf16.gmra.mxu0 %v437
      %v590 = vpop.f32.mrf.mxu0
      %v591 = vadd.f32 %v246, %v590
      %v592 = vpop.f32.mrf.mxu0
      %v593 = vpop.f32.mrf.mxu0
      %v594 = vadd.f32 %v246, %v593
      %v595 = vpop.f32.mrf.mxu0
      %596 = vmatprep.mubr.bf16.mxu0 0
      %597 = vmatmul.mubr.bf16.gmra.mxu0 %v440
      %v598 = vpop.f32.mrf.mxu0
      %v599 = vadd.f32 %v246, %v598
      %v600 = vpop.f32.mrf.mxu0
      %v601 = vpop.f32.mrf.mxu0
      %v602 = vadd.f32 %v246, %v601
      %v603 = vpop.f32.mrf.mxu0
      %604 = vmatprep.mubr.bf16.mxu0 0
      %605 = vmatmul.mubr.bf16.gmra.mxu0 %v443
      %v606 = vpop.f32.mrf.mxu0
      %v607 = vadd.f32 %v246, %v606
      %v608 = vpop.f32.mrf.mxu0
      %v609 = vpop.f32.mrf.mxu0
      %v610 = vadd.f32 %v246, %v609
      %v611 = vpop.f32.mrf.mxu0
      %612 = vmatprep.mubr.bf16.mxu0 0
      %613 = vmatmul.mubr.bf16.gmra.mxu0 %v446
      %v614 = vpop.f32.mrf.mxu0
      %v615 = vadd.f32 %v246, %v614
      %v616 = vpop.f32.mrf.mxu0
      %v617 = vpop.f32.mrf.mxu0
      %v618 = vadd.f32 %v246, %v617
      %v619 = vpop.f32.mrf.mxu0
      %620 = vmatprep.mubr.bf16.mxu0 0
      %621 = vmatmul.mubr.bf16.gmra.mxu0 %v449
      %v622 = vpop.f32.mrf.mxu0
      %v623 = vadd.f32 %v246, %v622
      %v624 = vpop.f32.mrf.mxu0
      %v625 = vpop.f32.mrf.mxu0
      %v626 = vadd.f32 %v246, %v625
      %v627 = vpop.f32.mrf.mxu0
      %628 = vmatprep.mubr.bf16.mxu0 0
      %629 = vmatmul.mubr.bf16.gmra.mxu0 %v452
      %v630 = vpop.f32.mrf.mxu0
      %v631 = vadd.f32 %v246, %v630
      %v632 = vpop.f32.mrf.mxu0
      %v633 = vpop.f32.mrf.mxu0
      %v634 = vadd.f32 %v246, %v633
      %v635 = vpop.f32.mrf.mxu0
      %636 = vmatprep.mubr.bf16.mxu0 0
      %637 = vmatmul.mubr.bf16.gmra.mxu0 %v455
      %v638 = vpop.f32.mrf.mxu0
      %v639 = vadd.f32 %v246, %v638
      %v640 = vpop.f32.mrf.mxu0
      %v641 = vpop.f32.mrf.mxu0
      %v642 = vadd.f32 %v246, %v641
      %v643 = vpop.f32.mrf.mxu0
      %644 = vmatprep.mubr.bf16.mxu0 0
      %645 = vmatmul.mubr.bf16.gmra.mxu0 %v458
      %v646 = vpop.f32.mrf.mxu0
      %v647 = vadd.f32 %v246, %v646
      %v648 = vpop.f32.mrf.mxu0
      %v649 = vpop.f32.mrf.mxu0
      %v650 = vadd.f32 %v246, %v649
      %v651 = vpop.f32.mrf.mxu0
      %652 = vmatprep.mubr.bf16.mxu0 0
      %653 = vmatmul.mubr.bf16.gmra.mxu0 %v461
      %v654 = vpop.f32.mrf.mxu0
      %v655 = vadd.f32 %v246, %v654
      %v656 = vpop.f32.mrf.mxu0
      %v657 = vpop.f32.mrf.mxu0
      %v658 = vadd.f32 %v246, %v657
      %v659 = vpop.f32.mrf.mxu0
      %660 = vmatprep.mubr.bf16.mxu0 0
      %661 = vmatmul.mubr.bf16.gmra.mxu0 %v464
      %v662 = vpop.f32.mrf.mxu0
      %v663 = vadd.f32 %v246, %v662
      %v664 = vpop.f32.mrf.mxu0
      %v665 = vpop.f32.mrf.mxu0
      %v666 = vadd.f32 %v246, %v665
      %v667 = vpop.f32.mrf.mxu0
      %668 = vmatprep.mubr.bf16.mxu0 0
      %669 = vmatmul.mubr.bf16.gmra.mxu0 %v467
      %v670 = vpop.f32.mrf.mxu0
      %v671 = vadd.f32 %v246, %v670
      %v672 = vpop.f32.mrf.mxu0
      %v673 = vpop.f32.mrf.mxu0
      %v674 = vadd.f32 %v246, %v673
      %v675 = vpop.f32.mrf.mxu0
      %676 = vmatprep.mubr.bf16.mxu0 0
      %677 = vmatmul.mubr.bf16.gmra.mxu0 %v470
      %v678 = vpop.f32.mrf.mxu0
      %v679 = vadd.f32 %v246, %v678
      %v680 = vpop.f32.mrf.mxu0
      %v681 = vpop.f32.mrf.mxu0
      %v682 = vadd.f32 %v246, %v681
      %v683 = vpop.f32.mrf.mxu0
      %684 = vmatprep.mubr.bf16.mxu0 0
      %685 = vmatmul.mubr.bf16.gmra.mxu0 %v473
      %v686 = vpop.f32.mrf.mxu0
      %v687 = vadd.f32 %v246, %v686
      %v688 = vpop.f32.mrf.mxu0
      %v689 = vpop.f32.mrf.mxu0
      %v690 = vadd.f32 %v246, %v689
      %v691 = vpop.f32.mrf.mxu0
      %692 = vmatprep.mubr.bf16.mxu0 0
      %693 = vmatmul.mubr.bf16.gmra.mxu0 %v476
      %v694 = vpop.f32.mrf.mxu0
      %v695 = vadd.f32 %v246, %v694
      %v696 = vpop.f32.mrf.mxu0
      %v697 = vpop.f32.mrf.mxu0
      %v698 = vadd.f32 %v246, %v697
      %v699 = vpop.f32.mrf.mxu0
      %700 = vmatprep.mubr.bf16.mxu0 0
      %701 = vmatmul.mubr.bf16.gmra.mxu0 %v479
      %v702 = vpop.f32.mrf.mxu0
      %v703 = vadd.f32 %v246, %v702
      %v704 = vpop.f32.mrf.mxu0
      %v705 = vpop.f32.mrf.mxu0
      %v706 = vadd.f32 %v246, %v705
      %v707 = vpop.f32.mrf.mxu0
      %708 = vmatprep.mubr.bf16.mxu0 0
      %709 = vmatmul.mubr.bf16.gmra.mxu0 %v482
      %v710 = vpop.f32.mrf.mxu0
      %v711 = vadd.f32 %v246, %v710
      %v712 = vpop.f32.mrf.mxu0
      %v713 = vpop.f32.mrf.mxu0
      %v714 = vadd.f32 %v246, %v713
      %v715 = vpop.f32.mrf.mxu0
      %716 = vmatprep.mubr.bf16.mxu0 0
      %717 = vmatmul.mubr.bf16.gmra.mxu0 %v485
      %v718 = vpop.f32.mrf.mxu0
      %v719 = vadd.f32 %v246, %v718
      %v720 = vpop.f32.mrf.mxu0
      %v721 = vpop.f32.mrf.mxu0
      %v722 = vadd.f32 %v246, %v721
      %v723 = vpop.f32.mrf.mxu0
      %724 = vmatprep.mubr.bf16.mxu0 0
      %725 = vmatmul.mubr.bf16.gmra.mxu0 %v488
      %v726 = vpop.f32.mrf.mxu0
      %v727 = vadd.f32 %v246, %v726
      %v728 = vpop.f32.mrf.mxu0
      %v729 = vpop.f32.mrf.mxu0
      %v730 = vadd.f32 %v246, %v729
      %v731 = vpop.f32.mrf.mxu0
      %732 = vmatprep.mubr.bf16.mxu0 0
      %733 = vmatmul.mubr.bf16.gmra.mxu0 %v491
      %v734 = vpop.f32.mrf.mxu0
      %v735 = vadd.f32 %v246, %v734
      %v736 = vpop.f32.mrf.mxu0
      %v737 = vpop.f32.mrf.mxu0
      %v738 = vadd.f32 %v246, %v737
      %v739 = vpop.f32.mrf.mxu0
      %740 = vmatprep.mubr.bf16.mxu0 0
      %741 = vmatmul.mubr.bf16.gmra.mxu0 %v494
      %v742 = vpop.f32.mrf.mxu0
      %v743 = vadd.f32 %v246, %v742
      %v744 = vpop.f32.mrf.mxu0
      %v745 = vpop.f32.mrf.mxu0
      %v746 = vadd.f32 %v246, %v745
      %v747 = vpop.f32.mrf.mxu0
      %748 = vmatprep.mubr.bf16.mxu0 0
      %749 = vmatmul.mubr.bf16.gmra.mxu0 %v497
      %v750 = vpop.f32.mrf.mxu0
      %v751 = vadd.f32 %v246, %v750
      %v752 = vpop.f32.mrf.mxu0
      %v753 = vpop.f32.mrf.mxu0
      %v754 = vadd.f32 %v246, %v753
      %v755 = vpop.f32.mrf.mxu0
      %756 = vmatprep.mubr.bf16.mxu0 0
      %757 = vmatmul.mubr.bf16.gmra.mxu0 %v500
      %v758 = vpop.f32.mrf.mxu0
      %v759 = vadd.f32 %v246, %v758
      %v760 = vpop.f32.mrf.mxu0
      %v761 = vpop.f32.mrf.mxu0
      %v762 = vadd.f32 %v246, %v761
      %v763 = vpop.f32.mrf.mxu0
      %764 = vmatprep.mubr.bf16.mxu0 0
      %765 = vmatmul.mubr.bf16.gmra.mxu0 %v503
      %v766 = vpop.f32.mrf.mxu0
      %v767 = vadd.f32 %v246, %v766
      %v768 = vpop.f32.mrf.mxu0
      %v769 = vpop.f32.mrf.mxu0
      %v770 = vadd.f32 %v246, %v769
      %v771 = vpop.f32.mrf.mxu0
      %772 = vmatprep.mubr.bf16.mxu0 0
      %773 = vmatmul.mubr.bf16.gmra.mxu0 %v506
      %v774 = vpop.f32.mrf.mxu0
      %v775 = vadd.f32 %v246, %v774
      %v776 = vpop.f32.mrf.mxu0
      %v777 = vpop.f32.mrf.mxu0
      %v778 = vadd.f32 %v246, %v777
      %v779 = vpop.f32.mrf.mxu0
      %780 = vmatprep.mubr.bf16.mxu0 0
      %781 = vmatmul.mubr.bf16.gmra.mxu0 %v509
      %v782 = vpop.f32.mrf.mxu0
      %v783 = vadd.f32 %v246, %v782
      %v784 = vpop.f32.mrf.mxu0
      %v785 = vpop.f32.mrf.mxu0
      %v786 = vadd.f32 %v246, %v785
      %v787 = vpop.f32.mrf.mxu0
      %788 = vmatprep.mubr.bf16.mxu0 0
      %789 = vmatmul.mubr.bf16.gmra.mxu0 %v512
      %v790 = vpop.f32.mrf.mxu0
      %v791 = vadd.f32 %v246, %v790
      %v792 = vpop.f32.mrf.mxu0
      %v793 = vpop.f32.mrf.mxu0
      %v794 = vadd.f32 %v246, %v793
      %v795 = vpop.f32.mrf.mxu0
      %796 = vmatprep.mubr.bf16.mxu0 0
      %797 = vmatmul.mubr.bf16.gmra.mxu0 %v515
      %v798 = vpop.f32.mrf.mxu0
      %v799 = vadd.f32 %v246, %v798
      %v800 = vpop.f32.mrf.mxu0
      %v801 = vpop.f32.mrf.mxu0
      %v802 = vadd.f32 %v246, %v801
      %v803 = vpop.f32.mrf.mxu0
      %804 = vmatprep.mubr.bf16.mxu0 0
      %805 = vmatmul.mubr.bf16.gmra.mxu0 %v518
      %v806 = vpop.f32.mrf.mxu0
      %v807 = vadd.f32 %v246, %v806
      %v808 = vpop.f32.mrf.mxu0
      %v809 = vpop.f32.mrf.mxu0
      %v810 = vadd.f32 %v246, %v809
      %v811 = vpop.f32.mrf.mxu0
      %812 = vdwg.mxu0
      %813 = vst [vmem:[%s170] sm:$0xff] %v559
      %814 = vst [vmem:[%s170 + $0x8] sm:$0xff] %v562
      %815 = vst [vmem:[%s170 + $0x10] sm:$0xff] %v567
      %816 = vst [vmem:[%s170 + $0x18] sm:$0xff] %v570
      %817 = vst [vmem:[%s170 + $0x20] sm:$0xff] %v575
      %818 = vst [vmem:[%s170 + $0x28] sm:$0xff] %v578
      %819 = vst [vmem:[%s170 + $0x30] sm:$0xff] %v583
      %820 = vst [vmem:[%s170 + $0x38] sm:$0xff] %v586
      %821 = vst [vmem:[%s170 + $0x40] sm:$0xff] %v591
      %822 = vst [vmem:[%s170 + $0x48] sm:$0xff] %v594
      %823 = vst [vmem:[%s170 + $0x50] sm:$0xff] %v599
      %824 = vst [vmem:[%s170 + $0x58] sm:$0xff] %v602
      %825 = vst [vmem:[%s170 + $0x60] sm:$0xff] %v607
      %826 = vst [vmem:[%s170 + $0x68] sm:$0xff] %v610
      %827 = vst [vmem:[%s170 + $0x70] sm:$0xff] %v615
      %828 = vst [vmem:[%s170 + $0x78] sm:$0xff] %v618
      %829 = vst [vmem:[%s170 + $0x80] sm:$0xff] %v623
      %830 = vst [vmem:[%s170 + $0x88] sm:$0xff] %v626
      %831 = vst [vmem:[%s170 + $0x90] sm:$0xff] %v631
      %832 = vst [vmem:[%s170 + $0x98] sm:$0xff] %v634
      %833 = vst [vmem:[%s170 + $0xa0] sm:$0xff] %v639
      %834 = vst [vmem:[%s170 + $0xa8] sm:$0xff] %v642
      %835 = vst [vmem:[%s170 + $0xb0] sm:$0xff] %v647
      %836 = vst [vmem:[%s170 + $0xb8] sm:$0xff] %v650
      %837 = vst [vmem:[%s170 + $0xc0] sm:$0xff] %v655
      %838 = vst [vmem:[%s170 + $0xc8] sm:$0xff] %v658
      %839 = vst [vmem:[%s170 + $0xd0] sm:$0xff] %v663
      %840 = vst [vmem:[%s170 + $0xd8] sm:$0xff] %v666
      %841 = vst [vmem:[%s170 + $0xe0] sm:$0xff] %v671
      %842 = vst [vmem:[%s170 + $0xe8] sm:$0xff] %v674
      %843 = vst [vmem:[%s170 + $0xf0] sm:$0xff] %v679
      %844 = vst [vmem:[%s170 + $0xf8] sm:$0xff] %v682
      %845 = vst [vmem:[%s170 + $0x100] sm:$0xff] %v687
      %846 = vst [vmem:[%s170 + $0x108] sm:$0xff] %v690
      %847 = vst [vmem:[%s170 + $0x110] sm:$0xff] %v695
      %848 = vst [vmem:[%s170 + $0x118] sm:$0xff] %v698
      %849 = vst [vmem:[%s170 + $0x120] sm:$0xff] %v703
      %850 = vst [vmem:[%s170 + $0x128] sm:$0xff] %v706
      %851 = vst [vmem:[%s170 + $0x130] sm:$0xff] %v711
      %852 = vst [vmem:[%s170 + $0x138] sm:$0xff] %v714
      %853 = vst [vmem:[%s170 + $0x140] sm:$0xff] %v719
      %854 = vst [vmem:[%s170 + $0x148] sm:$0xff] %v722
      %855 = vst [vmem:[%s170 + $0x150] sm:$0xff] %v727
      %856 = vst [vmem:[%s170 + $0x158] sm:$0xff] %v730
      %857 = vst [vmem:[%s170 + $0x160] sm:$0xff] %v735
      %858 = vst [vmem:[%s170 + $0x168] sm:$0xff] %v738
      %859 = vst [vmem:[%s170 + $0x170] sm:$0xff] %v743
      %860 = vst [vmem:[%s170 + $0x178] sm:$0xff] %v746
      %861 = vst [vmem:[%s170 + $0x180] sm:$0xff] %v751
      %862 = vst [vmem:[%s170 + $0x188] sm:$0xff] %v754
      %863 = vst [vmem:[%s170 + $0x190] sm:$0xff] %v759
      %864 = vst [vmem:[%s170 + $0x198] sm:$0xff] %v762
      %865 = vst [vmem:[%s170 + $0x1a0] sm:$0xff] %v767
      %866 = vst [vmem:[%s170 + $0x1a8] sm:$0xff] %v770
      %867 = vst [vmem:[%s170 + $0x1b0] sm:$0xff] %v775
      %868 = vst [vmem:[%s170 + $0x1b8] sm:$0xff] %v778
      %869 = vst [vmem:[%s170 + $0x1c0] sm:$0xff] %v783
      %870 = vst [vmem:[%s170 + $0x1c8] sm:$0xff] %v786
      %871 = vst [vmem:[%s170 + $0x1d0] sm:$0xff] %v791
      %872 = vst [vmem:[%s170 + $0x1d8] sm:$0xff] %v794
      %873 = vst [vmem:[%s170 + $0x1e0] sm:$0xff] %v799
      %874 = vst [vmem:[%s170 + $0x1e8] sm:$0xff] %v802
      %875 = vst [vmem:[%s170 + $0x1f0] sm:$0xff] %v807
      %876 = vst [vmem:[%s170 + $0x1f8] sm:$0xff] %v810
      %p877 = scmp.lt.s32.totalorder %s14, 7
      %s878 = scalar_select %p877, %s14, 7
      %s879 = smul.addr %s878, 64
      %s880 = smul.addr %s879, 8
      %s881 = scalar_lea.vmem %s3, %s880
      // Predicated region
      $region33: #{conv_lstm_forward.2} parent=31 // pred_check
        %p882 = pneg %p100
      $region34: #{conv_lstm_forward.2} parent=31 // pred_check_branch
        %884 = sbr.rel (%p882) target = $region36
      $region35: #{conv_lstm_forward.2} parent=31 // pred_region
        _
      $region36: #{conv_lstm_forward.2} parent=31 // pred_fallthru
        _
    $region32: #{conv_lstm_forward.2} parent=5 // pred_fallthru
      _
    %p885 = scmp.le.s32.totalorder 2, %s9
    // Predicated region
    $region37: #{conv_lstm_forward.2} parent=5 // pred_check
      %p886 = pneg %p885
    $region38: #{conv_lstm_forward.2} parent=5 // pred_check_branch
      %888 = sbr.rel (%p886) target = $region40
    $region39: #{conv_lstm_forward.2} parent=5 // pred_region
      %s889 = ssub.s32 %s9, 2
      // Predicated region
      $region41: #{conv_lstm_forward.2} parent=39 // pred_check
        %p890 = pneg %p106
      $region42: #{conv_lstm_forward.2} parent=39 // pred_check_branch
        %892 = sbr.rel (%p890) target = $region44
      $region43: #{conv_lstm_forward.2} parent=39 // pred_region
        %p893 = scmp.lt.s32.totalorder %s15, 7
        %s894 = scalar_select %p893, %s15, 7
        %s895 = smul.addr %s894, 64
        %s896 = smul.addr %s895, 8
        %s897 = scalar_lea.vmem %s3, %s896
      $region44: #{conv_lstm_forward.2} parent=39 // pred_fallthru
        _
    $region40: #{conv_lstm_forward.2} parent=5 // pred_fallthru
      _
  $region6: #{conv_lstm_forward.2} parent=0 // loop_footer
    %s13 = sadd.s32 1, %s9
  $region7: #{conv_lstm_forward.2} parent=0 // loop_footer_branch
    %8 = sbr.rel target = $region3
  $region8: #{conv_lstm_forward.2} parent=0 // loop_exit
    _

// kernel: conv_lstm_forward.3
$region0: #{conv_lstm_forward.3}
  #allocation0 [shape = 'u32[]', space=smem, size = 0x4, offset = 0x4, fixed_abs, tag = 'smem constant byte address 0x4 - core index']
  #allocation1 [shape = 'u32[144,128]{1,0:T(1,128)}', space=vmem, size = 0x12000, scoped, tag = 'internal scratch']
  #allocation2 [shape = 'f32[18,18,32]{2,1,0:T(8,128)}', space=vmem, size = 0x36000, scoped, tag = 'scratch operand']
  #allocation3 [shape = 'f32[256,32]{1,0:T(8,128)}', space=vmem, size = 0x20000, scoped, tag = 'scratch operand']
  #allocation4 [shape = 'f32[128,288]{1,0:T(8,128)}', space=vmem, size = 0x30000, scoped, tag = 'scratch operand']
  %s0 = inlined_call_operand.vmem [shape: f32[8,2,256,128], index: 0, kind: input, shape index: {}]
  %s1 = inlined_call_operand.vmem [shape: bf16[288,128], index: 1, kind: input, shape index: {}]
  %s2 = inlined_call_operand.vmem [shape: f32[256,32], index: 2, kind: input, shape index: {}]
  %s3 = inlined_call_operand.vmem [shape: f32[256,32], index: 3, kind: input, shape index: {}]
  %s4 = inlined_call_operand.vmem [shape: f32[256,32], index: 4, kind: input, shape index: {}]
  %s5 = inlined_call_operand.vmem [shape: f32[8,2,256,32], index: 5, kind: output, shape index: {}]
  %s6 = sld [smem:[#allocation0]]
  $region57: #{conv_lstm_forward.3} parent=0
    _
  %s8 = ssub.s32 1, %s6
  %s9 = scalar_select 0, %s8, %s6
  loop: start=0, step=1, limit=18
  $region2: #{conv_lstm_forward.3} parent=0 // loop_pre_header
    _
  $region3: #{conv_lstm_forward.3} parent=0 // loop_header
    %s11 = sphi 0, %s15
    %p12 = scmp.ge.s32.totalorder %s11, 18
    %s18 = sphi 0, %s30
    %s19 = sphi 0, %s26
    %s20 = sphi 0, %s18
    %s21 = sphi 0, %s19
    %s22 = sphi 0, %s20
    %s23 = sphi 0, %s21
    %s35 = sphi 0, %s37
    %s38 = sphi 0, %s35
    %s39 = sphi 0, %s38
    %s55 = sphi 0, %s39
    %s59 = sphi 0, %s59
    %s61 = sphi 0, %s59
    %s62 = sphi 0, %s61
    %s76 = sphi 0, %s62
    %s80 = sphi 0, %s80
    %s82 = sphi 0, %s80
    %s83 = sphi 0, %s82
    %s97 = sphi 0, %s83
    %s101 = sphi 0, %s101
    %s103 = sphi 0, %s101
    %s104 = sphi 0, %s103
    %s118 = sphi 0, %s104
    %s122 = sphi 0, %s122
    %s124 = sphi 0, %s122
    %s125 = sphi 0, %s124
    %s139 = sphi 0, %s125
    %s147 = sphi 0, %s149
    %s150 = sphi 0, %s147
    %s151 = sphi 0, %s150
    %s167 = sphi 0, %s151
  $region4: #{conv_lstm_forward.3} parent=0 // loop_header_branch
    %14 = sbr.rel (%p12) target = $region8
  $region5: #{conv_lstm_forward.3} parent=0 // loop_body
    %s16 = ssub.s32 %s11, 1
    %s17 = ssub.s32 %s11, 2
    %s24 = sadd.s32 1, %s19
    %p25 = scmp.ge.s32.totalorder %s24, 8
    %s26 = scalar_select %p25, 0, %s24
    %s27 = sadd.s32 1, %s18
    %s28 = scalar_select %p25, %s27, %s18
    %p29 = scmp.ge.s32.totalorder %s28, 2
    %s30 = scalar_select %p29, 0, %s28
    %s31 = ssub.s32 %s19, %s26
    %s32 = ssub.s32 %s18, %s30
    %s33 = sor.u32 %s31, %s32
    %p34 = scmp.eq.s32.totalorder %s33, 0
    %s36 = sadd.s32 %s35, 1
    %s37 = scalar_select %p34, %s35, %s36
    %p40 = pneg %p34
    %p41 = scmp.eq.s32.totalorder %s11, 15
    %p42 = por %p40, %p41
    %p43 = scmp.ne.s32.totalorder %s35, %s38
    %p44 = scmp.eq.s32.totalorder %s11, 0
    %p45 = por %p43, %p44
    %p46 = scmp.ne.s32.totalorder %s35, %s38
    %p47 = scmp.eq.s32.totalorder %s16, 15
    %p48 = por %p46, %p47
    %p49 = scmp.ne.s32.totalorder %s38, %s39
    %p50 = scmp.eq.s32.totalorder %s16, 0
    %p51 = por %p49, %p50
    %p52 = scmp.ne.s32.totalorder %s38, %s39
    %p53 = scmp.eq.s32.totalorder %s17, 15
    %p54 = por %p52, %p53
    %p56 = scmp.ne.s32.totalorder %s39, %s55
    %p57 = scmp.eq.s32.totalorder %s17, 0
    %p58 = por %p56, %p57
    %s60 = sadd.s32 %s59, 1
    %p63 = scmp.eq.s32.totalorder %s11, 15
    %p64 = scmp.ne.s32.totalorder %s59, %s61
    %p65 = scmp.eq.s32.totalorder %s11, 0
    %p66 = por %p64, %p65
    %p67 = scmp.ne.s32.totalorder %s59, %s61
    %p68 = scmp.eq.s32.totalorder %s16, 15
    %p69 = por %p67, %p68
    %p70 = scmp.ne.s32.totalorder %s61, %s62
    %p71 = scmp.eq.s32.totalorder %s16, 0
    %p72 = por %p70, %p71
    %p73 = scmp.ne.s32.totalorder %s61, %s62
    %p74 = scmp.eq.s32.totalorder %s17, 15
    %p75 = por %p73, %p74
    %p77 = scmp.ne.s32.totalorder %s62, %s76
    %p78 = scmp.eq.s32.totalorder %s17, 0
    %p79 = por %p77, %p78
    %s81 = sadd.s32 %s80, 1
    %p84 = scmp.eq.s32.totalorder %s11, 15
    %p85 = scmp.ne.s32.totalorder %s80, %s82
    %p86 = scmp.eq.s32.totalorder %s11, 0
    %p87 = por %p85, %p86
    %p88 = scmp.ne.s32.totalorder %s80, %s82
    %p89 = scmp.eq.s32.totalorder %s16, 15
    %p90 = por %p88, %p89
    %p91 = scmp.ne.s32.totalorder %s82, %s83
    %p92 = scmp.eq.s32.totalorder %s16, 0
    %p93 = por %p91, %p92
    %p94 = scmp.ne.s32.totalorder %s82, %s83
    %p95 = scmp.eq.s32.totalorder %s17, 15
    %p96 = por %p94, %p95
    %p98 = scmp.ne.s32.totalorder %s83, %s97
    %p99 = scmp.eq.s32.totalorder %s17, 0
    %p100 = por %p98, %p99
    %s102 = sadd.s32 %s101, 1
    %p105 = scmp.eq.s32.totalorder %s11, 15
    %p106 = scmp.ne.s32.totalorder %s101, %s103
    %p107 = scmp.eq.s32.totalorder %s11, 0
    %p108 = por %p106, %p107
    %p109 = scmp.ne.s32.totalorder %s101, %s103
    %p110 = scmp.eq.s32.totalorder %s16, 15
    %p111 = por %p109, %p110
    %p112 = scmp.ne.s32.totalorder %s103, %s104
    %p113 = scmp.eq.s32.totalorder %s16, 0
    %p114 = por %p112, %p113
    %p115 = scmp.ne.s32.totalorder %s103, %s104
    %p116 = scmp.eq.s32.totalorder %s17, 15
    %p117 = por %p115, %p116
    %p119 = scmp.ne.s32.totalorder %s104, %s118
    %p120 = scmp.eq.s32.totalorder %s17, 0
    %p121 = por %p119, %p120
    %s123 = sadd.s32 %s122, 1
    %p126 = scmp.eq.s32.totalorder %s11, 15
    %p127 = scmp.ne.s32.totalorder %s122, %s124
    %p128 = scmp.eq.s32.totalorder %s11, 0
    %p129 = por %p127, %p128
    %p130 = scmp.ne.s32.totalorder %s122, %s124
    %p131 = scmp.eq.s32.totalorder %s16, 15
    %p132 = por %p130, %p131
    %p133 = scmp.ne.s32.totalorder %s124, %s125
    %p134 = scmp.eq.s32.totalorder %s16, 0
    %p135 = por %p133, %p134
    %p136 = scmp.ne.s32.totalorder %s124, %s125
    %p137 = scmp.eq.s32.totalorder %s17, 15
    %p138 = por %p136, %p137
    %p140 = scmp.ne.s32.totalorder %s125, %s139
    %p141 = scmp.eq.s32.totalorder %s17, 0
    %p142 = por %p140, %p141
    %s143 = ssub.s32 %s19, %s26
    %s144 = ssub.s32 %s18, %s30
    %s145 = sor.u32 %s143, %s144
    %p146 = scmp.eq.s32.totalorder %s145, 0
    %s148 = sadd.s32 %s147, 1
    %s149 = scalar_select %p146, %s147, %s148
    %p152 = pneg %p146
    %p153 = scmp.eq.s32.totalorder %s11, 15
    %p154 = por %p152, %p153
    %p155 = scmp.ne.s32.totalorder %s147, %s150
    %p156 = scmp.eq.s32.totalorder %s11, 0
    %p157 = por %p155, %p156
    %p158 = scmp.ne.s32.totalorder %s147, %s150
    %p159 = scmp.eq.s32.totalorder %s16, 15
    %p160 = por %p158, %p159
    %p161 = scmp.ne.s32.totalorder %s150, %s151
    %p162 = scmp.eq.s32.totalorder %s16, 0
    %p163 = por %p161, %p162
    %p164 = scmp.ne.s32.totalorder %s150, %s151
    %p165 = scmp.eq.s32.totalorder %s17, 15
    %p166 = por %p164, %p165
    %p168 = scmp.ne.s32.totalorder %s151, %s167
    %p169 = scmp.eq.s32.totalorder %s17, 0
    %p170 = por %p168, %p169
    %p171 = scmp.le.s32.totalorder 1, %s11
    %p172 = scmp.lt.s32.totalorder %s11, 17
    %p173 = pnand %p171, %p172
    %p174 = pneg %p173
    // Predicated region
    $region9: #{conv_lstm_forward.3} parent=5 // pred_check
      _
    $region10: #{conv_lstm_forward.3} parent=5 // pred_check_branch
      %176 = sbr.rel (%p173) target = $region12
    $region11: #{conv_lstm_forward.3} parent=5 // pred_region
      %s177 = ssub.s32 %s11, 1
      // Predicated region
      $region13: #{conv_lstm_forward.3} parent=11 // pred_check
        %p178 = pneg %p72
      $region14: #{conv_lstm_forward.3} parent=11 // pred_check_branch
        %180 = sbr.rel (%p178) target = $region16
      $region15: #{conv_lstm_forward.3} parent=11 // pred_region
        _
      $region16: #{conv_lstm_forward.3} parent=11 // pred_fallthru
        _
      // Predicated region
      $region17: #{conv_lstm_forward.3} parent=11 // pred_check
        %p181 = pneg %p93
      $region18: #{conv_lstm_forward.3} parent=11 // pred_check_branch
        %183 = sbr.rel (%p181) target = $region20
      $region19: #{conv_lstm_forward.3} parent=11 // pred_region
        _
      $region20: #{conv_lstm_forward.3} parent=11 // pred_fallthru
        _
      // Predicated region
      $region21: #{conv_lstm_forward.3} parent=11 // pred_check
        %p184 = pneg %p114
      $region22: #{conv_lstm_forward.3} parent=11 // pred_check_branch
        %186 = sbr.rel (%p184) target = $region24
      $region23: #{conv_lstm_forward.3} parent=11 // pred_region
        _
      $region24: #{conv_lstm_forward.3} parent=11 // pred_fallthru
        _
      // Predicated region
      $region25: #{conv_lstm_forward.3} parent=11 // pred_check
        %p187 = pneg %p135
      $region26: #{conv_lstm_forward.3} parent=11 // pred_check_branch
        %189 = sbr.rel (%p187) target = $region28
      $region27: #{conv_lstm_forward.3} parent=11 // pred_region
        _
      $region28: #{conv_lstm_forward.3} parent=11 // pred_fallthru
        _
    $region12: #{conv_lstm_forward.3} parent=5 // pred_fallthru
      _
    %p190 = scmp.lt.s32.totalorder %s11, 16
    // Predicated region
    $region29: #{conv_lstm_forward.3} parent=5 // pred_check
      %p191 = pneg %p190
    $region30: #{conv_lstm_forward.3} parent=5 // pred_check_branch
      %193 = sbr.rel (%p191) target = $region32
    $region31: #{conv_lstm_forward.3} parent=5 // pred_region
      // Predicated region
      $region33: #{conv_lstm_forward.3} parent=31 // pred_check
        %p194 = pneg %p45
      $region34: #{conv_lstm_forward.3} parent=31 // pred_check_branch
        %196 = sbr.rel (%p194) target = $region36
      $region35: #{conv_lstm_forward.3} parent=31 // pred_region
        %p197 = scmp.lt.s32.totalorder %s19, 7
        %s198 = scalar_select %p197, %s19, 7
        %p199 = scmp.lt.s32.totalorder %s18, 1
        %s200 = scalar_select %p199, %s18, 1
        %s201 = smul.addr %s200, 32
        %s202 = smul.addr %s198, 64
        %s203 = sadd.s32 %s201, %s202
        %s204 = smul.addr %s203, 8
        %s205 = scalar_lea.vmem %s0, %s204
      $region36: #{conv_lstm_forward.3} parent=31 // pred_fallthru
        _
    $region32: #{conv_lstm_forward.3} parent=5 // pred_fallthru
      _
    %p206 = scmp.le.s32.totalorder 1, %s11
    %p207 = scmp.lt.s32.totalorder %s11, 17
    %p208 = pnand %p206, %p207
    %p209 = pneg %p208
    // Predicated region
    $region37: #{conv_lstm_forward.3} parent=5 // pred_check
      _
    $region38: #{conv_lstm_forward.3} parent=5 // pred_check_branch
      %211 = sbr.rel (%p208) target = $region40
    $region39: #{conv_lstm_forward.3} parent=5 // pred_region
      %s212 = ssub.s32 %s11, 1
      %p213 = scmp.lt.s32.totalorder %s21, 7
      %s214 = scalar_select %p213, %s21, 7
      %p215 = scmp.lt.s32.totalorder %s20, 1
      %s216 = scalar_select %p215, %s20, 1
      %s217 = smul.addr %s216, 32
      %s218 = smul.addr %s214, 64
      %s219 = sadd.s32 %s217, %s218
      %s220 = smul.addr %s219, 8
      %s221 = scalar_lea.vmem %s0, %s220
      %p222 = pneg %p51
      %p223 = pneg %p48
      %p224 = pneg %p72
      %p225 = pneg %p69
      %p226 = pneg %p93
      %p227 = pneg %p90
      %p228 = pneg %p114
      %p229 = pneg %p111
      %p230 = pneg %p135
      %p231 = pneg %p132
      %p232 = pneg %p163
      %p233 = pneg %p160
      %p234 = scmp.lt.s32.totalorder %s21, 7
      %s235 = scalar_select %p234, %s21, 7
      %p236 = scmp.lt.s32.totalorder %s20, 1
      %s237 = scalar_select %p236, %s20, 1
      %s238 = smul.addr %s237, 32
      %s239 = smul.addr %s235, 64
      %s240 = sadd.s32 %s238, %s239
      %s241 = smul.addr %s240, 8
      %s242 = scalar_lea.vmem %s5, %s241
      %p243 = scmp.lt.s32.totalorder %s21, 7
      %s244 = scalar_select %p243, %s21, 7
      %p245 = scmp.lt.s32.totalorder %s20, 1
      %s246 = scalar_select %p245, %s20, 1
      %s247 = smul.addr %s246, 32
      %s248 = smul.addr %s244, 64
      %s249 = sadd.s32 %s247, %s248
      %s250 = smul.addr %s249, 8
      %s251 = scalar_lea.vmem %s0, %s250
      %p252 = scmp.lt.s32.totalorder %s21, 7
      %s253 = scalar_select %p252, %s21, 7
      %p254 = scmp.lt.s32.totalorder %s20, 1
      %s255 = scalar_select %p254, %s20, 1
      %s256 = smul.addr %s255, 32
      %s257 = smul.addr %s253, 64
      %s258 = sadd.s32 %s256, %s257
      %s259 = smul.addr %s258, 8
      %s260 = scalar_lea.vmem %s5, %s259
      %p262 = scmp.eq.s32.totalorder %s21, 0
      // Predicated region
      $region41: #{conv_lstm_forward.3} parent=39 // pred_check
        %p263 = pneg %p262
      $region42: #{conv_lstm_forward.3} parent=39 // pred_check_branch
        %265 = sbr.rel (%p263) target = $region44
      $region43: #{conv_lstm_forward.3} parent=39 // pred_region
        %vm266 = vcmask 261120
        %267 = vst.msk [vmem:[#allocation2] sm:$0xff] %vm266, 0.0
        %268 = vst.msk [vmem:[#allocation2 + $0x8] sm:$0xff] %vm266, 0.0
        %vm269 = vcmask 254976
        %270 = vst.msk [vmem:[#allocation2 + $0x10] sm:$0x3] %vm269, 0.0
        %271 = vst.msk [vmem:[#allocation2 + $0x18] sm:$0xff] %vm266, 0.0
        %272 = vst.msk [vmem:[#allocation2 + $0x20] sm:$0xff] %vm266, 0.0
        %273 = vst.msk [vmem:[#allocation2 + $0x28] sm:$0x3] %vm269, 0.0
        %274 = vst.msk [vmem:[#allocation2 + $0x30] sm:$0xff] %vm266, 0.0
        %275 = vst.msk [vmem:[#allocation2 + $0x38] sm:$0xff] %vm266, 0.0
        %276 = vst.msk [vmem:[#allocation2 + $0x40] sm:$0x3] %vm269, 0.0
        %277 = vst.msk [vmem:[#allocation2 + $0x48] sm:$0xff] %vm266, 0.0
        %278 = vst.msk [vmem:[#allocation2 + $0x50] sm:$0xff] %vm266, 0.0
        %279 = vst.msk [vmem:[#allocation2 + $0x58] sm:$0x3] %vm269, 0.0
        %280 = vst.msk [vmem:[#allocation2 + $0x60] sm:$0xff] %vm266, 0.0
        %281 = vst.msk [vmem:[#allocation2 + $0x68] sm:$0xff] %vm266, 0.0
        %282 = vst.msk [vmem:[#allocation2 + $0x70] sm:$0x3] %vm269, 0.0
        %283 = vst.msk [vmem:[#allocation2 + $0x78] sm:$0xff] %vm266, 0.0
        %284 = vst.msk [vmem:[#allocation2 + $0x80] sm:$0xff] %vm266, 0.0
        %285 = vst.msk [vmem:[#allocation2 + $0x88] sm:$0x3] %vm269, 0.0
        %286 = vst.msk [vmem:[#allocation2 + $0x90] sm:$0xff] %vm266, 0.0
        %287 = vst.msk [vmem:[#allocation2 + $0x98] sm:$0xff] %vm266, 0.0
        %288 = vst.msk [vmem:[#allocation2 + $0xa0] sm:$0x3] %vm269, 0.0
        %289 = vst.msk [vmem:[#allocation2 + $0xa8] sm:$0xff] %vm266, 0.0
        %290 = vst.msk [vmem:[#allocation2 + $0xb0] sm:$0xff] %vm266, 0.0
        %291 = vst.msk [vmem:[#allocation2 + $0xb8] sm:$0x3] %vm269, 0.0
        %292 = vst.msk [vmem:[#allocation2 + $0xc0] sm:$0xff] %vm266, 0.0
        %293 = vst.msk [vmem:[#allocation2 + $0xc8] sm:$0xff] %vm266, 0.0
        %294 = vst.msk [vmem:[#allocation2 + $0xd0] sm:$0x3] %vm269, 0.0
        %295 = vst.msk [vmem:[#allocation2 + $0xd8] sm:$0xff] %vm266, 0.0
        %296 = vst.msk [vmem:[#allocation2 + $0xe0] sm:$0xff] %vm266, 0.0
        %297 = vst.msk [vmem:[#allocation2 + $0xe8] sm:$0x3] %vm269, 0.0
        %298 = vst.msk [vmem:[#allocation2 + $0xf0] sm:$0xff] %vm266, 0.0
        %299 = vst.msk [vmem:[#allocation2 + $0xf8] sm:$0xff] %vm266, 0.0
        %300 = vst.msk [vmem:[#allocation2 + $0x100] sm:$0x3] %vm269, 0.0
        %301 = vst.msk [vmem:[#allocation2 + $0x108] sm:$0xff] %vm266, 0.0
        %302 = vst.msk [vmem:[#allocation2 + $0x110] sm:$0xff] %vm266, 0.0
        %303 = vst.msk [vmem:[#allocation2 + $0x118] sm:$0x3] %vm269, 0.0
        %304 = vst.msk [vmem:[#allocation2 + $0x120] sm:$0xff] %vm266, 0.0
        %305 = vst.msk [vmem:[#allocation2 + $0x128] sm:$0xff] %vm266, 0.0
        %306 = vst.msk [vmem:[#allocation2 + $0x130] sm:$0x3] %vm269, 0.0
        %307 = vst.msk [vmem:[#allocation2 + $0x138] sm:$0xff] %vm266, 0.0
        %308 = vst.msk [vmem:[#allocation2 + $0x140] sm:$0xff] %vm266, 0.0
        %309 = vst.msk [vmem:[#allocation2 + $0x148] sm:$0x3] %vm269, 0.0
        %310 = vst.msk [vmem:[#allocation2 + $0x150] sm:$0xff] %vm266, 0.0
        %311 = vst.msk [vmem:[#allocation2 + $0x158] sm:$0xff] %vm266, 0.0
        %312 = vst.msk [vmem:[#allocation2 + $0x160] sm:$0x3] %vm269, 0.0
        %313 = vst.msk [vmem:[#allocation2 + $0x168] sm:$0xff] %vm266, 0.0
        %314 = vst.msk [vmem:[#allocation2 + $0x170] sm:$0xff] %vm266, 0.0
        %315 = vst.msk [vmem:[#allocation2 + $0x178] sm:$0x3] %vm269, 0.0
        %316 = vst.msk [vmem:[#allocation2 + $0x180] sm:$0xff] %vm266, 0.0
        %317 = vst.msk [vmem:[#allocation2 + $0x188] sm:$0xff] %vm266, 0.0
        %318 = vst.msk [vmem:[#allocation2 + $0x190] sm:$0x3] %vm269, 0.0
        %319 = vst.msk [vmem:[#allocation2 + $0x198] sm:$0xff] %vm266, 0.0
        %320 = vst.msk [vmem:[#allocation2 + $0x1a0] sm:$0xff] %vm266, 0.0
        %321 = vst.msk [vmem:[#allocation2 + $0x1a8] sm:$0x3] %vm269, 0.0
        %322 = vst.msk [vmem:[#allocation3] sm:$0xff] %vm266, 0.0
        %323 = vst.msk [vmem:[#allocation3 + $0x8] sm:$0xff] %vm266, 0.0
        %324 = vst.msk [vmem:[#allocation3 + $0x10] sm:$0xff] %vm266, 0.0
        %325 = vst.msk [vmem:[#allocation3 + $0x18] sm:$0xff] %vm266, 0.0
        %326 = vst.msk [vmem:[#allocation3 + $0x20] sm:$0xff] %vm266, 0.0
        %327 = vst.msk [vmem:[#allocation3 + $0x28] sm:$0xff] %vm266, 0.0
        %328 = vst.msk [vmem:[#allocation3 + $0x30] sm:$0xff] %vm266, 0.0
        %329 = vst.msk [vmem:[#allocation3 + $0x38] sm:$0xff] %vm266, 0.0
        %330 = vst.msk [vmem:[#allocation3 + $0x40] sm:$0xff] %vm266, 0.0
        %331 = vst.msk [vmem:[#allocation3 + $0x48] sm:$0xff] %vm266, 0.0
        %332 = vst.msk [vmem:[#allocation3 + $0x50] sm:$0xff] %vm266, 0.0
        %333 = vst.msk [vmem:[#allocation3 + $0x58] sm:$0xff] %vm266, 0.0
        %334 = vst.msk [vmem:[#allocation3 + $0x60] sm:$0xff] %vm266, 0.0
        %335 = vst.msk [vmem:[#allocation3 + $0x68] sm:$0xff] %vm266, 0.0
        %336 = vst.msk [vmem:[#allocation3 + $0x70] sm:$0xff] %vm266, 0.0
        %337 = vst.msk [vmem:[#allocation3 + $0x78] sm:$0xff] %vm266, 0.0
        %338 = vst.msk [vmem:[#allocation3 + $0x80] sm:$0xff] %vm266, 0.0
        %339 = vst.msk [vmem:[#allocation3 + $0x88] sm:$0xff] %vm266, 0.0
        %340 = vst.msk [vmem:[#allocation3 + $0x90] sm:$0xff] %vm266, 0.0
        %341 = vst.msk [vmem:[#allocation3 + $0x98] sm:$0xff] %vm266, 0.0
        %342 = vst.msk [vmem:[#allocation3 + $0xa0] sm:$0xff] %vm266, 0.0
        %343 = vst.msk [vmem:[#allocation3 + $0xa8] sm:$0xff] %vm266, 0.0
        %344 = vst.msk [vmem:[#allocation3 + $0xb0] sm:$0xff] %vm266, 0.0
        %345 = vst.msk [vmem:[#allocation3 + $0xb8] sm:$0xff] %vm266, 0.0
        %346 = vst.msk [vmem:[#allocation3 + $0xc0] sm:$0xff] %vm266, 0.0
        %347 = vst.msk [vmem:[#allocation3 + $0xc8] sm:$0xff] %vm266, 0.0
        %348 = vst.msk [vmem:[#allocation3 + $0xd0] sm:$0xff] %vm266, 0.0
        %349 = vst.msk [vmem:[#allocation3 + $0xd8] sm:$0xff] %vm266, 0.0
        %350 = vst.msk [vmem:[#allocation3 + $0xe0] sm:$0xff] %vm266, 0.0
        %351 = vst.msk [vmem:[#allocation3 + $0xe8] sm:$0xff] %vm266, 0.0
        %352 = vst.msk [vmem:[#allocation3 + $0xf0] sm:$0xff] %vm266, 0.0
        %353 = vst.msk [vmem:[#allocation3 + $0xf8] sm:$0xff] %vm266, 0.0
      $region44: #{conv_lstm_forward.3} parent=39 // pred_fallthru
        _
      %v354 = vld [vmem:[%s1] sm:$0xf]
      %v355 = vld [vmem:[%s1 + $0x4] sm:$0xf]
      %v356 = vld [vmem:[%s1 + $0x8] sm:$0xf]
      %v357 = vld [vmem:[%s1 + $0xc] sm:$0xf]
      %v358 = vld [vmem:[%s1 + $0x10] sm:$0xf]
      %v359 = vld [vmem:[%s1 + $0x14] sm:$0xf]
      %v360 = vld [vmem:[%s1 + $0x18] sm:$0xf]
      %v361 = vld [vmem:[%s1 + $0x1c] sm:$0xf]
      %v362 = vld [vmem:[%s1 + $0x20] sm:$0xf]
      %v363 = vld [vmem:[%s1 + $0x24] sm:$0xf]
      %v364 = vld [vmem:[%s1 + $0x28] sm:$0xf]
      %v365 = vld [vmem:[%s1 + $0x2c] sm:$0xf]
      %v366 = vld [vmem:[%s1 + $0x30] sm:$0xf]
      %v367 = vld [vmem:[%s1 + $0x34] sm:$0xf]
      %v368 = vld [vmem:[%s1 + $0x38] sm:$0xf]
      %v369 = vld [vmem:[%s1 + $0x3c] sm:$0xf]
      %v370 = vld [vmem:[%s1 + $0x40] sm:$0xf]
      %v371 = vld [vmem:[%s1 + $0x44] sm:$0xf]
      %v372 = vld [vmem:[%s1 + $0x48] sm:$0xf]
      %v373 = vld [vmem:[%s1 + $0x4c] sm:$0xf]
      %v374 = vld [vmem:[%s1 + $0x50] sm:$0xf]
      %v375 = vld [vmem:[%s1 + $0x54] sm:$0xf]
      %v376 = vld [vmem:[%s1 + $0x58] sm:$0xf]
      %v377 = vld [vmem:[%s1 + $0x5c] sm:$0xf]
      %v378 = vld [vmem:[%s1 + $0x60] sm:$0xf]
      %v379 = vld [vmem:[%s1 + $0x64] sm:$0xf]
      %v380 = vld [vmem:[%s1 + $0x68] sm:$0xf]
      %v381 = vld [vmem:[%s1 + $0x6c] sm:$0xf]
      %v382 = vld [vmem:[%s1 + $0x70] sm:$0xf]
      %v383 = vld [vmem:[%s1 + $0x74] sm:$0xf]
      %v384 = vld [vmem:[%s1 + $0x78] sm:$0xf]
      %v385 = vld [vmem:[%s1 + $0x7c] sm:$0xf]
      %v386 = vld [vmem:[%s1 + $0x80] sm:$0xf]
      %v387 = vld [vmem:[%s1 + $0x84] sm:$0xf]
      %v388 = vld [vmem:[%s1 + $0x88] sm:$0xf]
      %v389 = vld [vmem:[%s1 + $0x8c] sm:$0xf]
      %v390 = vld [vmem:[#allocation2] sm:$0xff]
      %v391 = vld [vmem:[#allocation2 + $0x8] sm:$0xff]
      %v392 = vld [vmem:[#allocation2 + $0x18] sm:$0xff]
      %v393 = vld [vmem:[#allocation2 + $0x20] sm:$0xff]
      %v394 = vld [vmem:[#allocation2 + $0x30] sm:$0xff]
      %v395 = vld [vmem:[#allocation2 + $0x38] sm:$0xff]
      %v396 = vld [vmem:[#allocation2 + $0x48] sm:$0xff]
      %v397 = vld [vmem:[#allocation2 + $0x50] sm:$0xff]
      %v398 = vld [vmem:[#allocation2 + $0x60] sm:$0xff]
      %v399 = vld [vmem:[#allocation2 + $0x68] sm:$0xff]
      %v400 = vld [vmem:[#allocation2 + $0x78] sm:$0xff]
      %v401 = vld [vmem:[#allocation2 + $0x80] sm:$0xff]
      %v402 = vld [vmem:[#allocation2 + $0x90] sm:$0xff]
      %v403 = vld [vmem:[#allocation2 + $0x98] sm:$0xff]
      %v404 = vld [vmem:[#allocation2 + $0xa8] sm:$0xff]
      %v405 = vld [vmem:[#allocation2 + $0xb0] sm:$0xff]
      %vm406 = vcmask 261120
      %407 = vst.msk [vmem:[#allocation4] sm:$0xff] %vm406, %v390
      %408 = vst.msk [vmem:[#allocation4 + $0x18] sm:$0xff] %vm406, %v391
      %409 = vst.msk [vmem:[#allocation4 + $0x30] sm:$0xff] %vm406, %v392
      %410 = vst.msk [vmem:[#allocation4 + $0x48] sm:$0xff] %vm406, %v393
      %411 = vst.msk [vmem:[#allocation4 + $0x60] sm:$0xff] %vm406, %v394
      %412 = vst.msk [vmem:[#allocation4 + $0x78] sm:$0xff] %vm406, %v395
      %413 = vst.msk [vmem:[#allocation4 + $0x90] sm:$0xff] %vm406, %v396
      %414 = vst.msk [vmem:[#allocation4 + $0xa8] sm:$0xff] %vm406, %v397
      %415 = vst.msk [vmem:[#allocation4 + $0xc0] sm:$0xff] %vm406, %v398
      %416 = vst.msk [vmem:[#allocation4 + $0xd8] sm:$0xff] %vm406, %v399
      %417 = vst.msk [vmem:[#allocation4 + $0xf0] sm:$0xff] %vm406, %v400
      %418 = vst.msk [vmem:[#allocation4 + $0x108] sm:$0xff] %vm406, %v401
      %419 = vst.msk [vmem:[#allocation4 + $0x120] sm:$0xff] %vm406, %v402
      %420 = vst.msk [vmem:[#allocation4 + $0x138] sm:$0xff] %vm406, %v403
      %421 = vst.msk [vmem:[#allocation4 + $0x150] sm:$0xff] %vm406, %v404
      %422 = vst.msk [vmem:[#allocation4 + $0x168] sm:$0xff] %vm406, %v405
      %v423 = vld [vmem:[#allocation2 + $0x1] sm:$0xff]
      %v424 = vld [vmem:[#allocation2 + $0x9] sm:$0xff]
      %v425 = vld [vmem:[#allocation2 + $0x19] sm:$0xff]
      %v426 = vld [vmem:[#allocation2 + $0x21] sm:$0xff]
      %v427 = vld [vmem:[#allocation2 + $0x31] sm:$0xff]
      %v428 = vld [vmem:[#allocation2 + $0x39] sm:$0xff]
      %v429 = vld [vmem:[#allocation2 + $0x49] sm:$0xff]
      %v430 = vld [vmem:[#allocation2 + $0x51] sm:$0xff]
      %v431 = vld [vmem:[#allocation2 + $0x61] sm:$0xff]
      %v432 = vld [vmem:[#allocation2 + $0x69] sm:$0xff]
      %v433 = vld [vmem:[#allocation2 + $0x79] sm:$0xff]
      %v434 = vld [vmem:[#allocation2 + $0x81] sm:$0xff]
      %v435 = vld [vmem:[#allocation2 + $0x91] sm:$0xff]
      %v436 = vld [vmem:[#allocation2 + $0x99] sm:$0xff]
      %v437 = vld [vmem:[#allocation2 + $0xa9] sm:$0xff]
      %v438 = vld [vmem:[#allocation2 + $0xb1] sm:$0xff]
      %455 = vrot.lane.b32.xlu0 %v423, 32
      %v456 = vpop.permute.xlu0 %455
      %457 = vrot.lane.b32.xlu0 %v424, 32
      %v458 = vpop.permute.xlu0 %457
      %459 = vrot.lane.b32.xlu0 %v425, 32
      %v460 = vpop.permute.xlu0 %459
      %461 = vrot.lane.b32.xlu0 %v426, 32
      %v462 = vpop.permute.xlu0 %461
      %463 = vrot.lane.b32.xlu0 %v427, 32
      %v464 = vpop.permute.xlu0 %463
      %465 = vrot.lane.b32.xlu0 %v428, 32
      %v466 = vpop.permute.xlu0 %465
      %467 = vrot.lane.b32.xlu0 %v429, 32
      %v468 = vpop.permute.xlu0 %467
      %469 = vrot.lane.b32.xlu0 %v430, 32
      %v470 = vpop.permute.xlu0 %469
      %471 = vrot.lane.b32.xlu0 %v431, 32
      %v472 = vpop.permute.xlu0 %471
      %473 = vrot.lane.b32.xlu0 %v432, 32
      %v474 = vpop.permute.xlu0 %473
      %475 = vrot.lane.b32.xlu0 %v433, 32
      %v476 = vpop.permute.xlu0 %475
      %477 = vrot.lane.b32.xlu0 %v434, 32
      %v478 = vpop.permute.xlu0 %477
      %479 = vrot.lane.b32.xlu0 %v435, 32
      %v480 = vpop.permute.xlu0 %479
      %481 = vrot.lane.b32.xlu0 %v436, 32
      %v482 = vpop.permute.xlu0 %481
      %483 = vrot.lane.b32.xlu0 %v437, 32
      %v484 = vpop.permute.xlu0 %483
      %485 = vrot.lane.b32.xlu0 %v438, 32
      %v486 = vpop.permute.xlu0 %485
      %vm503 = vcmask 523520
      %504 = vst.msk [vmem:[#allocation4] sm:$0xff] %vm503, %v456
      %505 = vst.msk [vmem:[#allocation4 + $0x18] sm:$0xff] %vm503, %v458
      %506 = vst.msk [vmem:[#allocation4 + $0x30] sm:$0xff] %vm503, %v460
      %507 = vst.msk [vmem:[#allocation4 + $0x48] sm:$0xff] %vm503, %v462
      %508 = vst.msk [vmem:[#allocation4 + $0x60] sm:$0xff] %vm503, %v464
      %509 = vst.msk [vmem:[#allocation4 + $0x78] sm:$0xff] %vm503, %v466
      %510 = vst.msk [vmem:[#allocation4 + $0x90] sm:$0xff] %vm503, %v468
      %511 = vst.msk [vmem:[#allocation4 + $0xa8] sm:$0xff] %vm503, %v470
      %512 = vst.msk [vmem:[#allocation4 + $0xc0] sm:$0xff] %vm503, %v472
      %513 = vst.msk [vmem:[#allocation4 + $0xd8] sm:$0xff] %vm503, %v474
      %514 = vst.msk [vmem:[#allocation4 + $0xf0] sm:$0xff] %vm503, %v476
      %515 = vst.msk [vmem:[#allocation4 + $0x108] sm:$0xff] %vm503, %v478
      %516 = vst.msk [vmem:[#allocation4 + $0x120] sm:$0xff] %vm503, %v480
      %517 = vst.msk [vmem:[#allocation4 + $0x138] sm:$0xff] %vm503, %v482
      %518 = vst.msk [vmem:[#allocation4 + $0x150] sm:$0xff] %vm503, %v484
      %519 = vst.msk [vmem:[#allocation4 + $0x168] sm:$0xff] %vm503, %v486
      %v520 = vld [vmem:[#allocation2 + $0x2] sm:$0xff]
      %v521 = vld [vmem:[#allocation2 + $0xa] sm:$0xff]
      %v522 = vld [vmem:[#allocation2 + $0x1a] sm:$0xff]
      %v523 = vld [vmem:[#allocation2 + $0x22] sm:$0xff]
      %v524 = vld [vmem:[#allocation2 + $0x32] sm:$0xff]
      %v525 = vld [vmem:[#allocation2 + $0x3a] sm:$0xff]
      %v526 = vld [vmem:[#allocation2 + $0x4a] sm:$0xff]
      %v527 = vld [vmem:[#allocation2 + $0x52] sm:$0xff]
      %v528 = vld [vmem:[#allocation2 + $0x62] sm:$0xff]
      %v529 = vld [vmem:[#allocation2 + $0x6a] sm:$0xff]
      %v530 = vld [vmem:[#allocation2 + $0x7a] sm:$0xff]
      %v531 = vld [vmem:[#allocation2 + $0x82] sm:$0xff]
      %v532 = vld [vmem:[#allocation2 + $0x92] sm:$0xff]
      %v533 = vld [vmem:[#allocation2 + $0x9a] sm:$0xff]
      %v534 = vld [vmem:[#allocation2 + $0xaa] sm:$0xff]
      %v535 = vld [vmem:[#allocation2 + $0xb2] sm:$0xff]
      %552 = vrot.lane.b32.xlu0 %v520, 64
      %v553 = vpop.permute.xlu0 %552
      %554 = vrot.lane.b32.xlu0 %v521, 64
      %v555 = vpop.permute.xlu0 %554
      %556 = vrot.lane.b32.xlu0 %v522, 64
      %v557 = vpop.permute.xlu0 %556
      %558 = vrot.lane.b32.xlu0 %v523, 64
      %v559 = vpop.permute.xlu0 %558
      %560 = vrot.lane.b32.xlu0 %v524, 64
      %v561 = vpop.permute.xlu0 %560
      %562 = vrot.lane.b32.xlu0 %v525, 64
      %v563 = vpop.permute.xlu0 %562
      %564 = vrot.lane.b32.xlu0 %v526, 64
      %v565 = vpop.permute.xlu0 %564
      %566 = vrot.lane.b32.xlu0 %v527, 64
      %v567 = vpop.permute.xlu0 %566
      %568 = vrot.lane.b32.xlu0 %v528, 64
      %v569 = vpop.permute.xlu0 %568
      %570 = vrot.lane.b32.xlu0 %v529, 64
      %v571 = vpop.permute.xlu0 %570
      %572 = vrot.lane.b32.xlu0 %v530, 64
      %v573 = vpop.permute.xlu0 %572
      %574 = vrot.lane.b32.xlu0 %v531, 64
      %v575 = vpop.permute.xlu0 %574
      %576 = vrot.lane.b32.xlu0 %v532, 64
      %v577 = vpop.permute.xlu0 %576
      %578 = vrot.lane.b32.xlu0 %v533, 64
      %v579 = vpop.permute.xlu0 %578
      %580 = vrot.lane.b32.xlu0 %v534, 64
      %v581 = vpop.permute.xlu0 %580
      %582 = vrot.lane.b32.xlu0 %v535, 64
      %v583 = vpop.permute.xlu0 %582
      %vm600 = vcmask 785920
      %601 = vst.msk [vmem:[#allocation4] sm:$0xff] %vm600, %v553
      %602 = vst.msk [vmem:[#allocation4 + $0x18] sm:$0xff] %vm600, %v555
      %603 = vst.msk [vmem:[#allocation4 + $0x30] sm:$0xff] %vm600, %v557
      %604 = vst.msk [vmem:[#allocation4 + $0x48] sm:$0xff] %vm600, %v559
      %605 = vst.msk [vmem:[#allocation4 + $0x60] sm:$0xff] %vm600, %v561
      %606 = vst.msk [vmem:[#allocation4 + $0x78] sm:$0xff] %vm600, %v563
      %607 = vst.msk [vmem:[#allocation4 + $0x90] sm:$0xff] %vm600, %v565
      %608 = vst.msk [vmem:[#allocation4 + $0xa8] sm:$0xff] %vm600, %v567
      %609 = vst.msk [vmem:[#allocation4 + $0xc0] sm:$0xff] %vm600, %v569
      %610 = vst.msk [vmem:[#allocation4 + $0xd8] sm:$0xff] %vm600, %v571
      %611 = vst.msk [vmem:[#allocation4 + $0xf0] sm:$0xff] %vm600, %v573
      %612 = vst.msk [vmem:[#allocation4 + $0x108] sm:$0xff] %vm600, %v575
      %613 = vst.msk [vmem:[#allocation4 + $0x120] sm:$0xff] %vm600, %v577
      %614 = vst.msk [vmem:[#allocation4 + $0x138] sm:$0xff] %vm600, %v579
      %615 = vst.msk [vmem:[#allocation4 + $0x150] sm:$0xff] %vm600, %v581
      %616 = vst.msk [vmem:[#allocation4 + $0x168] sm:$0xff] %vm600, %v583
      %s617 = scalar_lea.vmem [#allocation2], 24
      %v618 = vld [vmem:[%s617] sm:$0xff]
      %v619 = vld [vmem:[%s617 + $0x8] sm:$0xff]
      %v620 = vld [vmem:[%s617 + $0x18] sm:$0xff]
      %v621 = vld [vmem:[%s617 + $0x20] sm:$0xff]
      %v622 = vld [vmem:[%s617 + $0x30] sm:$0xff]
      %v623 = vld [vmem:[%s617 + $0x38] sm:$0xff]
      %v624 = vld [vmem:[%s617 + $0x48] sm:$0xff]
      %v625 = vld [vmem:[%s617 + $0x50] sm:$0xff]
      %v626 = vld [vmem:[%s617 + $0x60] sm:$0xff]
      %v627 = vld [vmem:[%s617 + $0x68] sm:$0xff]
      %v628 = vld [vmem:[%s617 + $0x78] sm:$0xff]
      %v629 = vld [vmem:[%s617 + $0x80] sm:$0xff]
      %v630 = vld [vmem:[%s617 + $0x90] sm:$0xff]
      %v631 = vld [vmem:[%s617 + $0x98] sm:$0xff]
      %v632 = vld [vmem:[%s617 + $0xa8] sm:$0xff]
      %v633 = vld [vmem:[%s617 + $0xb0] sm:$0xff]
      %650 = vrot.lane.b32.xlu0 %v618, 96
      %v651 = vpop.permute.xlu0 %650
      %652 = vrot.lane.b32.xlu0 %v619, 96
      %v653 = vpop.permute.xlu0 %652
      %654 = vrot.lane.b32.xlu0 %v620, 96
      %v655 = vpop.permute.xlu0 %654
      %656 = vrot.lane.b32.xlu0 %v621, 96
      %v657 = vpop.permute.xlu0 %656
      %658 = vrot.lane.b32.xlu0 %v622, 96
      %v659 = vpop.permute.xlu0 %658
      %660 = vrot.lane.b32.xlu0 %v623, 96
      %v661 = vpop.permute.xlu0 %660
      %662 = vrot.lane.b32.xlu0 %v624, 96
      %v663 = vpop.permute.xlu0 %662
      %664 = vrot.lane.b32.xlu0 %v625, 96
      %v665 = vpop.permute.xlu0 %664
      %666 = vrot.lane.b32.xlu0 %v626, 96
      %v667 = vpop.permute.xlu0 %666
      %668 = vrot.lane.b32.xlu0 %v627, 96
      %v669 = vpop.permute.xlu0 %668
      %670 = vrot.lane.b32.xlu0 %v628, 96
      %v671 = vpop.permute.xlu0 %670
      %672 = vrot.lane.b32.xlu0 %v629, 96
      %v673 = vpop.permute.xlu0 %672
      %674 = vrot.lane.b32.xlu0 %v630, 96
      %v675 = vpop.permute.xlu0 %674
      %676 = vrot.lane.b32.xlu0 %v631, 96
      %v677 = vpop.permute.xlu0 %676
      %678 = vrot.lane.b32.xlu0 %v632, 96
      %v679 = vpop.permute.xlu0 %678
      %680 = vrot.lane.b32.xlu0 %v633, 96
      %v681 = vpop.permute.xlu0 %680
      %vm698 = vcmask 1048320
      %699 = vst.msk [vmem:[#allocation4] sm:$0xff] %vm698, %v651
      %700 = vst.msk [vmem:[#allocation4 + $0x18] sm:$0xff] %vm698, %v653
      %701 = vst.msk [vmem:[#allocation4 + $0x30] sm:$0xff] %vm698, %v655
      %702 = vst.msk [vmem:[#allocation4 + $0x48] sm:$0xff] %vm698, %v657
      %703 = vst.msk [vmem:[#allocation4 + $0x60] sm:$0xff] %vm698, %v659
      %704 = vst.msk [vmem:[#allocation4 + $0x78] sm:$0xff] %vm698, %v661
      %705 = vst.msk [vmem:[#allocation4 + $0x90] sm:$0xff] %vm698, %v663
      %706 = vst.msk [vmem:[#allocation4 + $0xa8] sm:$0xff] %vm698, %v665
      %707 = vst.msk [vmem:[#allocation4 + $0xc0] sm:$0xff] %vm698, %v667
      %708 = vst.msk [vmem:[#allocation4 + $0xd8] sm:$0xff] %vm698, %v669
      %709 = vst.msk [vmem:[#allocation4 + $0xf0] sm:$0xff] %vm698, %v671
      %710 = vst.msk [vmem:[#allocation4 + $0x108] sm:$0xff] %vm698, %v673
      %711 = vst.msk [vmem:[#allocation4 + $0x120] sm:$0xff] %vm698, %v675
      %712 = vst.msk [vmem:[#allocation4 + $0x138] sm:$0xff] %vm698, %v677
      %713 = vst.msk [vmem:[#allocation4 + $0x150] sm:$0xff] %vm698, %v679
      %714 = vst.msk [vmem:[#allocation4 + $0x168] sm:$0xff] %vm698, %v681
      %v715 = vld [vmem:[%s617 + $0x1] sm:$0xff]
      %v716 = vld [vmem:[%s617 + $0x9] sm:$0xff]
      %v717 = vld [vmem:[%s617 + $0x19] sm:$0xff]
      %v718 = vld [vmem:[%s617 + $0x21] sm:$0xff]
      %v719 = vld [vmem:[%s617 + $0x31] sm:$0xff]
      %v720 = vld [vmem:[%s617 + $0x39] sm:$0xff]
      %v721 = vld [vmem:[%s617 + $0x49] sm:$0xff]
      %v722 = vld [vmem:[%s617 + $0x51] sm:$0xff]
      %v723 = vld [vmem:[%s617 + $0x61] sm:$0xff]
      %v724 = vld [vmem:[%s617 + $0x69] sm:$0xff]
      %v725 = vld [vmem:[%s617 + $0x79] sm:$0xff]
      %v726 = vld [vmem:[%s617 + $0x81] sm:$0xff]
      %v727 = vld [vmem:[%s617 + $0x91] sm:$0xff]
      %v728 = vld [vmem:[%s617 + $0x99] sm:$0xff]
      %v729 = vld [vmem:[%s617 + $0xa9] sm:$0xff]
      %v730 = vld [vmem:[%s617 + $0xb1] sm:$0xff]
      %731 = vst.msk [vmem:[#allocation4 + $0x8] sm:$0xff] %vm406, %v715
      %732 = vst.msk [vmem:[#allocation4 + $0x20] sm:$0xff] %vm406, %v716
      %733 = vst.msk [vmem:[#allocation4 + $0x38] sm:$0xff] %vm406, %v717
      %734 = vst.msk [vmem:[#allocation4 + $0x50] sm:$0xff] %vm406, %v718
      %735 = vst.msk [vmem:[#allocation4 + $0x68] sm:$0xff] %vm406, %v719
      %736 = vst.msk [vmem:[#allocation4 + $0x80] sm:$0xff] %vm406, %v720
      %737 = vst.msk [vmem:[#allocation4 + $0x98] sm:$0xff] %vm406, %v721
      %738 = vst.msk [vmem:[#allocation4 + $0xb0] sm:$0xff] %vm406, %v722
      %739 = vst.msk [vmem:[#allocation4 + $0xc8] sm:$0xff] %vm406, %v723
      %740 = vst.msk [vmem:[#allocation4 + $0xe0] sm:$0xff] %vm406, %v724
      %741 = vst.msk [vmem:[#allocation4 + $0xf8] sm:$0xff] %vm406, %v725
      %742 = vst.msk [vmem:[#allocation4 + $0x110] sm:$0xff] %vm406, %v726
      %743 = vst.msk [vmem:[#allocation4 + $0x128] sm:$0xff] %vm406, %v727
      %744 = vst.msk [vmem:[#allocation4 + $0x140] sm:$0xff] %vm406, %v728
      %745 = vst.msk [vmem:[#allocation4 + $0x158] sm:$0xff] %vm406, %v729
      %746 = vst.msk [vmem:[#allocation4 + $0x170] sm:$0xff] %vm406, %v730
      %v747 = vld [vmem:[%s617 + $0x2] sm:$0xff]
      %v748 = vld [vmem:[%s617 + $0xa] sm:$0xff]
      %v749 = vld [vmem:[%s617 + $0x1a] sm:$0xff]
      %v750 = vld [vmem:[%s617 + $0x22] sm:$0xff]
      %v751 = vld [vmem:[%s617 + $0x32] sm:$0xff]
      %v752 = vld [vmem:[%s617 + $0x3a] sm:$0xff]
      %v753 = vld [vmem:[%s617 + $0x4a] sm:$0xff]
      %v754 = vld [vmem:[%s617 + $0x52] sm:$0xff]
      %v755 = vld [vmem:[%s617 + $0x62] sm:$0xff]
      %v756 = vld [vmem:[%s617 + $0x6a] sm:$0xff]
      %v757 = vld [vmem:[%s617 + $0x7a] sm:$0xff]
      %v758 = vld [vmem:[%s617 + $0x82] sm:$0xff]
      %v759 = vld [vmem:[%s617 + $0x92] sm:$0xff]
      %v760 = vld [vmem:[%s617 + $0x9a] sm:$0xff]
      %v761 = vld [vmem:[%s617 + $0xaa] sm:$0xff]
      %v762 = vld [vmem:[%s617 + $0xb2] sm:$0xff]
      %779 = vrot.lane.b32.xlu0 %v747, 32
      %v780 = vpop.permute.xlu0 %779
      %781 = vrot.lane.b32.xlu0 %v748, 32
      %v782 = vpop.permute.xlu0 %781
      %783 = vrot.lane.b32.xlu0 %v749, 32
      %v784 = vpop.permute.xlu0 %783
      %785 = vrot.lane.b32.xlu0 %v750, 32
      %v786 = vpop.permute.xlu0 %785
      %787 = vrot.lane.b32.xlu0 %v751, 32
      %v788 = vpop.permute.xlu0 %787
      %789 = vrot.lane.b32.xlu0 %v752, 32
      %v790 = vpop.permute.xlu0 %789
      %791 = vrot.lane.b32.xlu0 %v753, 32
      %v792 = vpop.permute.xlu0 %791
      %793 = vrot.lane.b32.xlu0 %v754, 32
      %v794 = vpop.permute.xlu0 %793
      %795 = vrot.lane.b32.xlu0 %v755, 32
      %v796 = vpop.permute.xlu0 %795
      %797 = vrot.lane.b32.xlu0 %v756, 32
      %v798 = vpop.permute.xlu0 %797
      %799 = vrot.lane.b32.xlu0 %v757, 32
      %v800 = vpop.permute.xlu0 %799
      %801 = vrot.lane.b32.xlu0 %v758, 32
      %v802 = vpop.permute.xlu0 %801
      %803 = vrot.lane.b32.xlu0 %v759, 32
      %v804 = vpop.permute.xlu0 %803
      %805 = vrot.lane.b32.xlu0 %v760, 32
      %v806 = vpop.permute.xlu0 %805
      %807 = vrot.lane.b32.xlu0 %v761, 32
      %v808 = vpop.permute.xlu0 %807
      %809 = vrot.lane.b32.xlu0 %v762, 32
      %v810 = vpop.permute.xlu0 %809
      %827 = vst.msk [vmem:[#allocation4 + $0x8] sm:$0xff] %vm503, %v780
      %828 = vst.msk [vmem:[#allocation4 + $0x20] sm:$0xff] %vm503, %v782
      %829 = vst.msk [vmem:[#allocation4 + $0x38] sm:$0xff] %vm503, %v784
      %830 = vst.msk [vmem:[#allocation4 + $0x50] sm:$0xff] %vm503, %v786
      %831 = vst.msk [vmem:[#allocation4 + $0x68] sm:$0xff] %vm503, %v788
      %832 = vst.msk [vmem:[#allocation4 + $0x80] sm:$0xff] %vm503, %v790
      %833 = vst.msk [vmem:[#allocation4 + $0x98] sm:$0xff] %vm503, %v792
      %834 = vst.msk [vmem:[#allocation4 + $0xb0] sm:$0xff] %vm503, %v794
      %835 = vst.msk [vmem:[#allocation4 + $0xc8] sm:$0xff] %vm503, %v796
      %836 = vst.msk [vmem:[#allocation4 + $0xe0] sm:$0xff] %vm503, %v798
      %837 = vst.msk [vmem:[#allocation4 + $0xf8] sm:$0xff] %vm503, %v800
      %838 = vst.msk [vmem:[#allocation4 + $0x110] sm:$0xff] %vm503, %v802
      %839 = vst.msk [vmem:[#allocation4 + $0x128] sm:$0xff] %vm503, %v804
      %840 = vst.msk [vmem:[#allocation4 + $0x140] sm:$0xff] %vm503, %v806
      %841 = vst.msk [vmem:[#allocation4 + $0x158] sm:$0xff] %vm503, %v808
      %842 = vst.msk [vmem:[#allocation4 + $0x170] sm:$0xff] %vm503, %v810
      %s843 = scalar_lea.vmem [#allocation2], 48
      %v844 = vld [vmem:[%s843] sm:$0xff]
      %v845 = vld [vmem:[%s843 + $0x8] sm:$0xff]
      %v846 = vld [vmem:[%s843 + $0x18] sm:$0xff]
      %v847 = vld [vmem:[%s843 + $0x20] sm:$0xff]
      %v848 = vld [vmem:[%s843 + $0x30] sm:$0xff]
      %v849 = vld [vmem:[%s843 + $0x38] sm:$0xff]
      %v850 = vld [vmem:[%s843 + $0x48] sm:$0xff]
      %v851 = vld [vmem:[%s843 + $0x50] sm:$0xff]
      %v852 = vld [vmem:[%s843 + $0x60] sm:$0xff]
      %v853 = vld [vmem:[%s843 + $0x68] sm:$0xff]
      %v854 = vld [vmem:[%s843 + $0x78] sm:$0xff]
      %v855 = vld [vmem:[%s843 + $0x80] sm:$0xff]
      %v856 = vld [vmem:[%s843 + $0x90] sm:$0xff]
      %v857 = vld [vmem:[%s843 + $0x98] sm:$0xff]
      %v858 = vld [vmem:[%s843 + $0xa8] sm:$0xff]
      %v859 = vld [vmem:[%s843 + $0xb0] sm:$0xff]
      %876 = vrot.lane.b32.xlu0 %v844, 64
      %v877 = vpop.permute.xlu0 %876
      %878 = vrot.lane.b32.xlu0 %v845, 64
      %v879 = vpop.permute.xlu0 %878
      %880 = vrot.lane.b32.xlu0 %v846, 64
      %v881 = vpop.permute.xlu0 %880
      %882 = vrot.lane.b32.xlu0 %v847, 64
      %v883 = vpop.permute.xlu0 %882
      %884 = vrot.lane.b32.xlu0 %v848, 64
      %v885 = vpop.permute.xlu0 %884
      %886 = vrot.lane.b32.xlu0 %v849, 64
      %v887 = vpop.permute.xlu0 %886
      %888 = vrot.lane.b32.xlu0 %v850, 64
      %v889 = vpop.permute.xlu0 %888
      %890 = vrot.lane.b32.xlu0 %v851, 64
      %v891 = vpop.permute.xlu0 %890
      %892 = vrot.lane.b32.xlu0 %v852, 64
      %v893 = vpop.permute.xlu0 %892
      %894 = vrot.lane.b32.xlu0 %v853, 64
      %v895 = vpop.permute.xlu0 %894
      %896 = vrot.lane.b32.xlu0 %v854, 64
      %v897 = vpop.permute.xlu0 %896
      %898 = vrot.lane.b32.xlu0 %v855, 64
      %v899 = vpop.permute.xlu0 %898
      %900 = vrot.lane.b32.xlu0 %v856, 64
      %v901 = vpop.permute.xlu0 %900
      %902 = vrot.lane.b32.xlu0 %v857, 64
      %v903 = vpop.permute.xlu0 %902
      %904 = vrot.lane.b32.xlu0 %v858, 64
      %v905 = vpop.permute.xlu0 %904
      %906 = vrot.lane.b32.xlu0 %v859, 64
      %v907 = vpop.permute.xlu0 %906
      %924 = vst.msk [vmem:[#allocation4 + $0x8] sm:$0xff] %vm600, %v877
      %925 = vst.msk [vmem:[#allocation4 + $0x20] sm:$0xff] %vm600, %v879
      %926 = vst.msk [vmem:[#allocation4 + $0x38] sm:$0xff] %vm600, %v881
      %927 = vst.msk [vmem:[#allocation4 + $0x50] sm:$0xff] %vm600, %v883
      %928 = vst.msk [vmem:[#allocation4 + $0x68] sm:$0xff] %vm600, %v885
      %929 = vst.msk [vmem:[#allocation4 + $0x80] sm:$0xff] %vm600, %v887
      %930 = vst.msk [vmem:[#allocation4 + $0x98] sm:$0xff] %vm600, %v889
      %931 = vst.msk [vmem:[#allocation4 + $0xb0] sm:$0xff] %vm600, %v891
      %932 = vst.msk [vmem:[#allocation4 + $0xc8] sm:$0xff] %vm600, %v893
      %933 = vst.msk [vmem:[#allocation4 + $0xe0] sm:$0xff] %vm600, %v895
      %934 = vst.msk [vmem:[#allocation4 + $0xf8] sm:$0xff] %vm600, %v897
      %935 = vst.msk [vmem:[#allocation4 + $0x110] sm:$0xff] %vm600, %v899
      %936 = vst.msk [vmem:[#allocation4 + $0x128] sm:$0xff] %vm600, %v901
      %937 = vst.msk [vmem:[#allocation4 + $0x140] sm:$0xff] %vm600, %v903
      %938 = vst.msk [vmem:[#allocation4 + $0x158] sm:$0xff] %vm600, %v905
      %939 = vst.msk [vmem:[#allocation4 + $0x170] sm:$0xff] %vm600, %v907
      %v940 = vld [vmem:[%s843 + $0x1] sm:$0xff]
      %v941 = vld [vmem:[%s843 + $0x9] sm:$0xff]
      %v942 = vld [vmem:[%s843 + $0x19] sm:$0xff]
      %v943 = vld [vmem:[%s843 + $0x21] sm:$0xff]
      %v944 = vld [vmem:[%s843 + $0x31] sm:$0xff]
      %v945 = vld [vmem:[%s843 + $0x39] sm:$0xff]
      %v946 = vld [vmem:[%s843 + $0x49] sm:$0xff]
      %v947 = vld [vmem:[%s843 + $0x51] sm:$0xff]
      %v948 = vld [vmem:[%s843 + $0x61] sm:$0xff]
      %v949 = vld [vmem:[%s843 + $0x69] sm:$0xff]
      %v950 = vld [vmem:[%s843 + $0x79] sm:$0xff]
      %v951 = vld [vmem:[%s843 + $0x81] sm:$0xff]
      %v952 = vld [vmem:[%s843 + $0x91] sm:$0xff]
      %v953 = vld [vmem:[%s843 + $0x99] sm:$0xff]
      %v954 = vld [vmem:[%s843 + $0xa9] sm:$0xff]
      %v955 = vld [vmem:[%s843 + $0xb1] sm:$0xff]
      %972 = vrot.lane.b32.xlu0 %v940, 96
      %v973 = vpop.permute.xlu0 %972
      %974 = vrot.lane.b32.xlu0 %v941, 96
      %v975 = vpop.permute.xlu0 %974
      %976 = vrot.lane.b32.xlu0 %v942, 96
      %v977 = vpop.permute.xlu0 %976
      %978 = vrot.lane.b32.xlu0 %v943, 96
      %v979 = vpop.permute.xlu0 %978
      %980 = vrot.lane.b32.xlu0 %v944, 96
      %v981 = vpop.permute.xlu0 %980
      %982 = vrot.lane.b32.xlu0 %v945, 96
      %v983 = vpop.permute.xlu0 %982
      %984 = vrot.lane.b32.xlu0 %v946, 96
      %v985 = vpop.permute.xlu0 %984
      %986 = vrot.lane.b32.xlu0 %v947, 96
      %v987 = vpop.permute.xlu0 %986
      %988 = vrot.lane.b32.xlu0 %v948, 96
      %v989 = vpop.permute.xlu0 %988
      %990 = vrot.lane.b32.xlu0 %v949, 96
      %v991 = vpop.permute.xlu0 %990
      %992 = vrot.lane.b32.xlu0 %v950, 96
      %v993 = vpop.permute.xlu0 %992
      %994 = vrot.lane.b32.xlu0 %v951, 96
      %v995 = vpop.permute.xlu0 %994
      %996 = vrot.lane.b32.xlu0 %v952, 96
      %v997 = vpop.permute.xlu0 %996
      %998 = vrot.lane.b32.xlu0 %v953, 96
      %v999 = vpop.permute.xlu0 %998
      %1000 = vrot.lane.b32.xlu0 %v954, 96
      %v1001 = vpop.permute.xlu0 %1000
      %1002 = vrot.lane.b32.xlu0 %v955, 96
      %v1003 = vpop.permute.xlu0 %1002
      %1020 = vst.msk [vmem:[#allocation4 + $0x8] sm:$0xff] %vm698, %v973
      %1021 = vst.msk [vmem:[#allocation4 + $0x20] sm:$0xff] %vm698, %v975
      %1022 = vst.msk [vmem:[#allocation4 + $0x38] sm:$0xff] %vm698, %v977
      %1023 = vst.msk [vmem:[#allocation4 + $0x50] sm:$0xff] %vm698, %v979
      %1024 = vst.msk [vmem:[#allocation4 + $0x68] sm:$0xff] %vm698, %v981
      %1025 = vst.msk [vmem:[#allocation4 + $0x80] sm:$0xff] %vm698, %v983
      %1026 = vst.msk [vmem:[#allocation4 + $0x98] sm:$0xff] %vm698, %v985
      %1027 = vst.msk [vmem:[#allocation4 + $0xb0] sm:$0xff] %vm698, %v987
      %1028 = vst.msk [vmem:[#allocation4 + $0xc8] sm:$0xff] %vm698, %v989
      %1029 = vst.msk [vmem:[#allocation4 + $0xe0] sm:$0xff] %vm698, %v991
      %1030 = vst.msk [vmem:[#allocation4 + $0xf8] sm:$0xff] %vm698, %v993
      %1031 = vst.msk [vmem:[#allocation4 + $0x110] sm:$0xff] %vm698, %v995
      %1032 = vst.msk [vmem:[#allocation4 + $0x128] sm:$0xff] %vm698, %v997
      %1033 = vst.msk [vmem:[#allocation4 + $0x140] sm:$0xff] %vm698, %v999
      %1034 = vst.msk [vmem:[#allocation4 + $0x158] sm:$0xff] %vm698, %v1001
      %1035 = vst.msk [vmem:[#allocation4 + $0x170] sm:$0xff] %vm698, %v1003
      %v1036 = vld [vmem:[%s843 + $0x2] sm:$0xff]
      %v1037 = vld [vmem:[%s843 + $0xa] sm:$0xff]
      %v1038 = vld [vmem:[%s843 + $0x1a] sm:$0xff]
      %v1039 = vld [vmem:[%s843 + $0x22] sm:$0xff]
      %v1040 = vld [vmem:[%s843 + $0x32] sm:$0xff]
      %v1041 = vld [vmem:[%s843 + $0x3a] sm:$0xff]
      %v1042 = vld [vmem:[%s843 + $0x4a] sm:$0xff]
      %v1043 = vld [vmem:[%s843 + $0x52] sm:$0xff]
      %v1044 = vld [vmem:[%s843 + $0x62] sm:$0xff]
      %v1045 = vld [vmem:[%s843 + $0x6a] sm:$0xff]
      %v1046 = vld [vmem:[%s843 + $0x7a] sm:$0xff]
      %v1047 = vld [vmem:[%s843 + $0x82] sm:$0xff]
      %v1048 = vld [vmem:[%s843 + $0x92] sm:$0xff]
      %v1049 = vld [vmem:[%s843 + $0x9a] sm:$0xff]
      %v1050 = vld [vmem:[%s843 + $0xaa] sm:$0xff]
      %v1051 = vld [vmem:[%s843 + $0xb2] sm:$0xff]
      %1052 = vst.msk [vmem:[#allocation4 + $0x10] sm:$0xff] %vm406, %v1036
      %1053 = vst.msk [vmem:[#allocation4 + $0x28] sm:$0xff] %vm406, %v1037
      %1054 = vst.msk [vmem:[#allocation4 + $0x40] sm:$0xff] %vm406, %v1038
      %1055 = vst.msk [vmem:[#allocation4 + $0x58] sm:$0xff] %vm406, %v1039
      %1056 = vst.msk [vmem:[#allocation4 + $0x70] sm:$0xff] %vm406, %v1040
      %1057 = vst.msk [vmem:[#allocation4 + $0x88] sm:$0xff] %vm406, %v1041
      %1058 = vst.msk [vmem:[#allocation4 + $0xa0] sm:$0xff] %vm406, %v1042
      %1059 = vst.msk [vmem:[#allocation4 + $0xb8] sm:$0xff] %vm406, %v1043
      %1060 = vst.msk [vmem:[#allocation4 + $0xd0] sm:$0xff] %vm406, %v1044
      %1061 = vst.msk [vmem:[#allocation4 + $0xe8] sm:$0xff] %vm406, %v1045
      %1062 = vst.msk [vmem:[#allocation4 + $0x100] sm:$0xff] %vm406, %v1046
      %1063 = vst.msk [vmem:[#allocation4 + $0x118] sm:$0xff] %vm406, %v1047
      %1064 = vst.msk [vmem:[#allocation4 + $0x130] sm:$0xff] %vm406, %v1048
      %1065 = vst.msk [vmem:[#allocation4 + $0x148] sm:$0xff] %vm406, %v1049
      %1066 = vst.msk [vmem:[#allocation4 + $0x160] sm:$0xff] %vm406, %v1050
      %1067 = vst.msk [vmem:[#allocation4 + $0x178] sm:$0xff] %vm406, %v1051
      %v1068 = vld [vmem:[#allocation4] sm:$0xff]
      %v1069 = vld [vmem:[#allocation4 + $0x8] sm:$0xff]
      %v1070 = vld [vmem:[#allocation4 + $0x10] sm:$0xff]
      %v1071 = vld [vmem:[#allocation4 + $0x18] sm:$0xff]
      %v1072 = vld [vmem:[#allocation4 + $0x20] sm:$0xff]
      %v1073 = vld [vmem:[#allocation4 + $0x28] sm:$0xff]
      %v1074 = vld [vmem:[#allocation4 + $0x30] sm:$0xff]
      %v1075 = vld [vmem:[#allocation4 + $0x38] sm:$0xff]
      %v1076 = vld [vmem:[#allocation4 + $0x40] sm:$0xff]
      %v1077 = vld [vmem:[#allocation4 + $0x48] sm:$0xff]
      %v1078 = vld [vmem:[#allocation4 + $0x50] sm:$0xff]
      %v1079 = vld [vmem:[#allocation4 + $0x58] sm:$0xff]
      %v1080 = vld [vmem:[#allocation4 + $0x60] sm:$0xff]
      %v1081 = vld [vmem:[#allocation4 + $0x68] sm:$0xff]
      %v1082 = vld [vmem:[#allocation4 + $0x70] sm:$0xff]
      %v1083 = vld [vmem:[#allocation4 + $0x78] sm:$0xff]
      %v1084 = vld [vmem:[#allocation4 + $0x80] sm:$0xff]
      %v1085 = vld [vmem:[#allocation4 + $0x88] sm:$0xff]
      %v1086 = vld [vmem:[#allocation4 + $0x90] sm:$0xff]
      %v1087 = vld [vmem:[#allocation4 + $0x98] sm:$0xff]
      %v1088 = vld [vmem:[#allocation4 + $0xa0] sm:$0xff]
      %v1089 = vld [vmem:[#allocation4 + $0xa8] sm:$0xff]
      %v1090 = vld [vmem:[#allocation4 + $0xb0] sm:$0xff]
      %v1091 = vld [vmem:[#allocation4 + $0xb8] sm:$0xff]
      %v1092 = vld [vmem:[#allocation4 + $0xc0] sm:$0xff]
      %v1093 = vld [vmem:[#allocation4 + $0xc8] sm:$0xff]
      %v1094 = vld [vmem:[#allocation4 + $0xd0] sm:$0xff]
      %v1095 = vld [vmem:[#allocation4 + $0xd8] sm:$0xff]
      %v1096 = vld [vmem:[#allocation4 + $0xe0] sm:$0xff]
      %v1097 = vld [vmem:[#allocation4 + $0xe8] sm:$0xff]
      %v1098 = vld [vmem:[#allocation4 + $0xf0] sm:$0xff]
      %v1099 = vld [vmem:[#allocation4 + $0xf8] sm:$0xff]
      %v1100 = vld [vmem:[#allocation4 + $0x100] sm:$0xff]
      %v1101 = vld [vmem:[#allocation4 + $0x108] sm:$0xff]
      %v1102 = vld [vmem:[#allocation4 + $0x110] sm:$0xff]
      %v1103 = vld [vmem:[#allocation4 + $0x118] sm:$0xff]
      %v1104 = vld [vmem:[#allocation4 + $0x120] sm:$0xff]
      %v1105 = vld [vmem:[#allocation4 + $0x128] sm:$0xff]
      %v1106 = vld [vmem:[#allocation4 + $0x130] sm:$0xff]
      %v1107 = vld [vmem:[#allocation4 + $0x138] sm:$0xff]
      %v1108 = vld [vmem:[#allocation4 + $0x140] sm:$0xff]
      %v1109 = vld [vmem:[#allocation4 + $0x148] sm:$0xff]
      %v1110 = vld [vmem:[#allocation4 + $0x150] sm:$0xff]
      %v1111 = vld [vmem:[#allocation4 + $0x158] sm:$0xff]
      %v1112 = vld [vmem:[#allocation4 + $0x160] sm:$0xff]
      %v1113 = vld [vmem:[#allocation4 + $0x168] sm:$0xff]
      %v1114 = vld [vmem:[#allocation4 + $0x170] sm:$0xff]
      %v1115 = vld [vmem:[#allocation4 + $0x178] sm:$0xff]
      %v1116 = vpack.c.bf16 %v1071, %v1068
      %v1117 = vpack.c.bf16 %v1072, %v1069
      %v1118 = vpack.c.bf16 %v1073, %v1070
      %v1119 = vpack.c.bf16 %v1077, %v1074
      %v1120 = vpack.c.bf16 %v1078, %v1075
      %v1121 = vpack.c.bf16 %v1079, %v1076
      %v1122 = vpack.c.bf16 %v1083, %v1080
      %v1123 = vpack.c.bf16 %v1084, %v1081
      %v1124 = vpack.c.bf16 %v1085, %v1082
      %v1125 = vpack.c.bf16 %v1089, %v1086
      %v1126 = vpack.c.bf16 %v1090, %v1087
      %v1127 = vpack.c.bf16 %v1091, %v1088
      %v1128 = vpack.c.bf16 %v1095, %v1092
      %v1129 = vpack.c.bf16 %v1096, %v1093
      %v1130 = vpack.c.bf16 %v1097, %v1094
      %v1131 = vpack.c.bf16 %v1101, %v1098
      %v1132 = vpack.c.bf16 %v1102, %v1099
      %v1133 = vpack.c.bf16 %v1103, %v1100
      %v1134 = vpack.c.bf16 %v1107, %v1104
      %v1135 = vpack.c.bf16 %v1108, %v1105
      %v1136 = vpack.c.bf16 %v1109, %v1106
      %v1137 = vpack.c.bf16 %v1113, %v1110
      %v1138 = vpack.c.bf16 %v1114, %v1111
      %v1139 = vpack.c.bf16 %v1115, %v1112
      %v1140 = vld [vmem:[%s251] sm:$0xff]
      %v1141 = vld [vmem:[%s251 + $0x8] sm:$0xff]
      %v1142 = vld [vmem:[%s251 + $0x10] sm:$0xff]
      %v1143 = vld [vmem:[%s251 + $0x18] sm:$0xff]
      %v1144 = vld [vmem:[%s251 + $0x20] sm:$0xff]
      %v1145 = vld [vmem:[%s251 + $0x28] sm:$0xff]
      %v1146 = vld [vmem:[%s251 + $0x30] sm:$0xff]
      %v1147 = vld [vmem:[%s251 + $0x38] sm:$0xff]
      %v1148 = vld [vmem:[%s251 + $0x40] sm:$0xff]
      %v1149 = vld [vmem:[%s251 + $0x48] sm:$0xff]
      %v1150 = vld [vmem:[%s251 + $0x50] sm:$0xff]
      %v1151 = vld [vmem:[%s251 + $0x58] sm:$0xff]
      %v1152 = vld [vmem:[%s251 + $0x60] sm:$0xff]
      %v1153 = vld [vmem:[%s251 + $0x68] sm:$0xff]
      %v1154 = vld [vmem:[%s251 + $0x70] sm:$0xff]
      %v1155 = vld [vmem:[%s251 + $0x78] sm:$0xff]
      %v1192 = vunpack.c.l.b16 %v354
      %v1193 = vunpack.c.l.b16 %v355
      %v1194 = vunpack.c.l.b16 %v356
      %v1195 = vunpack.c.l.b16 %v357
      %v1196 = vunpack.c.l.b16 %v358
      %v1197 = vunpack.c.l.b16 %v359
      %v1198 = vunpack.c.l.b16 %v360
      %v1199 = vunpack.c.l.b16 %v361
      %v1200 = vunpack.c.l.b16 %v362
      %v1201 = vunpack.c.l.b16 %v363
      %v1202 = vunpack.c.l.b16 %v364
      %v1203 = vunpack.c.l.b16 %v365
      %v1204 = vunpack.c.l.b16 %v366
      %v1205 = vunpack.c.l.b16 %v367
      %v1206 = vunpack.c.l.b16 %v368
      %v1207 = vunpack.c.l.b16 %v369
      %v1208 = vunpack.c.l.b16 %v370
      %v1209 = vunpack.c.l.b16 %v371
      %v1210 = vunpack.c.l.b16 %v372
      %v1211 = vunpack.c.l.b16 %v373
      %v1212 = vunpack.c.l.b16 %v374
      %v1213 = vunpack.c.l.b16 %v375
      %v1214 = vunpack.c.l.b16 %v376
      %v1215 = vunpack.c.l.b16 %v377
      %v1216 = vunpack.c.l.b16 %v378
      %v1217 = vunpack.c.l.b16 %v379
      %v1218 = vunpack.c.l.b16 %v380
      %v1219 = vunpack.c.l.b16 %v381
      %v1220 = vunpack.c.l.b16 %v382
      %v1221 = vunpack.c.l.b16 %v383
      %v1222 = vunpack.c.l.b16 %v384
      %v1223 = vunpack.c.l.b16 %v385
      %v1224 = vunpack.c.l.b16 %v386
      %v1225 = vunpack.c.l.b16 %v387
      %v1226 = vunpack.c.l.b16 %v388
      %v1227 = vunpack.c.l.b16 %v389
      %v1228 = vpack.c.b16 %v1193, %v1192
      %v1229 = vpack.c.b16 %v1195, %v1194
      %v1230 = vpack.c.b16 %v1197, %v1196
      %v1231 = vpack.c.b16 %v1199, %v1198
      %v1232 = vpack.c.b16 %v1201, %v1200
      %v1233 = vpack.c.b16 %v1203, %v1202
      %v1234 = vpack.c.b16 %v1205, %v1204
      %v1235 = vpack.c.b16 %v1207, %v1206
      %v1236 = vpack.c.b16 %v1209, %v1208
      %v1237 = vpack.c.b16 %v1211, %v1210
      %v1238 = vpack.c.b16 %v1213, %v1212
      %v1239 = vpack.c.b16 %v1215, %v1214
      %v1240 = vpack.c.b16 %v1217, %v1216
      %v1241 = vpack.c.b16 %v1219, %v1218
      %v1242 = vpack.c.b16 %v1221, %v1220
      %v1243 = vpack.c.b16 %v1223, %v1222
      %v1244 = vpack.c.b16 %v1225, %v1224
      %v1245 = vpack.c.b16 %v1227, %v1226
      %v1265 = vsel %vm406, %v1118, 0
      %v1268 = vsel %vm406, %v1121, 0
      %v1271 = vsel %vm406, %v1124, 0
      %v1274 = vsel %vm406, %v1127, 0
      %v1277 = vsel %vm406, %v1130, 0
      %v1280 = vsel %vm406, %v1133, 0
      %v1283 = vsel %vm406, %v1136, 0
      %v1286 = vsel %vm406, %v1139, 0
      %1288 = vmatprep.subr.bf16.mxu0 0
      %1289 = vmatpush1.bf16.msra.mxu0 %v1235
      %1290 = vmatprep.subr.bf16.mxu0 0
      %1291 = vmatpush1.bf16.msra.mxu0 %v1234
      %1292 = vmatprep.subr.bf16.mxu0 0
      %1293 = vmatpush1.bf16.msra.mxu0 %v1233
      %1294 = vmatprep.subr.bf16.mxu0 0
      %1295 = vmatpush1.bf16.msra.mxu0 %v1232
      %1296 = vmatprep.subr.bf16.mxu0 0
      %1297 = vmatpush1.bf16.msra.mxu0 %v1231
      %1298 = vmatprep.subr.bf16.mxu0 0
      %1299 = vmatpush1.bf16.msra.mxu0 %v1230
      %1300 = vmatprep.subr.bf16.mxu0 0
      %1301 = vmatpush1.bf16.msra.mxu0 %v1229
      %1302 = vmatprep.subr.bf16.mxu0 0
      %1303 = vmatpush1.bf16.msra.mxu0 %v1228
      %1304 = vmatprep.subr.bf16.mxu0 0
      %1305 = vmatpush2.bf16.msra.mxu0 %v1243
      %1306 = vmatprep.subr.bf16.mxu0 0
      %1307 = vmatpush2.bf16.msra.mxu0 %v1242
      %1308 = vmatprep.subr.bf16.mxu0 0
      %1309 = vmatpush2.bf16.msra.mxu0 %v1241
      %1310 = vmatprep.subr.bf16.mxu0 0
      %1311 = vmatpush2.bf16.msra.mxu0 %v1240
      %1312 = vmatprep.subr.bf16.mxu0 0
      %1313 = vmatpush2.bf16.msra.mxu0 %v1239
      %1314 = vmatprep.subr.bf16.mxu0 0
      %1315 = vmatpush2.bf16.msra.mxu0 %v1238
      %1316 = vmatprep.subr.bf16.mxu0 0
      %1317 = vmatpush2.bf16.msra.mxu0 %v1237
      %1318 = vmatprep.subr.bf16.mxu0 0
      %1319 = vmatpush2.bf16.msra.mxu0 %v1236
      %1320 = vmatprep.mubr.bf16.mxu0 %v1117
      %1321 = vmatmul.mubr.bf16.gmra.mxu0 %v1116
      %v1322 = vpop.f32.mrf.mxu0
      %v1323 = vadd.f32 %v1140, %v1322
      %v1324 = vpop.f32.mrf.mxu0
      %v1325 = vpop.f32.mrf.mxu0
      %v1326 = vadd.f32 %v1141, %v1325
      %v1327 = vpop.f32.mrf.mxu0
      %1328 = vmatprep.mubr.bf16.mxu0 %v1120
      %1329 = vmatmul.mubr.bf16.gmra.mxu0 %v1119
      %v1330 = vpop.f32.mrf.mxu0
      %v1331 = vadd.f32 %v1142, %v1330
      %v1332 = vpop.f32.mrf.mxu0
      %v1333 = vpop.f32.mrf.mxu0
      %v1334 = vadd.f32 %v1143, %v1333
      %v1335 = vpop.f32.mrf.mxu0
      %1336 = vmatprep.mubr.bf16.mxu0 %v1123
      %1337 = vmatmul.mubr.bf16.gmra.mxu0 %v1122
      %v1338 = vpop.f32.mrf.mxu0
      %v1339 = vadd.f32 %v1144, %v1338
      %v1340 = vpop.f32.mrf.mxu0
      %v1341 = vpop.f32.mrf.mxu0
      %v1342 = vadd.f32 %v1145, %v1341
      %v1343 = vpop.f32.mrf.mxu0
      %1344 = vmatprep.mubr.bf16.mxu0 %v1126
      %1345 = vmatmul.mubr.bf16.gmra.mxu0 %v1125
      %v1346 = vpop.f32.mrf.mxu0
      %v1347 = vadd.f32 %v1146, %v1346
      %v1348 = vpop.f32.mrf.mxu0
      %v1349 = vpop.f32.mrf.mxu0
      %v1350 = vadd.f32 %v1147, %v1349
      %v1351 = vpop.f32.mrf.mxu0
      %1352 = vmatprep.mubr.bf16.mxu0 %v1129
      %1353 = vmatmul.mubr.bf16.gmra.mxu0 %v1128
      %v1354 = vpop.f32.mrf.mxu0
      %v1355 = vadd.f32 %v1148, %v1354
      %v1356 = vpop.f32.mrf.mxu0
      %v1357 = vpop.f32.mrf.mxu0
      %v1358 = vadd.f32 %v1149, %v1357
      %v1359 = vpop.f32.mrf.mxu0
      %1360 = vmatprep.mubr.bf16.mxu0 %v1132
      %1361 = vmatmul.mubr.bf16.gmra.mxu0 %v1131
      %v1362 = vpop.f32.mrf.mxu0
      %v1363 = vadd.f32 %v1150, %v1362
      %v1364 = vpop.f32.mrf.mxu0
      %v1365 = vpop.f32.mrf.mxu0
      %v1366 = vadd.f32 %v1151, %v1365
      %v1367 = vpop.f32.mrf.mxu0
      %1368 = vmatprep.mubr.bf16.mxu0 %v1135
      %1369 = vmatmul.mubr.bf16.gmra.mxu0 %v1134
      %v1370 = vpop.f32.mrf.mxu0
      %v1371 = vadd.f32 %v1152, %v1370
      %v1372 = vpop.f32.mrf.mxu0
      %v1373 = vpop.f32.mrf.mxu0
      %v1374 = vadd.f32 %v1153, %v1373
      %v1375 = vpop.f32.mrf.mxu0
      %1376 = vmatprep.mubr.bf16.mxu0 %v1138
      %1377 = vmatmul.mubr.bf16.gmra.mxu0 %v1137
      %v1378 = vpop.f32.mrf.mxu0
      %v1379 = vadd.f32 %v1154, %v1378
      %v1380 = vpop.f32.mrf.mxu0
      %v1381 = vpop.f32.mrf.mxu0
      %v1382 = vadd.f32 %v1155, %v1381
      %v1383 = vpop.f32.mrf.mxu0
      %1384 = vdwg.mxu0
      %1385 = vmatprep.subr.bf16.mxu0 0
      %1386 = vmatpush1.bf16.msra.mxu0 0
      %1387 = vmatprep.subr.bf16.mxu0 0
      %1388 = vmatpush1.bf16.msra.mxu0 0
      %1389 = vmatprep.subr.bf16.mxu0 0
      %1390 = vmatpush1.bf16.msra.mxu0 0
      %1391 = vmatprep.subr.bf16.mxu0 0
      %1392 = vmatpush1.bf16.msra.mxu0 0
      %1393 = vmatprep.subr.bf16.mxu0 0
      %1394 = vmatpush1.bf16.msra.mxu0 0
      %1395 = vmatprep.subr.bf16.mxu0 0
      %1396 = vmatpush1.bf16.msra.mxu0 0
      %1397 = vmatprep.subr.bf16.mxu0 0
      %1398 = vmatpush1.bf16.msra.mxu0 %v1245
      %1399 = vmatprep.subr.bf16.mxu0 0
      %1400 = vmatpush1.bf16.msra.mxu0 %v1244
      %1401 = vmatprep.subr.bf16.mxu0 0
      %1402 = vmatpush2.bf16.msra.mxu0 0
      %1403 = vmatprep.subr.bf16.mxu0 0
      %1404 = vmatpush2.bf16.msra.mxu0 0
      %1405 = vmatprep.subr.bf16.mxu0 0
      %1406 = vmatpush2.bf16.msra.mxu0 0
      %1407 = vmatprep.subr.bf16.mxu0 0
      %1408 = vmatpush2.bf16.msra.mxu0 0
      %1409 = vmatprep.subr.bf16.mxu0 0
      %1410 = vmatpush2.bf16.msra.mxu0 0
      %1411 = vmatprep.subr.bf16.mxu0 0
      %1412 = vmatpush2.bf16.msra.mxu0 0
      %1413 = vmatprep.subr.bf16.mxu0 0
      %1414 = vmatpush2.bf16.msra.mxu0 0
      %1415 = vmatprep.subr.bf16.mxu0 0
      %1416 = vmatpush2.bf16.msra.mxu0 0
      %1417 = vmatprep.mubr.bf16.mxu0 0
      %1418 = vmatmul.mubr.bf16.gmra.mxu0 %v1265
      %v1419 = vpop.f32.mrf.mxu0
      %v1420 = vadd.f32 %v1323, %v1419
      %v1421 = vpop.f32.mrf.mxu0
      %v1422 = vpop.f32.mrf.mxu0
      %v1423 = vadd.f32 %v1326, %v1422
      %v1424 = vpop.f32.mrf.mxu0
      %1425 = vmatprep.mubr.bf16.mxu0 0
      %1426 = vmatmul.mubr.bf16.gmra.mxu0 %v1268
      %v1427 = vpop.f32.mrf.mxu0
      %v1428 = vadd.f32 %v1331, %v1427
      %v1429 = vpop.f32.mrf.mxu0
      %v1430 = vpop.f32.mrf.mxu0
      %v1431 = vadd.f32 %v1334, %v1430
      %v1432 = vpop.f32.mrf.mxu0
      %1433 = vmatprep.mubr.bf16.mxu0 0
      %1434 = vmatmul.mubr.bf16.gmra.mxu0 %v1271
      %v1435 = vpop.f32.mrf.mxu0
      %v1436 = vadd.f32 %v1339, %v1435
      %v1437 = vpop.f32.mrf.mxu0
      %v1438 = vpop.f32.mrf.mxu0
      %v1439 = vadd.f32 %v1342, %v1438
      %v1440 = vpop.f32.mrf.mxu0
      %1441 = vmatprep.mubr.bf16.mxu0 0
      %1442 = vmatmul.mubr.bf16.gmra.mxu0 %v1274
      %v1443 = vpop.f32.mrf.mxu0
      %v1444 = vadd.f32 %v1347, %v1443
      %v1445 = vpop.f32.mrf.mxu0
      %v1446 = vpop.f32.mrf.mxu0
      %v1447 = vadd.f32 %v1350, %v1446
      %v1448 = vpop.f32.mrf.mxu0
      %1449 = vmatprep.mubr.bf16.mxu0 0
      %1450 = vmatmul.mubr.bf16.gmra.mxu0 %v1277
      %v1451 = vpop.f32.mrf.mxu0
      %v1452 = vadd.f32 %v1355, %v1451
      %v1453 = vpop.f32.mrf.mxu0
      %v1454 = vpop.f32.mrf.mxu0
      %v1455 = vadd.f32 %v1358, %v1454
      %v1456 = vpop.f32.mrf.mxu0
      %1457 = vmatprep.mubr.bf16.mxu0 0
      %1458 = vmatmul.mubr.bf16.gmra.mxu0 %v1280
      %v1459 = vpop.f32.mrf.mxu0
      %v1460 = vadd.f32 %v1363, %v1459
      %v1461 = vpop.f32.mrf.mxu0
      %v1462 = vpop.f32.mrf.mxu0
      %v1463 = vadd.f32 %v1366, %v1462
      %v1464 = vpop.f32.mrf.mxu0
      %1465 = vmatprep.mubr.bf16.mxu0 0
      %1466 = vmatmul.mubr.bf16.gmra.mxu0 %v1283
      %v1467 = vpop.f32.mrf.mxu0
      %v1468 = vadd.f32 %v1371, %v1467
      %v1469 = vpop.f32.mrf.mxu0
      %v1470 = vpop.f32.mrf.mxu0
      %v1471 = vadd.f32 %v1374, %v1470
      %v1472 = vpop.f32.mrf.mxu0
      %1473 = vmatprep.mubr.bf16.mxu0 0
      %1474 = vmatmul.mubr.bf16.gmra.mxu0 %v1286
      %v1475 = vpop.f32.mrf.mxu0
      %v1476 = vadd.f32 %v1379, %v1475
      %v1477 = vpop.f32.mrf.mxu0
      %v1478 = vpop.f32.mrf.mxu0
      %v1479 = vadd.f32 %v1382, %v1478
      %v1480 = vpop.f32.mrf.mxu0
      %1481 = vdwg.mxu0
      %v1482 = vld [vmem:[#allocation3] sm:$0xff]
      %v1483 = vld [vmem:[#allocation3 + $0x8] sm:$0xff]
      %v1484 = vld [vmem:[#allocation3 + $0x10] sm:$0xff]
      %v1485 = vld [vmem:[#allocation3 + $0x18] sm:$0xff]
      %v1486 = vld [vmem:[#allocation3 + $0x20] sm:$0xff]
      %v1487 = vld [vmem:[#allocation3 + $0x28] sm:$0xff]
      %v1488 = vld [vmem:[#allocation3 + $0x30] sm:$0xff]
      %v1489 = vld [vmem:[#allocation3 + $0x38] sm:$0xff]
      %v1490 = vld [vmem:[#allocation3 + $0x40] sm:$0xff]
      %v1491 = vld [vmem:[#allocation3 + $0x48] sm:$0xff]
      %v1492 = vld [vmem:[#allocation3 + $0x50] sm:$0xff]
      %v1493 = vld [vmem:[#allocation3 + $0x58] sm:$0xff]
      %v1494 = vld [vmem:[#allocation3 + $0x60] sm:$0xff]
      %v1495 = vld [vmem:[#allocation3 + $0x68] sm:$0xff]
      %v1496 = vld [vmem:[#allocation3 + $0x70] sm:$0xff]
      %v1497 = vld [vmem:[#allocation3 + $0x78] sm:$0xff]
      %v1498 = vld [vmem:[%s2] sm:$0xff]
      %v1499 = vld [vmem:[%s2 + $0x8] sm:$0xff]
      %v1500 = vld [vmem:[%s2 + $0x10] sm:$0xff]
      %v1501 = vld [vmem:[%s2 + $0x18] sm:$0xff]
      %v1502 = vld [vmem:[%s2 + $0x20] sm:$0xff]
      %v1503 = vld [vmem:[%s2 + $0x28] sm:$0xff]
      %v1504 = vld [vmem:[%s2 + $0x30] sm:$0xff]
      %v1505 = vld [vmem:[%s2 + $0x38] sm:$0xff]
      %v1506 = vld [vmem:[%s2 + $0x40] sm:$0xff]
      %v1507 = vld [vmem:[%s2 + $0x48] sm:$0xff]
      %v1508 = vld [vmem:[%s2 + $0x50] sm:$0xff]
      %v1509 = vld [vmem:[%s2 + $0x58] sm:$0xff]
      %v1510 = vld [vmem:[%s2 + $0x60] sm:$0xff]
      %v1511 = vld [vmem:[%s2 + $0x68] sm:$0xff]
      %v1512 = vld [vmem:[%s2 + $0x70] sm:$0xff]
      %v1513 = vld [vmem:[%s2 + $0x78] sm:$0xff]
      %v1514 = vmul.f32 %v1498, %v1482
      %v1515 = vmul.f32 %v1499, %v1483
      %v1516 = vmul.f32 %v1500, %v1484
      %v1517 = vmul.f32 %v1501, %v1485
      %v1518 = vmul.f32 %v1502, %v1486
      %v1519 = vmul.f32 %v1503, %v1487
      %v1520 = vmul.f32 %v1504, %v1488
      %v1521 = vmul.f32 %v1505, %v1489
      %v1522 = vmul.f32 %v1506, %v1490
      %v1523 = vmul.f32 %v1507, %v1491
      %v1524 = vmul.f32 %v1508, %v1492
      %v1525 = vmul.f32 %v1509, %v1493
      %v1526 = vmul.f32 %v1510, %v1494
      %v1527 = vmul.f32 %v1511, %v1495
      %v1528 = vmul.f32 %v1512, %v1496
      %v1529 = vmul.f32 %v1513, %v1497
      %v1530 = vadd.f32 %v1420, %v1514
      %v1531 = vadd.f32 %v1423, %v1515
      %v1532 = vadd.f32 %v1428, %v1516
      %v1533 = vadd.f32 %v1431, %v1517
      %v1534 = vadd.f32 %v1436, %v1518
      %v1535 = vadd.f32 %v1439, %v1519
      %v1536 = vadd.f32 %v1444, %v1520
      %v1537 = vadd.f32 %v1447, %v1521
      %v1538 = vadd.f32 %v1452, %v1522
      %v1539 = vadd.f32 %v1455, %v1523
      %v1540 = vadd.f32 %v1460, %v1524
      %v1541 = vadd.f32 %v1463, %v1525
      %v1542 = vadd.f32 %v1468, %v1526
      %v1543 = vadd.f32 %v1471, %v1527
      %v1544 = vadd.f32 %v1476, %v1528
      %v1545 = vadd.f32 %v1479, %v1529
      %v1546 = vxor.u32 %v1530, 2147483648
      %v1547 = vxor.u32 %v1531, 2147483648
      %v1548 = vxor.u32 %v1532, 2147483648
      %v1549 = vxor.u32 %v1533, 2147483648
      %v1550 = vxor.u32 %v1534, 2147483648
      %v1551 = vxor.u32 %v1535, 2147483648
      %v1552 = vxor.u32 %v1536, 2147483648
      %v1553 = vxor.u32 %v1537, 2147483648
      %v1554 = vxor.u32 %v1538, 2147483648
      %v1555 = vxor.u32 %v1539, 2147483648
      %v1556 = vxor.u32 %v1540, 2147483648
      %v1557 = vxor.u32 %v1541, 2147483648
      %v1558 = vxor.u32 %v1542, 2147483648
      %v1559 = vxor.u32 %v1543, 2147483648
      %v1560 = vxor.u32 %v1544, 2147483648
      %v1561 = vxor.u32 %v1545, 2147483648
      %v1562 = vmul.f32 %v1546, 1.442695
      %v1563 = vpow.pop %v1562
      %v1564 = vmul.f32 %v1547, 1.442695
      %v1565 = vpow.pop %v1564
      %v1566 = vmul.f32 %v1548, 1.442695
      %v1567 = vpow.pop %v1566
      %v1568 = vmul.f32 %v1549, 1.442695
      %v1569 = vpow.pop %v1568
      %v1570 = vmul.f32 %v1550, 1.442695
      %v1571 = vpow.pop %v1570
      %v1572 = vmul.f32 %v1551, 1.442695
      %v1573 = vpow.pop %v1572
      %v1574 = vmul.f32 %v1552, 1.442695
      %v1575 = vpow.pop %v1574
      %v1576 = vmul.f32 %v1553, 1.442695
      %v1577 = vpow.pop %v1576
      %v1578 = vmul.f32 %v1554, 1.442695
      %v1579 = vpow.pop %v1578
      %v1580 = vmul.f32 %v1555, 1.442695
      %v1581 = vpow.pop %v1580
      %v1582 = vmul.f32 %v1556, 1.442695
      %v1583 = vpow.pop %v1582
      %v1584 = vmul.f32 %v1557, 1.442695
      %v1585 = vpow.pop %v1584
      %v1586 = vmul.f32 %v1558, 1.442695
      %v1587 = vpow.pop %v1586
      %v1588 = vmul.f32 %v1559, 1.442695
      %v1589 = vpow.pop %v1588
      %v1590 = vmul.f32 %v1560, 1.442695
      %v1591 = vpow.pop %v1590
      %v1592 = vmul.f32 %v1561, 1.442695
      %v1593 = vpow.pop %v1592
      %v1594 = vadd.f32 %v1563, 1.0
      %v1595 = vadd.f32 %v1565, 1.0
      %v1596 = vadd.f32 %v1567, 1.0
      %v1597 = vadd.f32 %v1569, 1.0
      %v1598 = vadd.f32 %v1571, 1.0
      %v1599 = vadd.f32 %v1573, 1.0
      %v1600 = vadd.f32 %v1575, 1.0
      %v1601 = vadd.f32 %v1577, 1.0
      %v1602 = vadd.f32 %v1579, 1.0
      %v1603 = vadd.f32 %v1581, 1.0
      %v1604 = vadd.f32 %v1583, 1.0
      %v1605 = vadd.f32 %v1585, 1.0
      %v1606 = vadd.f32 %v1587, 1.0
      %v1607 = vadd.f32 %v1589, 1.0
      %v1608 = vadd.f32 %v1591, 1.0
      %v1609 = vadd.f32 %v1593, 1.0
      %v1610 = vrcp.pop %v1594
      %v1611 = vmul.f32 1.0, %v1610
      %v1612 = vrcp.pop %v1595
      %v1613 = vmul.f32 1.0, %v1612
      %v1614 = vrcp.pop %v1596
      %v1615 = vmul.f32 1.0, %v1614
      %v1616 = vrcp.pop %v1597
      %v1617 = vmul.f32 1.0, %v1616
      %v1618 = vrcp.pop %v1598
      %v1619 = vmul.f32 1.0, %v1618
      %v1620 = vrcp.pop %v1599
      %v1621 = vmul.f32 1.0, %v1620
      %v1622 = vrcp.pop %v1600
      %v1623 = vmul.f32 1.0, %v1622
      %v1624 = vrcp.pop %v1601
      %v1625 = vmul.f32 1.0, %v1624
      %v1626 = vrcp.pop %v1602
      %v1627 = vmul.f32 1.0, %v1626
      %v1628 = vrcp.pop %v1603
      %v1629 = vmul.f32 1.0, %v1628
      %v1630 = vrcp.pop %v1604
      %v1631 = vmul.f32 1.0, %v1630
      %v1632 = vrcp.pop %v1605
      %v1633 = vmul.f32 1.0, %v1632
      %v1634 = vrcp.pop %v1606
      %v1635 = vmul.f32 1.0, %v1634
      %v1636 = vrcp.pop %v1607
      %v1637 = vmul.f32 1.0, %v1636
      %v1638 = vrcp.pop %v1608
      %v1639 = vmul.f32 1.0, %v1638
      %v1640 = vrcp.pop %v1609
      %v1641 = vmul.f32 1.0, %v1640
      %v1642 = vld [vmem:[%s3] sm:$0xff]
      %v1643 = vld [vmem:[%s3 + $0x8] sm:$0xff]
      %v1644 = vld [vmem:[%s3 + $0x10] sm:$0xff]
      %v1645 = vld [vmem:[%s3 + $0x18] sm:$0xff]
      %v1646 = vld [vmem:[%s3 + $0x20] sm:$0xff]
      %v1647 = vld [vmem:[%s3 + $0x28] sm:$0xff]
      %v1648 = vld [vmem:[%s3 + $0x30] sm:$0xff]
      %v1649 = vld [vmem:[%s3 + $0x38] sm:$0xff]
      %v1650 = vld [vmem:[%s3 + $0x40] sm:$0xff]
      %v1651 = vld [vmem:[%s3 + $0x48] sm:$0xff]
      %v1652 = vld [vmem:[%s3 + $0x50] sm:$0xff]
      %v1653 = vld [vmem:[%s3 + $0x58] sm:$0xff]
      %v1654 = vld [vmem:[%s3 + $0x60] sm:$0xff]
      %v1655 = vld [vmem:[%s3 + $0x68] sm:$0xff]
      %v1656 = vld [vmem:[%s3 + $0x70] sm:$0xff]
      %v1657 = vld [vmem:[%s3 + $0x78] sm:$0xff]
      %v1658 = vmul.f32 %v1642, %v1482
      %v1659 = vmul.f32 %v1643, %v1483
      %v1660 = vmul.f32 %v1644, %v1484
      %v1661 = vmul.f32 %v1645, %v1485
      %v1662 = vmul.f32 %v1646, %v1486
      %v1663 = vmul.f32 %v1647, %v1487
      %v1664 = vmul.f32 %v1648, %v1488
      %v1665 = vmul.f32 %v1649, %v1489
      %v1666 = vmul.f32 %v1650, %v1490
      %v1667 = vmul.f32 %v1651, %v1491
      %v1668 = vmul.f32 %v1652, %v1492
      %v1669 = vmul.f32 %v1653, %v1493
      %v1670 = vmul.f32 %v1654, %v1494
      %v1671 = vmul.f32 %v1655, %v1495
      %v1672 = vmul.f32 %v1656, %v1496
      %v1673 = vmul.f32 %v1657, %v1497
      %1690 = vrot.lane.b32.xlu0 %v1658, 32
      %v1691 = vpop.permute.xlu0 %1690
      %1692 = vrot.lane.b32.xlu0 %v1659, 32
      %v1693 = vpop.permute.xlu0 %1692
      %1694 = vrot.lane.b32.xlu0 %v1660, 32
      %v1695 = vpop.permute.xlu0 %1694
      %1696 = vrot.lane.b32.xlu0 %v1661, 32
      %v1697 = vpop.permute.xlu0 %1696
      %1698 = vrot.lane.b32.xlu0 %v1662, 32
      %v1699 = vpop.permute.xlu0 %1698
      %1700 = vrot.lane.b32.xlu0 %v1663, 32
      %v1701 = vpop.permute.xlu0 %1700
      %1702 = vrot.lane.b32.xlu0 %v1664, 32
      %v1703 = vpop.permute.xlu0 %1702
      %1704 = vrot.lane.b32.xlu0 %v1665, 32
      %v1705 = vpop.permute.xlu0 %1704
      %1706 = vrot.lane.b32.xlu0 %v1666, 32
      %v1707 = vpop.permute.xlu0 %1706
      %1708 = vrot.lane.b32.xlu0 %v1667, 32
      %v1709 = vpop.permute.xlu0 %1708
      %1710 = vrot.lane.b32.xlu0 %v1668, 32
      %v1711 = vpop.permute.xlu0 %1710
      %1712 = vrot.lane.b32.xlu0 %v1669, 32
      %v1713 = vpop.permute.xlu0 %1712
      %1714 = vrot.lane.b32.xlu0 %v1670, 32
      %v1715 = vpop.permute.xlu0 %1714
      %1716 = vrot.lane.b32.xlu0 %v1671, 32
      %v1717 = vpop.permute.xlu0 %1716
      %1718 = vrot.lane.b32.xlu0 %v1672, 32
      %v1719 = vpop.permute.xlu0 %1718
      %1720 = vrot.lane.b32.xlu0 %v1673, 32
      %v1721 = vpop.permute.xlu0 %1720
      %v1738 = vadd.f32 %v1420, %v1691
      %v1739 = vadd.f32 %v1423, %v1693
      %v1740 = vadd.f32 %v1428, %v1695
      %v1741 = vadd.f32 %v1431, %v1697
      %v1742 = vadd.f32 %v1436, %v1699
      %v1743 = vadd.f32 %v1439, %v1701
      %v1744 = vadd.f32 %v1444, %v1703
      %v1745 = vadd.f32 %v1447, %v1705
      %v1746 = vadd.f32 %v1452, %v1707
      %v1747 = vadd.f32 %v1455, %v1709
      %v1748 = vadd.f32 %v1460, %v1711
      %v1749 = vadd.f32 %v1463, %v1713
      %v1750 = vadd.f32 %v1468, %v1715
      %v1751 = vadd.f32 %v1471, %v1717
      %v1752 = vadd.f32 %v1476, %v1719
      %v1753 = vadd.f32 %v1479, %v1721
      %v1754 = vxor.u32 %v1738, 2147483648
      %v1755 = vxor.u32 %v1739, 2147483648
      %v1756 = vxor.u32 %v1740, 2147483648
      %v1757 = vxor.u32 %v1741, 2147483648
      %v1758 = vxor.u32 %v1742, 2147483648
      %v1759 = vxor.u32 %v1743, 2147483648
      %v1760 = vxor.u32 %v1744, 2147483648
      %v1761 = vxor.u32 %v1745, 2147483648
      %v1762 = vxor.u32 %v1746, 2147483648
      %v1763 = vxor.u32 %v1747, 2147483648
      %v1764 = vxor.u32 %v1748, 2147483648
      %v1765 = vxor.u32 %v1749, 2147483648
      %v1766 = vxor.u32 %v1750, 2147483648
      %v1767 = vxor.u32 %v1751, 2147483648
      %v1768 = vxor.u32 %v1752, 2147483648
      %v1769 = vxor.u32 %v1753, 2147483648
      %v1770 = vmul.f32 %v1754, 1.442695
      %v1771 = vpow.pop %v1770
      %v1772 = vmul.f32 %v1755, 1.442695
      %v1773 = vpow.pop %v1772
      %v1774 = vmul.f32 %v1756, 1.442695
      %v1775 = vpow.pop %v1774
      %v1776 = vmul.f32 %v1757, 1.442695
      %v1777 = vpow.pop %v1776
      %v1778 = vmul.f32 %v1758, 1.442695
      %v1779 = vpow.pop %v1778
      %v1780 = vmul.f32 %v1759, 1.442695
      %v1781 = vpow.pop %v1780
      %v1782 = vmul.f32 %v1760, 1.442695
      %v1783 = vpow.pop %v1782
      %v1784 = vmul.f32 %v1761, 1.442695
      %v1785 = vpow.pop %v1784
      %v1786 = vmul.f32 %v1762, 1.442695
      %v1787 = vpow.pop %v1786
      %v1788 = vmul.f32 %v1763, 1.442695
      %v1789 = vpow.pop %v1788
      %v1790 = vmul.f32 %v1764, 1.442695
      %v1791 = vpow.pop %v1790
      %v1792 = vmul.f32 %v1765, 1.442695
      %v1793 = vpow.pop %v1792
      %v1794 = vmul.f32 %v1766, 1.442695
      %v1795 = vpow.pop %v1794
      %v1796 = vmul.f32 %v1767, 1.442695
      %v1797 = vpow.pop %v1796
      %v1798 = vmul.f32 %v1768, 1.442695
      %v1799 = vpow.pop %v1798
      %v1800 = vmul.f32 %v1769, 1.442695
      %v1801 = vpow.pop %v1800
      %v1802 = vadd.f32 %v1771, 1.0
      %v1803 = vadd.f32 %v1773, 1.0
      %v1804 = vadd.f32 %v1775, 1.0
      %v1805 = vadd.f32 %v1777, 1.0
      %v1806 = vadd.f32 %v1779, 1.0
      %v1807 = vadd.f32 %v1781, 1.0
      %v1808 = vadd.f32 %v1783, 1.0
      %v1809 = vadd.f32 %v1785, 1.0
      %v1810 = vadd.f32 %v1787, 1.0
      %v1811 = vadd.f32 %v1789, 1.0
      %v1812 = vadd.f32 %v1791, 1.0
      %v1813 = vadd.f32 %v1793, 1.0
      %v1814 = vadd.f32 %v1795, 1.0
      %v1815 = vadd.f32 %v1797, 1.0
      %v1816 = vadd.f32 %v1799, 1.0
      %v1817 = vadd.f32 %v1801, 1.0
      %v1818 = vrcp.pop %v1802
      %v1819 = vmul.f32 1.0, %v1818
      %v1820 = vrcp.pop %v1803
      %v1821 = vmul.f32 1.0, %v1820
      %v1822 = vrcp.pop %v1804
      %v1823 = vmul.f32 1.0, %v1822
      %v1824 = vrcp.pop %v1805
      %v1825 = vmul.f32 1.0, %v1824
      %v1826 = vrcp.pop %v1806
      %v1827 = vmul.f32 1.0, %v1826
      %v1828 = vrcp.pop %v1807
      %v1829 = vmul.f32 1.0, %v1828
      %v1830 = vrcp.pop %v1808
      %v1831 = vmul.f32 1.0, %v1830
      %v1832 = vrcp.pop %v1809
      %v1833 = vmul.f32 1.0, %v1832
      %v1834 = vrcp.pop %v1810
      %v1835 = vmul.f32 1.0, %v1834
      %v1836 = vrcp.pop %v1811
      %v1837 = vmul.f32 1.0, %v1836
      %v1838 = vrcp.pop %v1812
      %v1839 = vmul.f32 1.0, %v1838
      %v1840 = vrcp.pop %v1813
      %v1841 = vmul.f32 1.0, %v1840
      %v1842 = vrcp.pop %v1814
      %v1843 = vmul.f32 1.0, %v1842
      %v1844 = vrcp.pop %v1815
      %v1845 = vmul.f32 1.0, %v1844
      %v1846 = vrcp.pop %v1816
      %v1847 = vmul.f32 1.0, %v1846
      %v1848 = vrcp.pop %v1817
      %v1849 = vmul.f32 1.0, %v1848
      %1866 = vrot.lane.b32.xlu0 %v1482, 32
      %v1867 = vpop.permute.xlu0 %1866
      %1868 = vrot.lane.b32.xlu0 %v1483, 32
      %v1869 = vpop.permute.xlu0 %1868
      %1870 = vrot.lane.b32.xlu0 %v1484, 32
      %v1871 = vpop.permute.xlu0 %1870
      %1872 = vrot.lane.b32.xlu0 %v1485, 32
      %v1873 = vpop.permute.xlu0 %1872
      %1874 = vrot.lane.b32.xlu0 %v1486, 32
      %v1875 = vpop.permute.xlu0 %1874
      %1876 = vrot.lane.b32.xlu0 %v1487, 32
      %v1877 = vpop.permute.xlu0 %1876
      %1878 = vrot.lane.b32.xlu0 %v1488, 32
      %v1879 = vpop.permute.xlu0 %1878
      %1880 = vrot.lane.b32.xlu0 %v1489, 32
      %v1881 = vpop.permute.xlu0 %1880
      %1882 = vrot.lane.b32.xlu0 %v1490, 32
      %v1883 = vpop.permute.xlu0 %1882
      %1884 = vrot.lane.b32.xlu0 %v1491, 32
      %v1885 = vpop.permute.xlu0 %1884
      %1886 = vrot.lane.b32.xlu0 %v1492, 32
      %v1887 = vpop.permute.xlu0 %1886
      %1888 = vrot.lane.b32.xlu0 %v1493, 32
      %v1889 = vpop.permute.xlu0 %1888
      %1890 = vrot.lane.b32.xlu0 %v1494, 32
      %v1891 = vpop.permute.xlu0 %1890
      %1892 = vrot.lane.b32.xlu0 %v1495, 32
      %v1893 = vpop.permute.xlu0 %1892
      %1894 = vrot.lane.b32.xlu0 %v1496, 32
      %v1895 = vpop.permute.xlu0 %1894
      %1896 = vrot.lane.b32.xlu0 %v1497, 32
      %v1897 = vpop.permute.xlu0 %1896
      %v1914 = vmul.f32 %v1819, %v1867
      %v1915 = vmul.f32 %v1821, %v1869
      %v1916 = vmul.f32 %v1823, %v1871
      %v1917 = vmul.f32 %v1825, %v1873
      %v1918 = vmul.f32 %v1827, %v1875
      %v1919 = vmul.f32 %v1829, %v1877
      %v1920 = vmul.f32 %v1831, %v1879
      %v1921 = vmul.f32 %v1833, %v1881
      %v1922 = vmul.f32 %v1835, %v1883
      %v1923 = vmul.f32 %v1837, %v1885
      %v1924 = vmul.f32 %v1839, %v1887
      %v1925 = vmul.f32 %v1841, %v1889
      %v1926 = vmul.f32 %v1843, %v1891
      %v1927 = vmul.f32 %v1845, %v1893
      %v1928 = vmul.f32 %v1847, %v1895
      %v1929 = vmul.f32 %v1849, %v1897
      %v1930 = vtanh.pop %v1420
      %v1931 = vtanh.pop %v1423
      %v1932 = vtanh.pop %v1428
      %v1933 = vtanh.pop %v1431
      %v1934 = vtanh.pop %v1436
      %v1935 = vtanh.pop %v1439
      %v1936 = vtanh.pop %v1444
      %v1937 = vtanh.pop %v1447
      %v1938 = vtanh.pop %v1452
      %v1939 = vtanh.pop %v1455
      %v1940 = vtanh.pop %v1460
      %v1941 = vtanh.pop %v1463
      %v1942 = vtanh.pop %v1468
      %v1943 = vtanh.pop %v1471
      %v1944 = vtanh.pop %v1476
      %v1945 = vtanh.pop %v1479
      %1962 = vrot.lane.b32.xlu0 %v1930, 64
      %v1963 = vpop.permute.xlu0 %1962
      %1964 = vrot.lane.b32.xlu0 %v1931, 64
      %v1965 = vpop.permute.xlu0 %1964
      %1966 = vrot.lane.b32.xlu0 %v1932, 64
      %v1967 = vpop.permute.xlu0 %1966
      %1968 = vrot.lane.b32.xlu0 %v1933, 64
      %v1969 = vpop.permute.xlu0 %1968
      %1970 = vrot.lane.b32.xlu0 %v1934, 64
      %v1971 = vpop.permute.xlu0 %1970
      %1972 = vrot.lane.b32.xlu0 %v1935, 64
      %v1973 = vpop.permute.xlu0 %1972
      %1974 = vrot.lane.b32.xlu0 %v1936, 64
      %v1975 = vpop.permute.xlu0 %1974
      %1976 = vrot.lane.b32.xlu0 %v1937, 64
      %v1977 = vpop.permute.xlu0 %1976
      %1978 = vrot.lane.b32.xlu0 %v1938, 64
      %v1979 = vpop.permute.xlu0 %1978
      %1980 = vrot.lane.b32.xlu0 %v1939, 64
      %v1981 = vpop.permute.xlu0 %1980
      %1982 = vrot.lane.b32.xlu0 %v1940, 64
      %v1983 = vpop.permute.xlu0 %1982
      %1984 = vrot.lane.b32.xlu0 %v1941, 64
      %v1985 = vpop.permute.xlu0 %1984
      %1986 = vrot.lane.b32.xlu0 %v1942, 64
      %v1987 = vpop.permute.xlu0 %1986
      %1988 = vrot.lane.b32.xlu0 %v1943, 64
      %v1989 = vpop.permute.xlu0 %1988
      %1990 = vrot.lane.b32.xlu0 %v1944, 64
      %v1991 = vpop.permute.xlu0 %1990
      %1992 = vrot.lane.b32.xlu0 %v1945, 64
      %v1993 = vpop.permute.xlu0 %1992
      %v2010 = vmul.f32 %v1611, %v1963
      %v2011 = vmul.f32 %v1613, %v1965
      %v2012 = vmul.f32 %v1615, %v1967
      %v2013 = vmul.f32 %v1617, %v1969
      %v2014 = vmul.f32 %v1619, %v1971
      %v2015 = vmul.f32 %v1621, %v1973
      %v2016 = vmul.f32 %v1623, %v1975
      %v2017 = vmul.f32 %v1625, %v1977
      %v2018 = vmul.f32 %v1627, %v1979
      %v2019 = vmul.f32 %v1629, %v1981
      %v2020 = vmul.f32 %v1631, %v1983
      %v2021 = vmul.f32 %v1633, %v1985
      %v2022 = vmul.f32 %v1635, %v1987
      %v2023 = vmul.f32 %v1637, %v1989
      %v2024 = vmul.f32 %v1639, %v1991
      %v2025 = vmul.f32 %v1641, %v1993
      %2042 = vrot.lane.b32.xlu0 %v2010, 32
      %v2043 = vpop.permute.xlu0 %2042
      %2044 = vrot.lane.b32.xlu0 %v2011, 32
      %v2045 = vpop.permute.xlu0 %2044
      %2046 = vrot.lane.b32.xlu0 %v2012, 32
      %v2047 = vpop.permute.xlu0 %2046
      %2048 = vrot.lane.b32.xlu0 %v2013, 32
      %v2049 = vpop.permute.xlu0 %2048
      %2050 = vrot.lane.b32.xlu0 %v2014, 32
      %v2051 = vpop.permute.xlu0 %2050
      %2052 = vrot.lane.b32.xlu0 %v2015, 32
      %v2053 = vpop.permute.xlu0 %2052
      %2054 = vrot.lane.b32.xlu0 %v2016, 32
      %v2055 = vpop.permute.xlu0 %2054
      %2056 = vrot.lane.b32.xlu0 %v2017, 32
      %v2057 = vpop.permute.xlu0 %2056
      %2058 = vrot.lane.b32.xlu0 %v2018, 32
      %v2059 = vpop.permute.xlu0 %2058
      %2060 = vrot.lane.b32.xlu0 %v2019, 32
      %v2061 = vpop.permute.xlu0 %2060
      %2062 = vrot.lane.b32.xlu0 %v2020, 32
      %v2063 = vpop.permute.xlu0 %2062
      %2064 = vrot.lane.b32.xlu0 %v2021, 32
      %v2065 = vpop.permute.xlu0 %2064
      %2066 = vrot.lane.b32.xlu0 %v2022, 32
      %v2067 = vpop.permute.xlu0 %2066
      %2068 = vrot.lane.b32.xlu0 %v2023, 32
      %v2069 = vpop.permute.xlu0 %2068
      %2070 = vrot.lane.b32.xlu0 %v2024, 32
      %v2071 = vpop.permute.xlu0 %2070
      %2072 = vrot.lane.b32.xlu0 %v2025, 32
      %v2073 = vpop.permute.xlu0 %2072
      %v2090 = vadd.f32 %v1914, %v2043
      %v2091 = vadd.f32 %v1915, %v2045
      %v2092 = vadd.f32 %v1916, %v2047
      %v2093 = vadd.f32 %v1917, %v2049
      %v2094 = vadd.f32 %v1918, %v2051
      %v2095 = vadd.f32 %v1919, %v2053
      %v2096 = vadd.f32 %v1920, %v2055
      %v2097 = vadd.f32 %v1921, %v2057
      %v2098 = vadd.f32 %v1922, %v2059
      %v2099 = vadd.f32 %v1923, %v2061
      %v2100 = vadd.f32 %v1924, %v2063
      %v2101 = vadd.f32 %v1925, %v2065
      %v2102 = vadd.f32 %v1926, %v2067
      %v2103 = vadd.f32 %v1927, %v2069
      %v2104 = vadd.f32 %v1928, %v2071
      %v2105 = vadd.f32 %v1929, %v2073
      %v2106 = vld [vmem:[%s4] sm:$0xff]
      %v2107 = vld [vmem:[%s4 + $0x8] sm:$0xff]
      %v2108 = vld [vmem:[%s4 + $0x10] sm:$0xff]
      %v2109 = vld [vmem:[%s4 + $0x18] sm:$0xff]
      %v2110 = vld [vmem:[%s4 + $0x20] sm:$0xff]
      %v2111 = vld [vmem:[%s4 + $0x28] sm:$0xff]
      %v2112 = vld [vmem:[%s4 + $0x30] sm:$0xff]
      %v2113 = vld [vmem:[%s4 + $0x38] sm:$0xff]
      %v2114 = vld [vmem:[%s4 + $0x40] sm:$0xff]
      %v2115 = vld [vmem:[%s4 + $0x48] sm:$0xff]
      %v2116 = vld [vmem:[%s4 + $0x50] sm:$0xff]
      %v2117 = vld [vmem:[%s4 + $0x58] sm:$0xff]
      %v2118 = vld [vmem:[%s4 + $0x60] sm:$0xff]
      %v2119 = vld [vmem:[%s4 + $0x68] sm:$0xff]
      %v2120 = vld [vmem:[%s4 + $0x70] sm:$0xff]
      %v2121 = vld [vmem:[%s4 + $0x78] sm:$0xff]
      %2138 = vrot.lane.b32.xlu0 %v2090, 96
      %v2139 = vpop.permute.xlu0 %2138
      %2140 = vrot.lane.b32.xlu0 %v2091, 96
      %v2141 = vpop.permute.xlu0 %2140
      %2142 = vrot.lane.b32.xlu0 %v2092, 96
      %v2143 = vpop.permute.xlu0 %2142
      %2144 = vrot.lane.b32.xlu0 %v2093, 96
      %v2145 = vpop.permute.xlu0 %2144
      %2146 = vrot.lane.b32.xlu0 %v2094, 96
      %v2147 = vpop.permute.xlu0 %2146
      %2148 = vrot.lane.b32.xlu0 %v2095, 96
      %v2149 = vpop.permute.xlu0 %2148
      %2150 = vrot.lane.b32.xlu0 %v2096, 96
      %v2151 = vpop.permute.xlu0 %2150
      %2152 = vrot.lane.b32.xlu0 %v2097, 96
      %v2153 = vpop.permute.xlu0 %2152
      %2154 = vrot.lane.b32.xlu0 %v2098, 96
      %v2155 = vpop.permute.xlu0 %2154
      %2156 = vrot.lane.b32.xlu0 %v2099, 96
      %v2157 = vpop.permute.xlu0 %2156
      %2158 = vrot.lane.b32.xlu0 %v2100, 96
      %v2159 = vpop.permute.xlu0 %2158
      %2160 = vrot.lane.b32.xlu0 %v2101, 96
      %v2161 = vpop.permute.xlu0 %2160
      %2162 = vrot.lane.b32.xlu0 %v2102, 96
      %v2163 = vpop.permute.xlu0 %2162
      %2164 = vrot.lane.b32.xlu0 %v2103, 96
      %v2165 = vpop.permute.xlu0 %2164
      %2166 = vrot.lane.b32.xlu0 %v2104, 96
      %v2167 = vpop.permute.xlu0 %2166
      %2168 = vrot.lane.b32.xlu0 %v2105, 96
      %v2169 = vpop.permute.xlu0 %2168
      %v2186 = vmul.f32 %v2106, %v2139
      %v2187 = vmul.f32 %v2107, %v2141
      %v2188 = vmul.f32 %v2108, %v2143
      %v2189 = vmul.f32 %v2109, %v2145
      %v2190 = vmul.f32 %v2110, %v2147
      %v2191 = vmul.f32 %v2111, %v2149
      %v2192 = vmul.f32 %v2112, %v2151
      %v2193 = vmul.f32 %v2113, %v2153
      %v2194 = vmul.f32 %v2114, %v2155
      %v2195 = vmul.f32 %v2115, %v2157
      %v2196 = vmul.f32 %v2116, %v2159
      %v2197 = vmul.f32 %v2117, %v2161
      %v2198 = vmul.f32 %v2118, %v2163
      %v2199 = vmul.f32 %v2119, %v2165
      %v2200 = vmul.f32 %v2120, %v2167
      %v2201 = vmul.f32 %v2121, %v2169
      %2218 = vrot.lane.b32.xlu0 %v2186, 96
      %v2219 = vpop.permute.xlu0 %2218
      %2220 = vrot.lane.b32.xlu0 %v2187, 96
      %v2221 = vpop.permute.xlu0 %2220
      %2222 = vrot.lane.b32.xlu0 %v2188, 96
      %v2223 = vpop.permute.xlu0 %2222
      %2224 = vrot.lane.b32.xlu0 %v2189, 96
      %v2225 = vpop.permute.xlu0 %2224
      %2226 = vrot.lane.b32.xlu0 %v2190, 96
      %v2227 = vpop.permute.xlu0 %2226
      %2228 = vrot.lane.b32.xlu0 %v2191, 96
      %v2229 = vpop.permute.xlu0 %2228
      %2230 = vrot.lane.b32.xlu0 %v2192, 96
      %v2231 = vpop.permute.xlu0 %2230
      %2232 = vrot.lane.b32.xlu0 %v2193, 96
      %v2233 = vpop.permute.xlu0 %2232
      %2234 = vrot.lane.b32.xlu0 %v2194, 96
      %v2235 = vpop.permute.xlu0 %2234
      %2236 = vrot.lane.b32.xlu0 %v2195, 96
      %v2237 = vpop.permute.xlu0 %2236
      %2238 = vrot.lane.b32.xlu0 %v2196, 96
      %v2239 = vpop.permute.xlu0 %2238
      %2240 = vrot.lane.b32.xlu0 %v2197, 96
      %v2241 = vpop.permute.xlu0 %2240
      %2242 = vrot.lane.b32.xlu0 %v2198, 96
      %v2243 = vpop.permute.xlu0 %2242
      %2244 = vrot.lane.b32.xlu0 %v2199, 96
      %v2245 = vpop.permute.xlu0 %2244
      %2246 = vrot.lane.b32.xlu0 %v2200, 96
      %v2247 = vpop.permute.xlu0 %2246
      %2248 = vrot.lane.b32.xlu0 %v2201, 96
      %v2249 = vpop.permute.xlu0 %2248
      %v2266 = vadd.f32 %v1420, %v2219
      %v2267 = vadd.f32 %v1423, %v2221
      %v2268 = vadd.f32 %v1428, %v2223
      %v2269 = vadd.f32 %v1431, %v2225
      %v2270 = vadd.f32 %v1436, %v2227
      %v2271 = vadd.f32 %v1439, %v2229
      %v2272 = vadd.f32 %v1444, %v2231
      %v2273 = vadd.f32 %v1447, %v2233
      %v2274 = vadd.f32 %v1452, %v2235
      %v2275 = vadd.f32 %v1455, %v2237
      %v2276 = vadd.f32 %v1460, %v2239
      %v2277 = vadd.f32 %v1463, %v2241
      %v2278 = vadd.f32 %v1468, %v2243
      %v2279 = vadd.f32 %v1471, %v2245
      %v2280 = vadd.f32 %v1476, %v2247
      %v2281 = vadd.f32 %v1479, %v2249
      %v2282 = vxor.u32 %v2266, 2147483648
      %v2283 = vxor.u32 %v2267, 2147483648
      %v2284 = vxor.u32 %v2268, 2147483648
      %v2285 = vxor.u32 %v2269, 2147483648
      %v2286 = vxor.u32 %v2270, 2147483648
      %v2287 = vxor.u32 %v2271, 2147483648
      %v2288 = vxor.u32 %v2272, 2147483648
      %v2289 = vxor.u32 %v2273, 2147483648
      %v2290 = vxor.u32 %v2274, 2147483648
      %v2291 = vxor.u32 %v2275, 2147483648
      %v2292 = vxor.u32 %v2276, 2147483648
      %v2293 = vxor.u32 %v2277, 2147483648
      %v2294 = vxor.u32 %v2278, 2147483648
      %v2295 = vxor.u32 %v2279, 2147483648
      %v2296 = vxor.u32 %v2280, 2147483648
      %v2297 = vxor.u32 %v2281, 2147483648
      %v2298 = vmul.f32 %v2282, 1.442695
      %v2299 = vpow.pop %v2298
      %v2300 = vmul.f32 %v2283, 1.442695
      %v2301 = vpow.pop %v2300
      %v2302 = vmul.f32 %v2284, 1.442695
      %v2303 = vpow.pop %v2302
      %v2304 = vmul.f32 %v2285, 1.442695
      %v2305 = vpow.pop %v2304
      %v2306 = vmul.f32 %v2286, 1.442695
      %v2307 = vpow.pop %v2306
      %v2308 = vmul.f32 %v2287, 1.442695
      %v2309 = vpow.pop %v2308
      %v2310 = vmul.f32 %v2288, 1.442695
      %v2311 = vpow.pop %v2310
      %v2312 = vmul.f32 %v2289, 1.442695
      %v2313 = vpow.pop %v2312
      %v2314 = vmul.f32 %v2290, 1.442695
      %v2315 = vpow.pop %v2314
      %v2316 = vmul.f32 %v2291, 1.442695
      %v2317 = vpow.pop %v2316
      %v2318 = vmul.f32 %v2292, 1.442695
      %v2319 = vpow.pop %v2318
      %v2320 = vmul.f32 %v2293, 1.442695
      %v2321 = vpow.pop %v2320
      %v2322 = vmul.f32 %v2294, 1.442695
      %v2323 = vpow.pop %v2322
      %v2324 = vmul.f32 %v2295, 1.442695
      %v2325 = vpow.pop %v2324
      %v2326 = vmul.f32 %v2296, 1.442695
      %v2327 = vpow.pop %v2326
      %v2328 = vmul.f32 %v2297, 1.442695
      %v2329 = vpow.pop %v2328
      %v2330 = vadd.f32 %v2299, 1.0
      %v2331 = vadd.f32 %v2301, 1.0
      %v2332 = vadd.f32 %v2303, 1.0
      %v2333 = vadd.f32 %v2305, 1.0
      %v2334 = vadd.f32 %v2307, 1.0
      %v2335 = vadd.f32 %v2309, 1.0
      %v2336 = vadd.f32 %v2311, 1.0
      %v2337 = vadd.f32 %v2313, 1.0
      %v2338 = vadd.f32 %v2315, 1.0
      %v2339 = vadd.f32 %v2317, 1.0
      %v2340 = vadd.f32 %v2319, 1.0
      %v2341 = vadd.f32 %v2321, 1.0
      %v2342 = vadd.f32 %v2323, 1.0
      %v2343 = vadd.f32 %v2325, 1.0
      %v2344 = vadd.f32 %v2327, 1.0
      %v2345 = vadd.f32 %v2329, 1.0
      %v2346 = vrcp.pop %v2330
      %v2347 = vmul.f32 1.0, %v2346
      %v2348 = vrcp.pop %v2331
      %v2349 = vmul.f32 1.0, %v2348
      %v2350 = vrcp.pop %v2332
      %v2351 = vmul.f32 1.0, %v2350
      %v2352 = vrcp.pop %v2333
      %v2353 = vmul.f32 1.0, %v2352
      %v2354 = vrcp.pop %v2334
      %v2355 = vmul.f32 1.0, %v2354
      %v2356 = vrcp.pop %v2335
      %v2357 = vmul.f32 1.0, %v2356
      %v2358 = vrcp.pop %v2336
      %v2359 = vmul.f32 1.0, %v2358
      %v2360 = vrcp.pop %v2337
      %v2361 = vmul.f32 1.0, %v2360
      %v2362 = vrcp.pop %v2338
      %v2363 = vmul.f32 1.0, %v2362
      %v2364 = vrcp.pop %v2339
      %v2365 = vmul.f32 1.0, %v2364
      %v2366 = vrcp.pop %v2340
      %v2367 = vmul.f32 1.0, %v2366
      %v2368 = vrcp.pop %v2341
      %v2369 = vmul.f32 1.0, %v2368
      %v2370 = vrcp.pop %v2342
      %v2371 = vmul.f32 1.0, %v2370
      %v2372 = vrcp.pop %v2343
      %v2373 = vmul.f32 1.0, %v2372
      %v2374 = vrcp.pop %v2344
      %v2375 = vmul.f32 1.0, %v2374
      %v2376 = vrcp.pop %v2345
      %v2377 = vmul.f32 1.0, %v2376
      %v2378 = vtanh.pop %v2090
      %v2379 = vtanh.pop %v2091
      %v2380 = vtanh.pop %v2092
      %v2381 = vtanh.pop %v2093
      %v2382 = vtanh.pop %v2094
      %v2383 = vtanh.pop %v2095
      %v2384 = vtanh.pop %v2096
      %v2385 = vtanh.pop %v2097
      %v2386 = vtanh.pop %v2098
      %v2387 = vtanh.pop %v2099
      %v2388 = vtanh.pop %v2100
      %v2389 = vtanh.pop %v2101
      %v2390 = vtanh.pop %v2102
      %v2391 = vtanh.pop %v2103
      %v2392 = vtanh.pop %v2104
      %v2393 = vtanh.pop %v2105
      %2410 = vrot.lane.b32.xlu0 %v2378, 64
      %v2411 = vpop.permute.xlu0 %2410
      %2412 = vrot.lane.b32.xlu0 %v2379, 64
      %v2413 = vpop.permute.xlu0 %2412
      %2414 = vrot.lane.b32.xlu0 %v2380, 64
      %v2415 = vpop.permute.xlu0 %2414
      %2416 = vrot.lane.b32.xlu0 %v2381, 64
      %v2417 = vpop.permute.xlu0 %2416
      %2418 = vrot.lane.b32.xlu0 %v2382, 64
      %v2419 = vpop.permute.xlu0 %2418
      %2420 = vrot.lane.b32.xlu0 %v2383, 64
      %v2421 = vpop.permute.xlu0 %2420
      %2422 = vrot.lane.b32.xlu0 %v2384, 64
      %v2423 = vpop.permute.xlu0 %2422
      %2424 = vrot.lane.b32.xlu0 %v2385, 64
      %v2425 = vpop.permute.xlu0 %2424
      %2426 = vrot.lane.b32.xlu0 %v2386, 64
      %v2427 = vpop.permute.xlu0 %2426
      %2428 = vrot.lane.b32.xlu0 %v2387, 64
      %v2429 = vpop.permute.xlu0 %2428
      %2430 = vrot.lane.b32.xlu0 %v2388, 64
      %v2431 = vpop.permute.xlu0 %2430
      %2432 = vrot.lane.b32.xlu0 %v2389, 64
      %v2433 = vpop.permute.xlu0 %2432
      %2434 = vrot.lane.b32.xlu0 %v2390, 64
      %v2435 = vpop.permute.xlu0 %2434
      %2436 = vrot.lane.b32.xlu0 %v2391, 64
      %v2437 = vpop.permute.xlu0 %2436
      %2438 = vrot.lane.b32.xlu0 %v2392, 64
      %v2439 = vpop.permute.xlu0 %2438
      %2440 = vrot.lane.b32.xlu0 %v2393, 64
      %v2441 = vpop.permute.xlu0 %2440
      %v2458 = vmul.f32 %v2347, %v2411
      %v2459 = vmul.f32 %v2349, %v2413
      %v2460 = vmul.f32 %v2351, %v2415
      %v2461 = vmul.f32 %v2353, %v2417
      %v2462 = vmul.f32 %v2355, %v2419
      %v2463 = vmul.f32 %v2357, %v2421
      %v2464 = vmul.f32 %v2359, %v2423
      %v2465 = vmul.f32 %v2361, %v2425
      %v2466 = vmul.f32 %v2363, %v2427
      %v2467 = vmul.f32 %v2365, %v2429
      %v2468 = vmul.f32 %v2367, %v2431
      %v2469 = vmul.f32 %v2369, %v2433
      %v2470 = vmul.f32 %v2371, %v2435
      %v2471 = vmul.f32 %v2373, %v2437
      %v2472 = vmul.f32 %v2375, %v2439
      %v2473 = vmul.f32 %v2377, %v2441
      %2474 = vst.msk [vmem:[#allocation3] sm:$0xff] %vm406, %v2139
      %2475 = vst.msk [vmem:[#allocation3 + $0x8] sm:$0xff] %vm406, %v2141
      %2476 = vst.msk [vmem:[#allocation3 + $0x10] sm:$0xff] %vm406, %v2143
      %2477 = vst.msk [vmem:[#allocation3 + $0x18] sm:$0xff] %vm406, %v2145
      %2478 = vst.msk [vmem:[#allocation3 + $0x20] sm:$0xff] %vm406, %v2147
      %2479 = vst.msk [vmem:[#allocation3 + $0x28] sm:$0xff] %vm406, %v2149
      %2480 = vst.msk [vmem:[#allocation3 + $0x30] sm:$0xff] %vm406, %v2151
      %2481 = vst.msk [vmem:[#allocation3 + $0x38] sm:$0xff] %vm406, %v2153
      %2482 = vst.msk [vmem:[#allocation3 + $0x40] sm:$0xff] %vm406, %v2155
      %2483 = vst.msk [vmem:[#allocation3 + $0x48] sm:$0xff] %vm406, %v2157
      %2484 = vst.msk [vmem:[#allocation3 + $0x50] sm:$0xff] %vm406, %v2159
      %2485 = vst.msk [vmem:[#allocation3 + $0x58] sm:$0xff] %vm406, %v2161
      %2486 = vst.msk [vmem:[#allocation3 + $0x60] sm:$0xff] %vm406, %v2163
      %2487 = vst.msk [vmem:[#allocation3 + $0x68] sm:$0xff] %vm406, %v2165
      %2488 = vst.msk [vmem:[#allocation3 + $0x70] sm:$0xff] %vm406, %v2167
      %2489 = vst.msk [vmem:[#allocation3 + $0x78] sm:$0xff] %vm406, %v2169
      %2506 = vrot.lane.b32.xlu0 %v2458, 32
      %v2507 = vpop.permute.xlu0 %2506
      %2508 = vrot.lane.b32.xlu0 %v2459, 32
      %v2509 = vpop.permute.xlu0 %2508
      %2510 = vrot.lane.b32.xlu0 %v2460, 32
      %v2511 = vpop.permute.xlu0 %2510
      %2512 = vrot.lane.b32.xlu0 %v2461, 32
      %v2513 = vpop.permute.xlu0 %2512
      %2514 = vrot.lane.b32.xlu0 %v2462, 32
      %v2515 = vpop.permute.xlu0 %2514
      %2516 = vrot.lane.b32.xlu0 %v2463, 32
      %v2517 = vpop.permute.xlu0 %2516
      %2518 = vrot.lane.b32.xlu0 %v2464, 32
      %v2519 = vpop.permute.xlu0 %2518
      %2520 = vrot.lane.b32.xlu0 %v2465, 32
      %v2521 = vpop.permute.xlu0 %2520
      %2522 = vrot.lane.b32.xlu0 %v2466, 32
      %v2523 = vpop.permute.xlu0 %2522
      %2524 = vrot.lane.b32.xlu0 %v2467, 32
      %v2525 = vpop.permute.xlu0 %2524
      %2526 = vrot.lane.b32.xlu0 %v2468, 32
      %v2527 = vpop.permute.xlu0 %2526
      %2528 = vrot.lane.b32.xlu0 %v2469, 32
      %v2529 = vpop.permute.xlu0 %2528
      %2530 = vrot.lane.b32.xlu0 %v2470, 32
      %v2531 = vpop.permute.xlu0 %2530
      %2532 = vrot.lane.b32.xlu0 %v2471, 32
      %v2533 = vpop.permute.xlu0 %2532
      %2534 = vrot.lane.b32.xlu0 %v2472, 32
      %v2535 = vpop.permute.xlu0 %2534
      %2536 = vrot.lane.b32.xlu0 %v2473, 32
      %v2537 = vpop.permute.xlu0 %2536
      %2554 = vst.msk [vmem:[%s260] sm:$0xff] %vm406, %v2507
      %2555 = vst.msk [vmem:[%s260 + $0x8] sm:$0xff] %vm406, %v2509
      %2556 = vst.msk [vmem:[%s260 + $0x10] sm:$0xff] %vm406, %v2511
      %2557 = vst.msk [vmem:[%s260 + $0x18] sm:$0xff] %vm406, %v2513
      %2558 = vst.msk [vmem:[%s260 + $0x20] sm:$0xff] %vm406, %v2515
      %2559 = vst.msk [vmem:[%s260 + $0x28] sm:$0xff] %vm406, %v2517
      %2560 = vst.msk [vmem:[%s260 + $0x30] sm:$0xff] %vm406, %v2519
      %2561 = vst.msk [vmem:[%s260 + $0x38] sm:$0xff] %vm406, %v2521
      %2562 = vst.msk [vmem:[%s260 + $0x40] sm:$0xff] %vm406, %v2523
      %2563 = vst.msk [vmem:[%s260 + $0x48] sm:$0xff] %vm406, %v2525
      %2564 = vst.msk [vmem:[%s260 + $0x50] sm:$0xff] %vm406, %v2527
      %2565 = vst.msk [vmem:[%s260 + $0x58] sm:$0xff] %vm406, %v2529
      %2566 = vst.msk [vmem:[%s260 + $0x60] sm:$0xff] %vm406, %v2531
      %2567 = vst.msk [vmem:[%s260 + $0x68] sm:$0xff] %vm406, %v2533
      %2568 = vst.msk [vmem:[%s260 + $0x70] sm:$0xff] %vm406, %v2535
      %2569 = vst.msk [vmem:[%s260 + $0x78] sm:$0xff] %vm406, %v2537
      %s2570 = scalar_lea.vmem [#allocation2], 192
      %v2571 = vld [vmem:[%s2570] sm:$0xff]
      %v2572 = vld [vmem:[%s2570 + $0x8] sm:$0xff]
      %v2573 = vld [vmem:[%s2570 + $0x18] sm:$0xff]
      %v2574 = vld [vmem:[%s2570 + $0x20] sm:$0xff]
      %v2575 = vld [vmem:[%s2570 + $0x30] sm:$0xff]
      %v2576 = vld [vmem:[%s2570 + $0x38] sm:$0xff]
      %v2577 = vld [vmem:[%s2570 + $0x48] sm:$0xff]
      %v2578 = vld [vmem:[%s2570 + $0x50] sm:$0xff]
      %v2579 = vld [vmem:[%s2570 + $0x60] sm:$0xff]
      %v2580 = vld [vmem:[%s2570 + $0x68] sm:$0xff]
      %v2581 = vld [vmem:[%s2570 + $0x78] sm:$0xff]
      %v2582 = vld [vmem:[%s2570 + $0x80] sm:$0xff]
      %v2583 = vld [vmem:[%s2570 + $0x90] sm:$0xff]
      %v2584 = vld [vmem:[%s2570 + $0x98] sm:$0xff]
      %v2585 = vld [vmem:[%s2570 + $0xa8] sm:$0xff]
      %v2586 = vld [vmem:[%s2570 + $0xb0] sm:$0xff]
      %2587 = vst.msk [vmem:[#allocation4] sm:$0xff] %vm406, %v2571
      %2588 = vst.msk [vmem:[#allocation4 + $0x18] sm:$0xff] %vm406, %v2572
      %2589 = vst.msk [vmem:[#allocation4 + $0x30] sm:$0xff] %vm406, %v2573
      %2590 = vst.msk [vmem:[#allocation4 + $0x48] sm:$0xff] %vm406, %v2574
      %2591 = vst.msk [vmem:[#allocation4 + $0x60] sm:$0xff] %vm406, %v2575
      %2592 = vst.msk [vmem:[#allocation4 + $0x78] sm:$0xff] %vm406, %v2576
      %2593 = vst.msk [vmem:[#allocation4 + $0x90] sm:$0xff] %vm406, %v2577
      %2594 = vst.msk [vmem:[#allocation4 + $0xa8] sm:$0xff] %vm406, %v2578
      %2595 = vst.msk [vmem:[#allocation4 + $0xc0] sm:$0xff] %vm406, %v2579
      %2596 = vst.msk [vmem:[#allocation4 + $0xd8] sm:$0xff] %vm406, %v2580
      %2597 = vst.msk [vmem:[#allocation4 + $0xf0] sm:$0xff] %vm406, %v2581
      %2598 = vst.msk [vmem:[#allocation4 + $0x108] sm:$0xff] %vm406, %v2582
      %2599 = vst.msk [vmem:[#allocation4 + $0x120] sm:$0xff] %vm406, %v2583
      %2600 = vst.msk [vmem:[#allocation4 + $0x138] sm:$0xff] %vm406, %v2584
      %2601 = vst.msk [vmem:[#allocation4 + $0x150] sm:$0xff] %vm406, %v2585
      %2602 = vst.msk [vmem:[#allocation4 + $0x168] sm:$0xff] %vm406, %v2586
      %v2603 = vld [vmem:[%s2570 + $0x1] sm:$0xff]
      %v2604 = vld [vmem:[%s2570 + $0x9] sm:$0xff]
      %v2605 = vld [vmem:[%s2570 + $0x19] sm:$0xff]
      %v2606 = vld [vmem:[%s2570 + $0x21] sm:$0xff]
      %v2607 = vld [vmem:[%s2570 + $0x31] sm:$0xff]
      %v2608 = vld [vmem:[%s2570 + $0x39] sm:$0xff]
      %v2609 = vld [vmem:[%s2570 + $0x49] sm:$0xff]
      %v2610 = vld [vmem:[%s2570 + $0x51] sm:$0xff]
      %v2611 = vld [vmem:[%s2570 + $0x61] sm:$0xff]
      %v2612 = vld [vmem:[%s2570 + $0x69] sm:$0xff]
      %v2613 = vld [vmem:[%s2570 + $0x79] sm:$0xff]
      %v2614 = vld [vmem:[%s2570 + $0x81] sm:$0xff]
      %v2615 = vld [vmem:[%s2570 + $0x91] sm:$0xff]
      %v2616 = vld [vmem:[%s2570 + $0x99] sm:$0xff]
      %v2617 = vld [vmem:[%s2570 + $0xa9] sm:$0xff]
      %v2618 = vld [vmem:[%s2570 + $0xb1] sm:$0xff]
      %2635 = vrot.lane.b32.xlu0 %v2603, 32
      %v2636 = vpop.permute.xlu0 %2635
      %2637 = vrot.lane.b32.xlu0 %v2604, 32
      %v2638 = vpop.permute.xlu0 %2637
      %2639 = vrot.lane.b32.xlu0 %v2605, 32
      %v2640 = vpop.permute.xlu0 %2639
      %2641 = vrot.lane.b32.xlu0 %v2606, 32
      %v2642 = vpop.permute.xlu0 %2641
      %2643 = vrot.lane.b32.xlu0 %v2607, 32
      %v2644 = vpop.permute.xlu0 %2643
      %2645 = vrot.lane.b32.xlu0 %v2608, 32
      %v2646 = vpop.permute.xlu0 %2645
      %2647 = vrot.lane.b32.xlu0 %v2609, 32
      %v2648 = vpop.permute.xlu0 %2647
      %2649 = vrot.lane.b32.xlu0 %v2610, 32
      %v2650 = vpop.permute.xlu0 %2649
      %2651 = vrot.lane.b32.xlu0 %v2611, 32
      %v2652 = vpop.permute.xlu0 %2651
      %2653 = vrot.lane.b32.xlu0 %v2612, 32
      %v2654 = vpop.permute.xlu0 %2653
      %2655 = vrot.lane.b32.xlu0 %v2613, 32
      %v2656 = vpop.permute.xlu0 %2655
      %2657 = vrot.lane.b32.xlu0 %v2614, 32
      %v2658 = vpop.permute.xlu0 %2657
      %2659 = vrot.lane.b32.xlu0 %v2615, 32
      %v2660 = vpop.permute.xlu0 %2659
      %2661 = vrot.lane.b32.xlu0 %v2616, 32
      %v2662 = vpop.permute.xlu0 %2661
      %2663 = vrot.lane.b32.xlu0 %v2617, 32
      %v2664 = vpop.permute.xlu0 %2663
      %2665 = vrot.lane.b32.xlu0 %v2618, 32
      %v2666 = vpop.permute.xlu0 %2665
      %2683 = vst.msk [vmem:[#allocation4] sm:$0xff] %vm503, %v2636
      %2684 = vst.msk [vmem:[#allocation4 + $0x18] sm:$0xff] %vm503, %v2638
      %2685 = vst.msk [vmem:[#allocation4 + $0x30] sm:$0xff] %vm503, %v2640
      %2686 = vst.msk [vmem:[#allocation4 + $0x48] sm:$0xff] %vm503, %v2642
      %2687 = vst.msk [vmem:[#allocation4 + $0x60] sm:$0xff] %vm503, %v2644
      %2688 = vst.msk [vmem:[#allocation4 + $0x78] sm:$0xff] %vm503, %v2646
      %2689 = vst.msk [vmem:[#allocation4 + $0x90] sm:$0xff] %vm503, %v2648
      %2690 = vst.msk [vmem:[#allocation4 + $0xa8] sm:$0xff] %vm503, %v2650
      %2691 = vst.msk [vmem:[#allocation4 + $0xc0] sm:$0xff] %vm503, %v2652
      %2692 = vst.msk [vmem:[#allocation4 + $0xd8] sm:$0xff] %vm503, %v2654
      %2693 = vst.msk [vmem:[#allocation4 + $0xf0] sm:$0xff] %vm503, %v2656
      %2694 = vst.msk [vmem:[#allocation4 + $0x108] sm:$0xff] %vm503, %v2658
      %2695 = vst.msk [vmem:[#allocation4 + $0x120] sm:$0xff] %vm503, %v2660
      %2696 = vst.msk [vmem:[#allocation4 + $0x138] sm:$0xff] %vm503, %v2662
      %2697 = vst.msk [vmem:[#allocation4 + $0x150] sm:$0xff] %vm503, %v2664
      %2698 = vst.msk [vmem:[#allocation4 + $0x168] sm:$0xff] %vm503, %v2666
      %v2699 = vld [vmem:[%s2570 + $0x2] sm:$0xff]
      %v2700 = vld [vmem:[%s2570 + $0xa] sm:$0xff]
      %v2701 = vld [vmem:[%s2570 + $0x1a] sm:$0xff]
      %v2702 = vld [vmem:[%s2570 + $0x22] sm:$0xff]
      %v2703 = vld [vmem:[%s2570 + $0x32] sm:$0xff]
      %v2704 = vld [vmem:[%s2570 + $0x3a] sm:$0xff]
      %v2705 = vld [vmem:[%s2570 + $0x4a] sm:$0xff]
      %v2706 = vld [vmem:[%s2570 + $0x52] sm:$0xff]
      %v2707 = vld [vmem:[%s2570 + $0x62] sm:$0xff]
      %v2708 = vld [vmem:[%s2570 + $0x6a] sm:$0xff]
      %v2709 = vld [vmem:[%s2570 + $0x7a] sm:$0xff]
      %v2710 = vld [vmem:[%s2570 + $0x82] sm:$0xff]
      %v2711 = vld [vmem:[%s2570 + $0x92] sm:$0xff]
      %v2712 = vld [vmem:[%s2570 + $0x9a] sm:$0xff]
      %v2713 = vld [vmem:[%s2570 + $0xaa] sm:$0xff]
      %v2714 = vld [vmem:[%s2570 + $0xb2] sm:$0xff]
      %2731 = vrot.lane.b32.xlu0 %v2699, 64
      %v2732 = vpop.permute.xlu0 %2731
      %2733 = vrot.lane.b32.xlu0 %v2700, 64
      %v2734 = vpop.permute.xlu0 %2733
      %2735 = vrot.lane.b32.xlu0 %v2701, 64
      %v2736 = vpop.permute.xlu0 %2735
      %2737 = vrot.lane.b32.xlu0 %v2702, 64
      %v2738 = vpop.permute.xlu0 %2737
      %2739 = vrot.lane.b32.xlu0 %v2703, 64
      %v2740 = vpop.permute.xlu0 %2739
      %2741 = vrot.lane.b32.xlu0 %v2704, 64
      %v2742 = vpop.permute.xlu0 %2741
      %2743 = vrot.lane.b32.xlu0 %v2705, 64
      %v2744 = vpop.permute.xlu0 %2743
      %2745 = vrot.lane.b32.xlu0 %v2706, 64
      %v2746 = vpop.permute.xlu0 %2745
      %2747 = vrot.lane.b32.xlu0 %v2707, 64
      %v2748 = vpop.permute.xlu0 %2747
      %2749 = vrot.lane.b32.xlu0 %v2708, 64
      %v2750 = vpop.permute.xlu0 %2749
      %2751 = vrot.lane.b32.xlu0 %v2709, 64
      %v2752 = vpop.permute.xlu0 %2751
      %2753 = vrot.lane.b32.xlu0 %v2710, 64
      %v2754 = vpop.permute.xlu0 %2753
      %2755 = vrot.lane.b32.xlu0 %v2711, 64
      %v2756 = vpop.permute.xlu0 %2755
      %2757 = vrot.lane.b32.xlu0 %v2712, 64
      %v2758 = vpop.permute.xlu0 %2757
      %2759 = vrot.lane.b32.xlu0 %v2713, 64
      %v2760 = vpop.permute.xlu0 %2759
      %2761 = vrot.lane.b32.xlu0 %v2714, 64
      %v2762 = vpop.permute.xlu0 %2761
      %2779 = vst.msk [vmem:[#allocation4] sm:$0xff] %vm600, %v2732
      %2780 = vst.msk [vmem:[#allocation4 + $0x18] sm:$0xff] %vm600, %v2734
      %2781 = vst.msk [vmem:[#allocation4 + $0x30] sm:$0xff] %vm600, %v2736
      %2782 = vst.msk [vmem:[#allocation4 + $0x48] sm:$0xff] %vm600, %v2738
      %2783 = vst.msk [vmem:[#allocation4 + $0x60] sm:$0xff] %vm600, %v2740
      %2784 = vst.msk [vmem:[#allocation4 + $0x78] sm:$0xff] %vm600, %v2742
      %2785 = vst.msk [vmem:[#allocation4 + $0x90] sm:$0xff] %vm600, %v2744
      %2786 = vst.msk [vmem:[#allocation4 + $0xa8] sm:$0xff] %vm600, %v2746
      %2787 = vst.msk [vmem:[#allocation4 + $0xc0] sm:$0xff] %vm600, %v2748
      %2788 = vst.msk [vmem:[#allocation4 + $0xd8] sm:$0xff] %vm600, %v2750
      %2789 = vst.msk [vmem:[#allocation4 + $0xf0] sm:$0xff] %vm600, %v2752
      %2790 = vst.msk [vmem:[#allocation4 + $0x108] sm:$0xff] %vm600, %v2754
      %2791 = vst.msk [vmem:[#allocation4 + $0x120] sm:$0xff] %vm600, %v2756
      %2792 = vst.msk [vmem:[#allocation4 + $0x138] sm:$0xff] %vm600, %v2758
      %2793 = vst.msk [vmem:[#allocation4 + $0x150] sm:$0xff] %vm600, %v2760
      %2794 = vst.msk [vmem:[#allocation4 + $0x168] sm:$0xff] %vm600, %v2762
      %s2795 = scalar_lea.vmem [#allocation2], 216
      %v2796 = vld [vmem:[%s2795] sm:$0xff]
      %v2797 = vld [vmem:[%s2795 + $0x8] sm:$0xff]
      %v2798 = vld [vmem:[%s2795 + $0x18] sm:$0xff]
      %v2799 = vld [vmem:[%s2795 + $0x20] sm:$0xff]
      %v2800 = vld [vmem:[%s2795 + $0x30] sm:$0xff]
      %v2801 = vld [vmem:[%s2795 + $0x38] sm:$0xff]
      %v2802 = vld [vmem:[%s2795 + $0x48] sm:$0xff]
      %v2803 = vld [vmem:[%s2795 + $0x50] sm:$0xff]
      %v2804 = vld [vmem:[%s2795 + $0x60] sm:$0xff]
      %v2805 = vld [vmem:[%s2795 + $0x68] sm:$0xff]
      %v2806 = vld [vmem:[%s2795 + $0x78] sm:$0xff]
      %v2807 = vld [vmem:[%s2795 + $0x80] sm:$0xff]
      %v2808 = vld [vmem:[%s2795 + $0x90] sm:$0xff]
      %v2809 = vld [vmem:[%s2795 + $0x98] sm:$0xff]
      %v2810 = vld [vmem:[%s2795 + $0xa8] sm:$0xff]
      %v2811 = vld [vmem:[%s2795 + $0xb0] sm:$0xff]
      %2828 = vrot.lane.b32.xlu0 %v2796, 96
      %v2829 = vpop.permute.xlu0 %2828
      %2830 = vrot.lane.b32.xlu0 %v2797, 96
      %v2831 = vpop.permute.xlu0 %2830
      %2832 = vrot.lane.b32.xlu0 %v2798, 96
      %v2833 = vpop.permute.xlu0 %2832
      %2834 = vrot.lane.b32.xlu0 %v2799, 96
      %v2835 = vpop.permute.xlu0 %2834
      %2836 = vrot.lane.b32.xlu0 %v2800, 96
      %v2837 = vpop.permute.xlu0 %2836
      %2838 = vrot.lane.b32.xlu0 %v2801, 96
      %v2839 = vpop.permute.xlu0 %2838
      %2840 = vrot.lane.b32.xlu0 %v2802, 96
      %v2841 = vpop.permute.xlu0 %2840
      %2842 = vrot.lane.b32.xlu0 %v2803, 96
      %v2843 = vpop.permute.xlu0 %2842
      %2844 = vrot.lane.b32.xlu0 %v2804, 96
      %v2845 = vpop.permute.xlu0 %2844
      %2846 = vrot.lane.b32.xlu0 %v2805, 96
      %v2847 = vpop.permute.xlu0 %2846
      %2848 = vrot.lane.b32.xlu0 %v2806, 96
      %v2849 = vpop.permute.xlu0 %2848
      %2850 = vrot.lane.b32.xlu0 %v2807, 96
      %v2851 = vpop.permute.xlu0 %2850
      %2852 = vrot.lane.b32.xlu0 %v2808, 96
      %v2853 = vpop.permute.xlu0 %2852
      %2854 = vrot.lane.b32.xlu0 %v2809, 96
      %v2855 = vpop.permute.xlu0 %2854
      %2856 = vrot.lane.b32.xlu0 %v2810, 96
      %v2857 = vpop.permute.xlu0 %2856
      %2858 = vrot.lane.b32.xlu0 %v2811, 96
      %v2859 = vpop.permute.xlu0 %2858
      %2876 = vst.msk [vmem:[#allocation4] sm:$0xff] %vm698, %v2829
      %2877 = vst.msk [vmem:[#allocation4 + $0x18] sm:$0xff] %vm698, %v2831
      %2878 = vst.msk [vmem:[#allocation4 + $0x30] sm:$0xff] %vm698, %v2833
      %2879 = vst.msk [vmem:[#allocation4 + $0x48] sm:$0xff] %vm698, %v2835
      %2880 = vst.msk [vmem:[#allocation4 + $0x60] sm:$0xff] %vm698, %v2837
      %2881 = vst.msk [vmem:[#allocation4 + $0x78] sm:$0xff] %vm698, %v2839
      %2882 = vst.msk [vmem:[#allocation4 + $0x90] sm:$0xff] %vm698, %v2841
      %2883 = vst.msk [vmem:[#allocation4 + $0xa8] sm:$0xff] %vm698, %v2843
      %2884 = vst.msk [vmem:[#allocation4 + $0xc0] sm:$0xff] %vm698, %v2845
      %2885 = vst.msk [vmem:[#allocation4 + $0xd8] sm:$0xff] %vm698, %v2847
      %2886 = vst.msk [vmem:[#allocation4 + $0xf0] sm:$0xff] %vm698, %v2849
      %2887 = vst.msk [vmem:[#allocation4 + $0x108] sm:$0xff] %vm698, %v2851
      %2888 = vst.msk [vmem:[#allocation4 + $0x120] sm:$0xff] %vm698, %v2853
      %2889 = vst.msk [vmem:[#allocation4 + $0x138] sm:$0xff] %vm698, %v2855
      %2890 = vst.msk [vmem:[#allocation4 + $0x150] sm:$0xff] %vm698, %v2857
      %2891 = vst.msk [vmem:[#allocation4 + $0x168] sm:$0xff] %vm698, %v2859
      %v2892 = vld [vmem:[%s2795 + $0x1] sm:$0xff]
      %v2893 = vld [vmem:[%s2795 + $0x9] sm:$0xff]
      %v2894 = vld [vmem:[%s2795 + $0x19] sm:$0xff]
      %v2895 = vld [vmem:[%s2795 + $0x21] sm:$0xff]
      %v2896 = vld [vmem:[%s2795 + $0x31] sm:$0xff]
      %v2897 = vld [vmem:[%s2795 + $0x39] sm:$0xff]
      %v2898 = vld [vmem:[%s2795 + $0x49] sm:$0xff]
      %v2899 = vld [vmem:[%s2795 + $0x51] sm:$0xff]
      %v2900 = vld [vmem:[%s2795 + $0x61] sm:$0xff]
      %v2901 = vld [vmem:[%s2795 + $0x69] sm:$0xff]
      %v2902 = vld [vmem:[%s2795 + $0x79] sm:$0xff]
      %v2903 = vld [vmem:[%s2795 + $0x81] sm:$0xff]
      %v2904 = vld [vmem:[%s2795 + $0x91] sm:$0xff]
      %v2905 = vld [vmem:[%s2795 + $0x99] sm:$0xff]
      %v2906 = vld [vmem:[%s2795 + $0xa9] sm:$0xff]
      %v2907 = vld [vmem:[%s2795 + $0xb1] sm:$0xff]
      %2908 = vst.msk [vmem:[#allocation4 + $0x8] sm:$0xff] %vm406, %v2892
      %2909 = vst.msk [vmem:[#allocation4 + $0x20] sm:$0xff] %vm406, %v2893
      %2910 = vst.msk [vmem:[#allocation4 + $0x38] sm:$0xff] %vm406, %v2894
      %2911 = vst.msk [vmem:[#allocation4 + $0x50] sm:$0xff] %vm406, %v2895
      %2912 = vst.msk [vmem:[#allocation4 + $0x68] sm:$0xff] %vm406, %v2896
      %2913 = vst.msk [vmem:[#allocation4 + $0x80] sm:$0xff] %vm406, %v2897
      %2914 = vst.msk [vmem:[#allocation4 + $0x98] sm:$0xff] %vm406, %v2898
      %2915 = vst.msk [vmem:[#allocation4 + $0xb0] sm:$0xff] %vm406, %v2899
      %2916 = vst.msk [vmem:[#allocation4 + $0xc8] sm:$0xff] %vm406, %v2900
      %2917 = vst.msk [vmem:[#allocation4 + $0xe0] sm:$0xff] %vm406, %v2901
      %2918 = vst.msk [vmem:[#allocation4 + $0xf8] sm:$0xff] %vm406, %v2902
      %2919 = vst.msk [vmem:[#allocation4 + $0x110] sm:$0xff] %vm406, %v2903
      %2920 = vst.msk [vmem:[#allocation4 + $0x128] sm:$0xff] %vm406, %v2904
      %2921 = vst.msk [vmem:[#allocation4 + $0x140] sm:$0xff] %vm406, %v2905
      %2922 = vst.msk [vmem:[#allocation4 + $0x158] sm:$0xff] %vm406, %v2906
      %2923 = vst.msk [vmem:[#allocation4 + $0x170] sm:$0xff] %vm406, %v2907
      %v2924 = vld [vmem:[%s2795 + $0x2] sm:$0xff]
      %v2925 = vld [vmem:[%s2795 + $0xa] sm:$0xff]
      %v2926 = vld [vmem:[%s2795 + $0x1a] sm:$0xff]
      %v2927 = vld [vmem:[%s2795 + $0x22] sm:$0xff]
      %v2928 = vld [vmem:[%s2795 + $0x32] sm:$0xff]
      %v2929 = vld [vmem:[%s2795 + $0x3a] sm:$0xff]
      %v2930 = vld [vmem:[%s2795 + $0x4a] sm:$0xff]
      %v2931 = vld [vmem:[%s2795 + $0x52] sm:$0xff]
      %v2932 = vld [vmem:[%s2795 + $0x62] sm:$0xff]
      %v2933 = vld [vmem:[%s2795 + $0x6a] sm:$0xff]
      %v2934 = vld [vmem:[%s2795 + $0x7a] sm:$0xff]
      %v2935 = vld [vmem:[%s2795 + $0x82] sm:$0xff]
      %v2936 = vld [vmem:[%s2795 + $0x92] sm:$0xff]
      %v2937 = vld [vmem:[%s2795 + $0x9a] sm:$0xff]
      %v2938 = vld [vmem:[%s2795 + $0xaa] sm:$0xff]
      %v2939 = vld [vmem:[%s2795 + $0xb2] sm:$0xff]
      %2956 = vrot.lane.b32.xlu0 %v2924, 32
      %v2957 = vpop.permute.xlu0 %2956
      %2958 = vrot.lane.b32.xlu0 %v2925, 32
      %v2959 = vpop.permute.xlu0 %2958
      %2960 = vrot.lane.b32.xlu0 %v2926, 32
      %v2961 = vpop.permute.xlu0 %2960
      %2962 = vrot.lane.b32.xlu0 %v2927, 32
      %v2963 = vpop.permute.xlu0 %2962
      %2964 = vrot.lane.b32.xlu0 %v2928, 32
      %v2965 = vpop.permute.xlu0 %2964
      %2966 = vrot.lane.b32.xlu0 %v2929, 32
      %v2967 = vpop.permute.xlu0 %2966
      %2968 = vrot.lane.b32.xlu0 %v2930, 32
      %v2969 = vpop.permute.xlu0 %2968
      %2970 = vrot.lane.b32.xlu0 %v2931, 32
      %v2971 = vpop.permute.xlu0 %2970
      %2972 = vrot.lane.b32.xlu0 %v2932, 32
      %v2973 = vpop.permute.xlu0 %2972
      %2974 = vrot.lane.b32.xlu0 %v2933, 32
      %v2975 = vpop.permute.xlu0 %2974
      %2976 = vrot.lane.b32.xlu0 %v2934, 32
      %v2977 = vpop.permute.xlu0 %2976
      %2978 = vrot.lane.b32.xlu0 %v2935, 32
      %v2979 = vpop.permute.xlu0 %2978
      %2980 = vrot.lane.b32.xlu0 %v2936, 32
      %v2981 = vpop.permute.xlu0 %2980
      %2982 = vrot.lane.b32.xlu0 %v2937, 32
      %v2983 = vpop.permute.xlu0 %2982
      %2984 = vrot.lane.b32.xlu0 %v2938, 32
      %v2985 = vpop.permute.xlu0 %2984
      %2986 = vrot.lane.b32.xlu0 %v2939, 32
      %v2987 = vpop.permute.xlu0 %2986
      %3004 = vst.msk [vmem:[#allocation4 + $0x8] sm:$0xff] %vm503, %v2957
      %3005 = vst.msk [vmem:[#allocation4 + $0x20] sm:$0xff] %vm503, %v2959
      %3006 = vst.msk [vmem:[#allocation4 + $0x38] sm:$0xff] %vm503, %v2961
      %3007 = vst.msk [vmem:[#allocation4 + $0x50] sm:$0xff] %vm503, %v2963
      %3008 = vst.msk [vmem:[#allocation4 + $0x68] sm:$0xff] %vm503, %v2965
      %3009 = vst.msk [vmem:[#allocation4 + $0x80] sm:$0xff] %vm503, %v2967
      %3010 = vst.msk [vmem:[#allocation4 + $0x98] sm:$0xff] %vm503, %v2969
      %3011 = vst.msk [vmem:[#allocation4 + $0xb0] sm:$0xff] %vm503, %v2971
      %3012 = vst.msk [vmem:[#allocation4 + $0xc8] sm:$0xff] %vm503, %v2973
      %3013 = vst.msk [vmem:[#allocation4 + $0xe0] sm:$0xff] %vm503, %v2975
      %3014 = vst.msk [vmem:[#allocation4 + $0xf8] sm:$0xff] %vm503, %v2977
      %3015 = vst.msk [vmem:[#allocation4 + $0x110] sm:$0xff] %vm503, %v2979
      %3016 = vst.msk [vmem:[#allocation4 + $0x128] sm:$0xff] %vm503, %v2981
      %3017 = vst.msk [vmem:[#allocation4 + $0x140] sm:$0xff] %vm503, %v2983
      %3018 = vst.msk [vmem:[#allocation4 + $0x158] sm:$0xff] %vm503, %v2985
      %3019 = vst.msk [vmem:[#allocation4 + $0x170] sm:$0xff] %vm503, %v2987
      %s3020 = scalar_lea.vmem [#allocation2], 240
      %v3021 = vld [vmem:[%s3020] sm:$0xff]
      %v3022 = vld [vmem:[%s3020 + $0x8] sm:$0xff]
      %v3023 = vld [vmem:[%s3020 + $0x18] sm:$0xff]
      %v3024 = vld [vmem:[%s3020 + $0x20] sm:$0xff]
      %v3025 = vld [vmem:[%s3020 + $0x30] sm:$0xff]
      %v3026 = vld [vmem:[%s3020 + $0x38] sm:$0xff]
      %v3027 = vld [vmem:[%s3020 + $0x48] sm:$0xff]
      %v3028 = vld [vmem:[%s3020 + $0x50] sm:$0xff]
      %v3029 = vld [vmem:[%s3020 + $0x60] sm:$0xff]
      %v3030 = vld [vmem:[%s3020 + $0x68] sm:$0xff]
      %v3031 = vld [vmem:[%s3020 + $0x78] sm:$0xff]
      %v3032 = vld [vmem:[%s3020 + $0x80] sm:$0xff]
      %v3033 = vld [vmem:[%s3020 + $0x90] sm:$0xff]
      %v3034 = vld [vmem:[%s3020 + $0x98] sm:$0xff]
      %v3035 = vld [vmem:[%s3020 + $0xa8] sm:$0xff]
      %v3036 = vld [vmem:[%s3020 + $0xb0] sm:$0xff]
      %3053 = vrot.lane.b32.xlu0 %v3021, 64
      %v3054 = vpop.permute.xlu0 %3053
      %3055 = vrot.lane.b32.xlu0 %v3022, 64
      %v3056 = vpop.permute.xlu0 %3055
      %3057 = vrot.lane.b32.xlu0 %v3023, 64
      %v3058 = vpop.permute.xlu0 %3057
      %3059 = vrot.lane.b32.xlu0 %v3024, 64
      %v3060 = vpop.permute.xlu0 %3059
      %3061 = vrot.lane.b32.xlu0 %v3025, 64
      %v3062 = vpop.permute.xlu0 %3061
      %3063 = vrot.lane.b32.xlu0 %v3026, 64
      %v3064 = vpop.permute.xlu0 %3063
      %3065 = vrot.lane.b32.xlu0 %v3027, 64
      %v3066 = vpop.permute.xlu0 %3065
      %3067 = vrot.lane.b32.xlu0 %v3028, 64
      %v3068 = vpop.permute.xlu0 %3067
      %3069 = vrot.lane.b32.xlu0 %v3029, 64
      %v3070 = vpop.permute.xlu0 %3069
      %3071 = vrot.lane.b32.xlu0 %v3030, 64
      %v3072 = vpop.permute.xlu0 %3071
      %3073 = vrot.lane.b32.xlu0 %v3031, 64
      %v3074 = vpop.permute.xlu0 %3073
      %3075 = vrot.lane.b32.xlu0 %v3032, 64
      %v3076 = vpop.permute.xlu0 %3075
      %3077 = vrot.lane.b32.xlu0 %v3033, 64
      %v3078 = vpop.permute.xlu0 %3077
      %3079 = vrot.lane.b32.xlu0 %v3034, 64
      %v3080 = vpop.permute.xlu0 %3079
      %3081 = vrot.lane.b32.xlu0 %v3035, 64
      %v3082 = vpop.permute.xlu0 %3081
      %3083 = vrot.lane.b32.xlu0 %v3036, 64
      %v3084 = vpop.permute.xlu0 %3083
      %3101 = vst.msk [vmem:[#allocation4 + $0x8] sm:$0xff] %vm600, %v3054
      %3102 = vst.msk [vmem:[#allocation4 + $0x20] sm:$0xff] %vm600, %v3056
      %3103 = vst.msk [vmem:[#allocation4 + $0x38] sm:$0xff] %vm600, %v3058
      %3104 = vst.msk [vmem:[#allocation4 + $0x50] sm:$0xff] %vm600, %v3060
      %3105 = vst.msk [vmem:[#allocation4 + $0x68] sm:$0xff] %vm600, %v3062
      %3106 = vst.msk [vmem:[#allocation4 + $0x80] sm:$0xff] %vm600, %v3064
      %3107 = vst.msk [vmem:[#allocation4 + $0x98] sm:$0xff] %vm600, %v3066
      %3108 = vst.msk [vmem:[#allocation4 + $0xb0] sm:$0xff] %vm600, %v3068
      %3109 = vst.msk [vmem:[#allocation4 + $0xc8] sm:$0xff] %vm600, %v3070
      %3110 = vst.msk [vmem:[#allocation4 + $0xe0] sm:$0xff] %vm600, %v3072
      %3111 = vst.msk [vmem:[#allocation4 + $0xf8] sm:$0xff] %vm600, %v3074
      %3112 = vst.msk [vmem:[#allocation4 + $0x110] sm:$0xff] %vm600, %v3076
      %3113 = vst.msk [vmem:[#allocation4 + $0x128] sm:$0xff] %vm600, %v3078
      %3114 = vst.msk [vmem:[#allocation4 + $0x140] sm:$0xff] %vm600, %v3080
      %3115 = vst.msk [vmem:[#allocation4 + $0x158] sm:$0xff] %vm600, %v3082
      %3116 = vst.msk [vmem:[#allocation4 + $0x170] sm:$0xff] %vm600, %v3084
      %v3117 = vld [vmem:[%s3020 + $0x1] sm:$0xff]
      %v3118 = vld [vmem:[%s3020 + $0x9] sm:$0xff]
      %v3119 = vld [vmem:[%s3020 + $0x19] sm:$0xff]
      %v3120 = vld [vmem:[%s3020 + $0x21] sm:$0xff]
      %v3121 = vld [vmem:[%s3020 + $0x31] sm:$0xff]
      %v3122 = vld [vmem:[%s3020 + $0x39] sm:$0xff]
      %v3123 = vld [vmem:[%s3020 + $0x49] sm:$0xff]
      %v3124 = vld [vmem:[%s3020 + $0x51] sm:$0xff]
      %v3125 = vld [vmem:[%s3020 + $0x61] sm:$0xff]
      %v3126 = vld [vmem:[%s3020 + $0x69] sm:$0xff]
      %v3127 = vld [vmem:[%s3020 + $0x79] sm:$0xff]
      %v3128 = vld [vmem:[%s3020 + $0x81] sm:$0xff]
      %v3129 = vld [vmem:[%s3020 + $0x91] sm:$0xff]
      %v3130 = vld [vmem:[%s3020 + $0x99] sm:$0xff]
      %v3131 = vld [vmem:[%s3020 + $0xa9] sm:$0xff]
      %v3132 = vld [vmem:[%s3020 + $0xb1] sm:$0xff]
      %3149 = vrot.lane.b32.xlu0 %v3117, 96
      %v3150 = vpop.permute.xlu0 %3149
      %3151 = vrot.lane.b32.xlu0 %v3118, 96
      %v3152 = vpop.permute.xlu0 %3151
      %3153 = vrot.lane.b32.xlu0 %v3119, 96
      %v3154 = vpop.permute.xlu0 %3153
      %3155 = vrot.lane.b32.xlu0 %v3120, 96
      %v3156 = vpop.permute.xlu0 %3155
      %3157 = vrot.lane.b32.xlu0 %v3121, 96
      %v3158 = vpop.permute.xlu0 %3157
      %3159 = vrot.lane.b32.xlu0 %v3122, 96
      %v3160 = vpop.permute.xlu0 %3159
      %3161 = vrot.lane.b32.xlu0 %v3123, 96
      %v3162 = vpop.permute.xlu0 %3161
      %3163 = vrot.lane.b32.xlu0 %v3124, 96
      %v3164 = vpop.permute.xlu0 %3163
      %3165 = vrot.lane.b32.xlu0 %v3125, 96
      %v3166 = vpop.permute.xlu0 %3165
      %3167 = vrot.lane.b32.xlu0 %v3126, 96
      %v3168 = vpop.permute.xlu0 %3167
      %3169 = vrot.lane.b32.xlu0 %v3127, 96
      %v3170 = vpop.permute.xlu0 %3169
      %3171 = vrot.lane.b32.xlu0 %v3128, 96
      %v3172 = vpop.permute.xlu0 %3171
      %3173 = vrot.lane.b32.xlu0 %v3129, 96
      %v3174 = vpop.permute.xlu0 %3173
      %3175 = vrot.lane.b32.xlu0 %v3130, 96
      %v3176 = vpop.permute.xlu0 %3175
      %3177 = vrot.lane.b32.xlu0 %v3131, 96
      %v3178 = vpop.permute.xlu0 %3177
      %3179 = vrot.lane.b32.xlu0 %v3132, 96
      %v3180 = vpop.permute.xlu0 %3179
      %3197 = vst.msk [vmem:[#allocation4 + $0x8] sm:$0xff] %vm698, %v3150
      %3198 = vst.msk [vmem:[#allocation4 + $0x20] sm:$0xff] %vm698, %v3152
      %3199 = vst.msk [vmem:[#allocation4 + $0x38] sm:$0xff] %vm698, %v3154
      %3200 = vst.msk [vmem:[#allocation4 + $0x50] sm:$0xff] %vm698, %v3156
      %3201 = vst.msk [vmem:[#allocation4 + $0x68] sm:$0xff] %vm698, %v3158
      %3202 = vst.msk [vmem:[#allocation4 + $0x80] sm:$0xff] %vm698, %v3160
      %3203 = vst.msk [vmem:[#allocation4 + $0x98] sm:$0xff] %vm698, %v3162
      %3204 = vst.msk [vmem:[#allocation4 + $0xb0] sm:$0xff] %vm698, %v3164
      %3205 = vst.msk [vmem:[#allocation4 + $0xc8] sm:$0xff] %vm698, %v3166
      %3206 = vst.msk [vmem:[#allocation4 + $0xe0] sm:$0xff] %vm698, %v3168
      %3207 = vst.msk [vmem:[#allocation4 + $0xf8] sm:$0xff] %vm698, %v3170
      %3208 = vst.msk [vmem:[#allocation4 + $0x110] sm:$0xff] %vm698, %v3172
      %3209 = vst.msk [vmem:[#allocation4 + $0x128] sm:$0xff] %vm698, %v3174
      %3210 = vst.msk [vmem:[#allocation4 + $0x140] sm:$0xff] %vm698, %v3176
      %3211 = vst.msk [vmem:[#allocation4 + $0x158] sm:$0xff] %vm698, %v3178
      %3212 = vst.msk [vmem:[#allocation4 + $0x170] sm:$0xff] %vm698, %v3180
      %v3213 = vld [vmem:[%s3020 + $0x2] sm:$0xff]
      %v3214 = vld [vmem:[%s3020 + $0xa] sm:$0xff]
      %v3215 = vld [vmem:[%s3020 + $0x1a] sm:$0xff]
      %v3216 = vld [vmem:[%s3020 + $0x22] sm:$0xff]
      %v3217 = vld [vmem:[%s3020 + $0x32] sm:$0xff]
      %v3218 = vld [vmem:[%s3020 + $0x3a] sm:$0xff]
      %v3219 = vld [vmem:[%s3020 + $0x4a] sm:$0xff]
      %v3220 = vld [vmem:[%s3020 + $0x52] sm:$0xff]
      %v3221 = vld [vmem:[%s3020 + $0x62] sm:$0xff]
      %v3222 = vld [vmem:[%s3020 + $0x6a] sm:$0xff]
      %v3223 = vld [vmem:[%s3020 + $0x7a] sm:$0xff]
      %v3224 = vld [vmem:[%s3020 + $0x82] sm:$0xff]
      %v3225 = vld [vmem:[%s3020 + $0x92] sm:$0xff]
      %v3226 = vld [vmem:[%s3020 + $0x9a] sm:$0xff]
      %v3227 = vld [vmem:[%s3020 + $0xaa] sm:$0xff]
      %v3228 = vld [vmem:[%s3020 + $0xb2] sm:$0xff]
      %3229 = vst.msk [vmem:[#allocation4 + $0x10] sm:$0xff] %vm406, %v3213
      %3230 = vst.msk [vmem:[#allocation4 + $0x28] sm:$0xff] %vm406, %v3214
      %3231 = vst.msk [vmem:[#allocation4 + $0x40] sm:$0xff] %vm406, %v3215
      %3232 = vst.msk [vmem:[#allocation4 + $0x58] sm:$0xff] %vm406, %v3216
      %3233 = vst.msk [vmem:[#allocation4 + $0x70] sm:$0xff] %vm406, %v3217
      %3234 = vst.msk [vmem:[#allocation4 + $0x88] sm:$0xff] %vm406, %v3218
      %3235 = vst.msk [vmem:[#allocation4 + $0xa0] sm:$0xff] %vm406, %v3219
      %3236 = vst.msk [vmem:[#allocation4 + $0xb8] sm:$0xff] %vm406, %v3220
      %3237 = vst.msk [vmem:[#allocation4 + $0xd0] sm:$0xff] %vm406, %v3221
      %3238 = vst.msk [vmem:[#allocation4 + $0xe8] sm:$0xff] %vm406, %v3222
      %3239 = vst.msk [vmem:[#allocation4 + $0x100] sm:$0xff] %vm406, %v3223
      %3240 = vst.msk [vmem:[#allocation4 + $0x118] sm:$0xff] %vm406, %v3224
      %3241 = vst.msk [vmem:[#allocation4 + $0x130] sm:$0xff] %vm406, %v3225
      %3242 = vst.msk [vmem:[#allocation4 + $0x148] sm:$0xff] %vm406, %v3226
      %3243 = vst.msk [vmem:[#allocation4 + $0x160] sm:$0xff] %vm406, %v3227
      %3244 = vst.msk [vmem:[#allocation4 + $0x178] sm:$0xff] %vm406, %v3228
      %v3245 = vld [vmem:[#allocation4] sm:$0xff]
      %v3246 = vld [vmem:[#allocation4 + $0x8] sm:$0xff]
      %v3247 = vld [vmem:[#allocation4 + $0x10] sm:$0xff]
      %v3248 = vld [vmem:[#allocation4 + $0x18] sm:$0xff]
      %v3249 = vld [vmem:[#allocation4 + $0x20] sm:$0xff]
      %v3250 = vld [vmem:[#allocation4 + $0x28] sm:$0xff]
      %v3251 = vld [vmem:[#allocation4 + $0x30] sm:$0xff]
      %v3252 = vld [vmem:[#allocation4 + $0x38] sm:$0xff]
      %v3253 = vld [vmem:[#allocation4 + $0x40] sm:$0xff]
      %v3254 = vld [vmem:[#allocation4 + $0x48] sm:$0xff]
      %v3255 = vld [vmem:[#allocation4 + $0x50] sm:$0xff]
      %v3256 = vld [vmem:[#allocation4 + $0x58] sm:$0xff]
      %v3257 = vld [vmem:[#allocation4 + $0x60] sm:$0xff]
      %v3258 = vld [vmem:[#allocation4 + $0x68] sm:$0xff]
      %v3259 = vld [vmem:[#allocation4 + $0x70] sm:$0xff]
      %v3260 = vld [vmem:[#allocation4 + $0x78] sm:$0xff]
      %v3261 = vld [vmem:[#allocation4 + $0x80] sm:$0xff]
      %v3262 = vld [vmem:[#allocation4 + $0x88] sm:$0xff]
      %v3263 = vld [vmem:[#allocation4 + $0x90] sm:$0xff]
      %v3264 = vld [vmem:[#allocation4 + $0x98] sm:$0xff]
      %v3265 = vld [vmem:[#allocation4 + $0xa0] sm:$0xff]
      %v3266 = vld [vmem:[#allocation4 + $0xa8] sm:$0xff]
      %v3267 = vld [vmem:[#allocation4 + $0xb0] sm:$0xff]
      %v3268 = vld [vmem:[#allocation4 + $0xb8] sm:$0xff]
      %v3269 = vld [vmem:[#allocation4 + $0xc0] sm:$0xff]
      %v3270 = vld [vmem:[#allocation4 + $0xc8] sm:$0xff]
      %v3271 = vld [vmem:[#allocation4 + $0xd0] sm:$0xff]
      %v3272 = vld [vmem:[#allocation4 + $0xd8] sm:$0xff]
      %v3273 = vld [vmem:[#allocation4 + $0xe0] sm:$0xff]
      %v3274 = vld [vmem:[#allocation4 + $0xe8] sm:$0xff]
      %v3275 = vld [vmem:[#allocation4 + $0xf0] sm:$0xff]
      %v3276 = vld [vmem:[#allocation4 + $0xf8] sm:$0xff]
      %v3277 = vld [vmem:[#allocation4 + $0x100] sm:$0xff]
      %v3278 = vld [vmem:[#allocation4 + $0x108] sm:$0xff]
      %v3279 = vld [vmem:[#allocation4 + $0x110] sm:$0xff]
      %v3280 = vld [vmem:[#allocation4 + $0x118] sm:$0xff]
      %v3281 = vld [vmem:[#allocation4 + $0x120] sm:$0xff]
      %v3282 = vld [vmem:[#allocation4 + $0x128] sm:$0xff]
      %v3283 = vld [vmem:[#allocation4 + $0x130] sm:$0xff]
      %v3284 = vld [vmem:[#allocation4 + $0x138] sm:$0xff]
      %v3285 = vld [vmem:[#allocation4 + $0x140] sm:$0xff]
      %v3286 = vld [vmem:[#allocation4 + $0x148] sm:$0xff]
      %v3287 = vld [vmem:[#allocation4 + $0x150] sm:$0xff]
      %v3288 = vld [vmem:[#allocation4 + $0x158] sm:$0xff]
      %v3289 = vld [vmem:[#allocation4 + $0x160] sm:$0xff]
      %v3290 = vld [vmem:[#allocation4 + $0x168] sm:$0xff]
      %v3291 = vld [vmem:[#allocation4 + $0x170] sm:$0xff]
      %v3292 = vld [vmem:[#allocation4 + $0x178] sm:$0xff]
      %v3293 = vpack.c.bf16 %v3248, %v3245
      %v3294 = vpack.c.bf16 %v3249, %v3246
      %v3295 = vpack.c.bf16 %v3250, %v3247
      %v3296 = vpack.c.bf16 %v3254, %v3251
      %v3297 = vpack.c.bf16 %v3255, %v3252
      %v3298 = vpack.c.bf16 %v3256, %v3253
      %v3299 = vpack.c.bf16 %v3260, %v3257
      %v3300 = vpack.c.bf16 %v3261, %v3258
      %v3301 = vpack.c.bf16 %v3262, %v3259
      %v3302 = vpack.c.bf16 %v3266, %v3263
      %v3303 = vpack.c.bf16 %v3267, %v3264
      %v3304 = vpack.c.bf16 %v3268, %v3265
      %v3305 = vpack.c.bf16 %v3272, %v3269
      %v3306 = vpack.c.bf16 %v3273, %v3270
      %v3307 = vpack.c.bf16 %v3274, %v3271
      %v3308 = vpack.c.bf16 %v3278, %v3275
      %v3309 = vpack.c.bf16 %v3279, %v3276
      %v3310 = vpack.c.bf16 %v3280, %v3277
      %v3311 = vpack.c.bf16 %v3284, %v3281
      %v3312 = vpack.c.bf16 %v3285, %v3282
      %v3313 = vpack.c.bf16 %v3286, %v3283
      %v3314 = vpack.c.bf16 %v3290, %v3287
      %v3315 = vpack.c.bf16 %v3291, %v3288
      %v3316 = vpack.c.bf16 %v3292, %v3289
      %v3317 = vld [vmem:[%s251 + $0x80] sm:$0xff]
      %v3318 = vld [vmem:[%s251 + $0x88] sm:$0xff]
      %v3319 = vld [vmem:[%s251 + $0x90] sm:$0xff]
      %v3320 = vld [vmem:[%s251 + $0x98] sm:$0xff]
      %v3321 = vld [vmem:[%s251 + $0xa0] sm:$0xff]
      %v3322 = vld [vmem:[%s251 + $0xa8] sm:$0xff]
      %v3323 = vld [vmem:[%s251 + $0xb0] sm:$0xff]
      %v3324 = vld [vmem:[%s251 + $0xb8] sm:$0xff]
      %v3325 = vld [vmem:[%s251 + $0xc0] sm:$0xff]
      %v3326 = vld [vmem:[%s251 + $0xc8] sm:$0xff]
      %v3327 = vld [vmem:[%s251 + $0xd0] sm:$0xff]
      %v3328 = vld [vmem:[%s251 + $0xd8] sm:$0xff]
      %v3329 = vld [vmem:[%s251 + $0xe0] sm:$0xff]
      %v3330 = vld [vmem:[%s251 + $0xe8] sm:$0xff]
      %v3331 = vld [vmem:[%s251 + $0xf0] sm:$0xff]
      %v3332 = vld [vmem:[%s251 + $0xf8] sm:$0xff]
      %v3334 = vsel %vm406, %v3295, 0
      %v3337 = vsel %vm406, %v3298, 0
      %v3340 = vsel %vm406, %v3301, 0
      %v3343 = vsel %vm406, %v3304, 0
      %v3346 = vsel %vm406, %v3307, 0
      %v3349 = vsel %vm406, %v3310, 0
      %v3352 = vsel %vm406, %v3313, 0
      %v3355 = vsel %vm406, %v3316, 0
      %3357 = vmatprep.subr.bf16.mxu0 0
      %3358 = vmatpush1.bf16.msra.mxu0 %v1235
      %3359 = vmatprep.subr.bf16.mxu0 0
      %3360 = vmatpush1.bf16.msra.mxu0 %v1234
      %3361 = vmatprep.subr.bf16.mxu0 0
      %3362 = vmatpush1.bf16.msra.mxu0 %v1233
      %3363 = vmatprep.subr.bf16.mxu0 0
      %3364 = vmatpush1.bf16.msra.mxu0 %v1232
      %3365 = vmatprep.subr.bf16.mxu0 0
      %3366 = vmatpush1.bf16.msra.mxu0 %v1231
      %3367 = vmatprep.subr.bf16.mxu0 0
      %3368 = vmatpush1.bf16.msra.mxu0 %v1230
      %3369 = vmatprep.subr.bf16.mxu0 0
      %3370 = vmatpush1.bf16.msra.mxu0 %v1229
      %3371 = vmatprep.subr.bf16.mxu0 0
      %3372 = vmatpush1.bf16.msra.mxu0 %v1228
      %3373 = vmatprep.subr.bf16.mxu0 0
      %3374 = vmatpush2.bf16.msra.mxu0 %v1243
      %3375 = vmatprep.subr.bf16.mxu0 0
      %3376 = vmatpush2.bf16.msra.mxu0 %v1242
      %3377 = vmatprep.subr.bf16.mxu0 0
      %3378 = vmatpush2.bf16.msra.mxu0 %v1241
      %3379 = vmatprep.subr.bf16.mxu0 0
      %3380 = vmatpush2.bf16.msra.mxu0 %v1240
      %3381 = vmatprep.subr.bf16.mxu0 0
      %3382 = vmatpush2.bf16.msra.mxu0 %v1239
      %3383 = vmatprep.subr.bf16.mxu0 0
      %3384 = vmatpush2.bf16.msra.mxu0 %v1238
      %3385 = vmatprep.subr.bf16.mxu0 0
      %3386 = vmatpush2.bf16.msra.mxu0 %v1237
      %3387 = vmatprep.subr.bf16.mxu0 0
      %3388 = vmatpush2.bf16.msra.mxu0 %v1236
      %3389 = vmatprep.mubr.bf16.mxu0 %v3294
      %3390 = vmatmul.mubr.bf16.gmra.mxu0 %v3293
      %v3391 = vpop.f32.mrf.mxu0
      %v3392 = vadd.f32 %v3317, %v3391
      %v3393 = vpop.f32.mrf.mxu0
      %v3394 = vpop.f32.mrf.mxu0
      %v3395 = vadd.f32 %v3318, %v3394
      %v3396 = vpop.f32.mrf.mxu0
      %3397 = vmatprep.mubr.bf16.mxu0 %v3297
      %3398 = vmatmul.mubr.bf16.gmra.mxu0 %v3296
      %v3399 = vpop.f32.mrf.mxu0
      %v3400 = vadd.f32 %v3319, %v3399
      %v3401 = vpop.f32.mrf.mxu0
      %v3402 = vpop.f32.mrf.mxu0
      %v3403 = vadd.f32 %v3320, %v3402
      %v3404 = vpop.f32.mrf.mxu0
      %3405 = vmatprep.mubr.bf16.mxu0 %v3300
      %3406 = vmatmul.mubr.bf16.gmra.mxu0 %v3299
      %v3407 = vpop.f32.mrf.mxu0
      %v3408 = vadd.f32 %v3321, %v3407
      %v3409 = vpop.f32.mrf.mxu0
      %v3410 = vpop.f32.mrf.mxu0
      %v3411 = vadd.f32 %v3322, %v3410
      %v3412 = vpop.f32.mrf.mxu0
      %3413 = vmatprep.mubr.bf16.mxu0 %v3303
      %3414 = vmatmul.mubr.bf16.gmra.mxu0 %v3302
      %v3415 = vpop.f32.mrf.mxu0
      %v3416 = vadd.f32 %v3323, %v3415
      %v3417 = vpop.f32.mrf.mxu0
      %v3418 = vpop.f32.mrf.mxu0
      %v3419 = vadd.f32 %v3324, %v3418
      %v3420 = vpop.f32.mrf.mxu0
      %3421 = vmatprep.mubr.bf16.mxu0 %v3306
      %3422 = vmatmul.mubr.bf16.gmra.mxu0 %v3305
      %v3423 = vpop.f32.mrf.mxu0
      %v3424 = vadd.f32 %v3325, %v3423
      %v3425 = vpop.f32.mrf.mxu0
      %v3426 = vpop.f32.mrf.mxu0
      %v3427 = vadd.f32 %v3326, %v3426
      %v3428 = vpop.f32.mrf.mxu0
      %3429 = vmatprep.mubr.bf16.mxu0 %v3309
      %3430 = vmatmul.mubr.bf16.gmra.mxu0 %v3308
      %v3431 = vpop.f32.mrf.mxu0
      %v3432 = vadd.f32 %v3327, %v3431
      %v3433 = vpop.f32.mrf.mxu0
      %v3434 = vpop.f32.mrf.mxu0
      %v3435 = vadd.f32 %v3328, %v3434
      %v3436 = vpop.f32.mrf.mxu0
      %3437 = vmatprep.mubr.bf16.mxu0 %v3312
      %3438 = vmatmul.mubr.bf16.gmra.mxu0 %v3311
      %v3439 = vpop.f32.mrf.mxu0
      %v3440 = vadd.f32 %v3329, %v3439
      %v3441 = vpop.f32.mrf.mxu0
      %v3442 = vpop.f32.mrf.mxu0
      %v3443 = vadd.f32 %v3330, %v3442
      %v3444 = vpop.f32.mrf.mxu0
      %3445 = vmatprep.mubr.bf16.mxu0 %v3315
      %3446 = vmatmul.mubr.bf16.gmra.mxu0 %v3314
      %v3447 = vpop.f32.mrf.mxu0
      %v3448 = vadd.f32 %v3331, %v3447
      %v3449 = vpop.f32.mrf.mxu0
      %v3450 = vpop.f32.mrf.mxu0
      %v3451 = vadd.f32 %v3332, %v3450
      %v3452 = vpop.f32.mrf.mxu0
      %3453 = vdwg.mxu0
      %3454 = vmatprep.subr.bf16.mxu0 0
      %3455 = vmatpush1.bf16.msra.mxu0 0
      %3456 = vmatprep.subr.bf16.mxu0 0
      %3457 = vmatpush1.bf16.msra.mxu0 0
      %3458 = vmatprep.subr.bf16.mxu0 0
      %3459 = vmatpush1.bf16.msra.mxu0 0
      %3460 = vmatprep.subr.bf16.mxu0 0
      %3461 = vmatpush1.bf16.msra.mxu0 0
      %3462 = vmatprep.subr.bf16.mxu0 0
      %3463 = vmatpush1.bf16.msra.mxu0 0
      %3464 = vmatprep.subr.bf16.mxu0 0
      %3465 = vmatpush1.bf16.msra.mxu0 0
      %3466 = vmatprep.subr.bf16.mxu0 0
      %3467 = vmatpush1.bf16.msra.mxu0 %v1245
      %3468 = vmatprep.subr.bf16.mxu0 0
      %3469 = vmatpush1.bf16.msra.mxu0 %v1244
      %3470 = vmatprep.subr.bf16.mxu0 0
      %3471 = vmatpush2.bf16.msra.mxu0 0
      %3472 = vmatprep.subr.bf16.mxu0 0
      %3473 = vmatpush2.bf16.msra.mxu0 0
      %3474 = vmatprep.subr.bf16.mxu0 0
      %3475 = vmatpush2.bf16.msra.mxu0 0
      %3476 = vmatprep.subr.bf16.mxu0 0
      %3477 = vmatpush2.bf16.msra.mxu0 0
      %3478 = vmatprep.subr.bf16.mxu0 0
      %3479 = vmatpush2.bf16.msra.mxu0 0
      %3480 = vmatprep.subr.bf16.mxu0 0
      %3481 = vmatpush2.bf16.msra.mxu0 0
      %3482 = vmatprep.subr.bf16.mxu0 0
      %3483 = vmatpush2.bf16.msra.mxu0 0
      %3484 = vmatprep.subr.bf16.mxu0 0
      %3485 = vmatpush2.bf16.msra.mxu0 0
      %3486 = vmatprep.mubr.bf16.mxu0 0
      %3487 = vmatmul.mubr.bf16.gmra.mxu0 %v3334
      %v3488 = vpop.f32.mrf.mxu0
      %v3489 = vadd.f32 %v3392, %v3488
      %v3490 = vpop.f32.mrf.mxu0
      %v3491 = vpop.f32.mrf.mxu0
      %v3492 = vadd.f32 %v3395, %v3491
      %v3493 = vpop.f32.mrf.mxu0
      %3494 = vmatprep.mubr.bf16.mxu0 0
      %3495 = vmatmul.mubr.bf16.gmra.mxu0 %v3337
      %v3496 = vpop.f32.mrf.mxu0
      %v3497 = vadd.f32 %v3400, %v3496
      %v3498 = vpop.f32.mrf.mxu0
      %v3499 = vpop.f32.mrf.mxu0
      %v3500 = vadd.f32 %v3403, %v3499
      %v3501 = vpop.f32.mrf.mxu0
      %3502 = vmatprep.mubr.bf16.mxu0 0
      %3503 = vmatmul.mubr.bf16.gmra.mxu0 %v3340
      %v3504 = vpop.f32.mrf.mxu0
      %v3505 = vadd.f32 %v3408, %v3504
      %v3506 = vpop.f32.mrf.mxu0
      %v3507 = vpop.f32.mrf.mxu0
      %v3508 = vadd.f32 %v3411, %v3507
      %v3509 = vpop.f32.mrf.mxu0
      %3510 = vmatprep.mubr.bf16.mxu0 0
      %3511 = vmatmul.mubr.bf16.gmra.mxu0 %v3343
      %v3512 = vpop.f32.mrf.mxu0
      %v3513 = vadd.f32 %v3416, %v3512
      %v3514 = vpop.f32.mrf.mxu0
      %v3515 = vpop.f32.mrf.mxu0
      %v3516 = vadd.f32 %v3419, %v3515
      %v3517 = vpop.f32.mrf.mxu0
      %3518 = vmatprep.mubr.bf16.mxu0 0
      %3519 = vmatmul.mubr.bf16.gmra.mxu0 %v3346
      %v3520 = vpop.f32.mrf.mxu0
      %v3521 = vadd.f32 %v3424, %v3520
      %v3522 = vpop.f32.mrf.mxu0
      %v3523 = vpop.f32.mrf.mxu0
      %v3524 = vadd.f32 %v3427, %v3523
      %v3525 = vpop.f32.mrf.mxu0
      %3526 = vmatprep.mubr.bf16.mxu0 0
      %3527 = vmatmul.mubr.bf16.gmra.mxu0 %v3349
      %v3528 = vpop.f32.mrf.mxu0
      %v3529 = vadd.f32 %v3432, %v3528
      %v3530 = vpop.f32.mrf.mxu0
      %v3531 = vpop.f32.mrf.mxu0
      %v3532 = vadd.f32 %v3435, %v3531
      %v3533 = vpop.f32.mrf.mxu0
      %3534 = vmatprep.mubr.bf16.mxu0 0
      %3535 = vmatmul.mubr.bf16.gmra.mxu0 %v3352
      %v3536 = vpop.f32.mrf.mxu0
      %v3537 = vadd.f32 %v3440, %v3536
      %v3538 = vpop.f32.mrf.mxu0
      %v3539 = vpop.f32.mrf.mxu0
      %v3540 = vadd.f32 %v3443, %v3539
      %v3541 = vpop.f32.mrf.mxu0
      %3542 = vmatprep.mubr.bf16.mxu0 0
      %3543 = vmatmul.mubr.bf16.gmra.mxu0 %v3355
      %v3544 = vpop.f32.mrf.mxu0
      %v3545 = vadd.f32 %v3448, %v3544
      %v3546 = vpop.f32.mrf.mxu0
      %v3547 = vpop.f32.mrf.mxu0
      %v3548 = vadd.f32 %v3451, %v3547
      %v3549 = vpop.f32.mrf.mxu0
      %3550 = vdwg.mxu0
      %v3551 = vld [vmem:[#allocation3 + $0x80] sm:$0xff]
      %v3552 = vld [vmem:[#allocation3 + $0x88] sm:$0xff]
      %v3553 = vld [vmem:[#allocation3 + $0x90] sm:$0xff]
      %v3554 = vld [vmem:[#allocation3 + $0x98] sm:$0xff]
      %v3555 = vld [vmem:[#allocation3 + $0xa0] sm:$0xff]
      %v3556 = vld [vmem:[#allocation3 + $0xa8] sm:$0xff]
      %v3557 = vld [vmem:[#allocation3 + $0xb0] sm:$0xff]
      %v3558 = vld [vmem:[#allocation3 + $0xb8] sm:$0xff]
      %v3559 = vld [vmem:[#allocation3 + $0xc0] sm:$0xff]
      %v3560 = vld [vmem:[#allocation3 + $0xc8] sm:$0xff]
      %v3561 = vld [vmem:[#allocation3 + $0xd0] sm:$0xff]
      %v3562 = vld [vmem:[#allocation3 + $0xd8] sm:$0xff]
      %v3563 = vld [vmem:[#allocation3 + $0xe0] sm:$0xff]
      %v3564 = vld [vmem:[#allocation3 + $0xe8] sm:$0xff]
      %v3565 = vld [vmem:[#allocation3 + $0xf0] sm:$0xff]
      %v3566 = vld [vmem:[#allocation3 + $0xf8] sm:$0xff]
      %v3567 = vld [vmem:[%s2 + $0x80] sm:$0xff]
      %v3568 = vld [vmem:[%s2 + $0x88] sm:$0xff]
      %v3569 = vld [vmem:[%s2 + $0x90] sm:$0xff]
      %v3570 = vld [vmem:[%s2 + $0x98] sm:$0xff]
      %v3571 = vld [vmem:[%s2 + $0xa0] sm:$0xff]
      %v3572 = vld [vmem:[%s2 + $0xa8] sm:$0xff]
      %v3573 = vld [vmem:[%s2 + $0xb0] sm:$0xff]
      %v3574 = vld [vmem:[%s2 + $0xb8] sm:$0xff]
      %v3575 = vld [vmem:[%s2 + $0xc0] sm:$0xff]
      %v3576 = vld [vmem:[%s2 + $0xc8] sm:$0xff]
      %v3577 = vld [vmem:[%s2 + $0xd0] sm:$0xff]
      %v3578 = vld [vmem:[%s2 + $0xd8] sm:$0xff]
      %v3579 = vld [vmem:[%s2 + $0xe0] sm:$0xff]
      %v3580 = vld [vmem:[%s2 + $0xe8] sm:$0xff]
      %v3581 = vld [vmem:[%s2 + $0xf0] sm:$0xff]
      %v3582 = vld [vmem:[%s2 + $0xf8] sm:$0xff]
      %v3583 = vmul.f32 %v3567, %v3551
      %v3584 = vmul.f32 %v3568, %v3552
      %v3585 = vmul.f32 %v3569, %v3553
      %v3586 = vmul.f32 %v3570, %v3554
      %v3587 = vmul.f32 %v3571, %v3555
      %v3588 = vmul.f32 %v3572, %v3556
      %v3589 = vmul.f32 %v3573, %v3557
      %v3590 = vmul.f32 %v3574, %v3558
      %v3591 = vmul.f32 %v3575, %v3559
      %v3592 = vmul.f32 %v3576, %v3560
      %v3593 = vmul.f32 %v3577, %v3561
      %v3594 = vmul.f32 %v3578, %v3562
      %v3595 = vmul.f32 %v3579, %v3563
      %v3596 = vmul.f32 %v3580, %v3564
      %v3597 = vmul.f32 %v3581, %v3565
      %v3598 = vmul.f32 %v3582, %v3566
      %v3599 = vadd.f32 %v3489, %v3583
      %v3600 = vadd.f32 %v3492, %v3584
      %v3601 = vadd.f32 %v3497, %v3585
      %v3602 = vadd.f32 %v3500, %v3586
      %v3603 = vadd.f32 %v3505, %v3587
      %v3604 = vadd.f32 %v3508, %v3588
      %v3605 = vadd.f32 %v3513, %v3589
      %v3606 = vadd.f32 %v3516, %v3590
      %v3607 = vadd.f32 %v3521, %v3591
      %v3608 = vadd.f32 %v3524, %v3592
      %v3609 = vadd.f32 %v3529, %v3593
      %v3610 = vadd.f32 %v3532, %v3594
      %v3611 = vadd.f32 %v3537, %v3595
      %v3612 = vadd.f32 %v3540, %v3596
      %v3613 = vadd.f32 %v3545, %v3597
      %v3614 = vadd.f32 %v3548, %v3598
      %v3615 = vxor.u32 %v3599, 2147483648
      %v3616 = vxor.u32 %v3600, 2147483648
      %v3617 = vxor.u32 %v3601, 2147483648
      %v3618 = vxor.u32 %v3602, 2147483648
      %v3619 = vxor.u32 %v3603, 2147483648
      %v3620 = vxor.u32 %v3604, 2147483648
      %v3621 = vxor.u32 %v3605, 2147483648
      %v3622 = vxor.u32 %v3606, 2147483648
      %v3623 = vxor.u32 %v3607, 2147483648
      %v3624 = vxor.u32 %v3608, 2147483648
      %v3625 = vxor.u32 %v3609, 2147483648
      %v3626 = vxor.u32 %v3610, 2147483648
      %v3627 = vxor.u32 %v3611, 2147483648
      %v3628 = vxor.u32 %v3612, 2147483648
      %v3629 = vxor.u32 %v3613, 2147483648
      %v3630 = vxor.u32 %v3614, 2147483648
      %v3631 = vmul.f32 %v3615, 1.442695
      %v3632 = vpow.pop %v3631
      %v3633 = vmul.f32 %v3616, 1.442695
      %v3634 = vpow.pop %v3633
      %v3635 = vmul.f32 %v3617, 1.442695
      %v3636 = vpow.pop %v3635
      %v3637 = vmul.f32 %v3618, 1.442695
      %v3638 = vpow.pop %v3637
      %v3639 = vmul.f32 %v3619, 1.442695
      %v3640 = vpow.pop %v3639
      %v3641 = vmul.f32 %v3620, 1.442695
      %v3642 = vpow.pop %v3641
      %v3643 = vmul.f32 %v3621, 1.442695
      %v3644 = vpow.pop %v3643
      %v3645 = vmul.f32 %v3622, 1.442695
      %v3646 = vpow.pop %v3645
      %v3647 = vmul.f32 %v3623, 1.442695
      %v3648 = vpow.pop %v3647
      %v3649 = vmul.f32 %v3624, 1.442695
      %v3650 = vpow.pop %v3649
      %v3651 = vmul.f32 %v3625, 1.442695
      %v3652 = vpow.pop %v3651
      %v3653 = vmul.f32 %v3626, 1.442695
      %v3654 = vpow.pop %v3653
      %v3655 = vmul.f32 %v3627, 1.442695
      %v3656 = vpow.pop %v3655
      %v3657 = vmul.f32 %v3628, 1.442695
      %v3658 = vpow.pop %v3657
      %v3659 = vmul.f32 %v3629, 1.442695
      %v3660 = vpow.pop %v3659
      %v3661 = vmul.f32 %v3630, 1.442695
      %v3662 = vpow.pop %v3661
      %v3663 = vadd.f32 %v3632, 1.0
      %v3664 = vadd.f32 %v3634, 1.0
      %v3665 = vadd.f32 %v3636, 1.0
      %v3666 = vadd.f32 %v3638, 1.0
      %v3667 = vadd.f32 %v3640, 1.0
      %v3668 = vadd.f32 %v3642, 1.0
      %v3669 = vadd.f32 %v3644, 1.0
      %v3670 = vadd.f32 %v3646, 1.0
      %v3671 = vadd.f32 %v3648, 1.0
      %v3672 = vadd.f32 %v3650, 1.0
      %v3673 = vadd.f32 %v3652, 1.0
      %v3674 = vadd.f32 %v3654, 1.0
      %v3675 = vadd.f32 %v3656, 1.0
      %v3676 = vadd.f32 %v3658, 1.0
      %v3677 = vadd.f32 %v3660, 1.0
      %v3678 = vadd.f32 %v3662, 1.0
      %v3679 = vrcp.pop %v3663
      %v3680 = vmul.f32 1.0, %v3679
      %v3681 = vrcp.pop %v3664
      %v3682 = vmul.f32 1.0, %v3681
      %v3683 = vrcp.pop %v3665
      %v3684 = vmul.f32 1.0, %v3683
      %v3685 = vrcp.pop %v3666
      %v3686 = vmul.f32 1.0, %v3685
      %v3687 = vrcp.pop %v3667
      %v3688 = vmul.f32 1.0, %v3687
      %v3689 = vrcp.pop %v3668
      %v3690 = vmul.f32 1.0, %v3689
      %v3691 = vrcp.pop %v3669
      %v3692 = vmul.f32 1.0, %v3691
      %v3693 = vrcp.pop %v3670
      %v3694 = vmul.f32 1.0, %v3693
      %v3695 = vrcp.pop %v3671
      %v3696 = vmul.f32 1.0, %v3695
      %v3697 = vrcp.pop %v3672
      %v3698 = vmul.f32 1.0, %v3697
      %v3699 = vrcp.pop %v3673
      %v3700 = vmul.f32 1.0, %v3699
      %v3701 = vrcp.pop %v3674
      %v3702 = vmul.f32 1.0, %v3701
      %v3703 = vrcp.pop %v3675
      %v3704 = vmul.f32 1.0, %v3703
      %v3705 = vrcp.pop %v3676
      %v3706 = vmul.f32 1.0, %v3705
      %v3707 = vrcp.pop %v3677
      %v3708 = vmul.f32 1.0, %v3707
      %v3709 = vrcp.pop %v3678
      %v3710 = vmul.f32 1.0, %v3709
      %v3711 = vld [vmem:[%s3 + $0x80] sm:$0xff]
      %v3712 = vld [vmem:[%s3 + $0x88] sm:$0xff]
      %v3713 = vld [vmem:[%s3 + $0x90] sm:$0xff]
      %v3714 = vld [vmem:[%s3 + $0x98] sm:$0xff]
      %v3715 = vld [vmem:[%s3 + $0xa0] sm:$0xff]
      %v3716 = vld [vmem:[%s3 + $0xa8] sm:$0xff]
      %v3717 = vld [vmem:[%s3 + $0xb0] sm:$0xff]
      %v3718 = vld [vmem:[%s3 + $0xb8] sm:$0xff]
      %v3719 = vld [vmem:[%s3 + $0xc0] sm:$0xff]
      %v3720 = vld [vmem:[%s3 + $0xc8] sm:$0xff]
      %v3721 = vld [vmem:[%s3 + $0xd0] sm:$0xff]
      %v3722 = vld [vmem:[%s3 + $0xd8] sm:$0xff]
      %v3723 = vld [vmem:[%s3 + $0xe0] sm:$0xff]
      %v3724 = vld [vmem:[%s3 + $0xe8] sm:$0xff]
      %v3725 = vld [vmem:[%s3 + $0xf0] sm:$0xff]
      %v3726 = vld [vmem:[%s3 + $0xf8] sm:$0xff]
      %v3727 = vmul.f32 %v3711, %v3551
      %v3728 = vmul.f32 %v3712, %v3552
      %v3729 = vmul.f32 %v3713, %v3553
      %v3730 = vmul.f32 %v3714, %v3554
      %v3731 = vmul.f32 %v3715, %v3555
      %v3732 = vmul.f32 %v3716, %v3556
      %v3733 = vmul.f32 %v3717, %v3557
      %v3734 = vmul.f32 %v3718, %v3558
      %v3735 = vmul.f32 %v3719, %v3559
      %v3736 = vmul.f32 %v3720, %v3560
      %v3737 = vmul.f32 %v3721, %v3561
      %v3738 = vmul.f32 %v3722, %v3562
      %v3739 = vmul.f32 %v3723, %v3563
      %v3740 = vmul.f32 %v3724, %v3564
      %v3741 = vmul.f32 %v3725, %v3565
      %v3742 = vmul.f32 %v3726, %v3566
      %3759 = vrot.lane.b32.xlu0 %v3727, 32
      %v3760 = vpop.permute.xlu0 %3759
      %3761 = vrot.lane.b32.xlu0 %v3728, 32
      %v3762 = vpop.permute.xlu0 %3761
      %3763 = vrot.lane.b32.xlu0 %v3729, 32
      %v3764 = vpop.permute.xlu0 %3763
      %3765 = vrot.lane.b32.xlu0 %v3730, 32
      %v3766 = vpop.permute.xlu0 %3765
      %3767 = vrot.lane.b32.xlu0 %v3731, 32
      %v3768 = vpop.permute.xlu0 %3767
      %3769 = vrot.lane.b32.xlu0 %v3732, 32
      %v3770 = vpop.permute.xlu0 %3769
      %3771 = vrot.lane.b32.xlu0 %v3733, 32
      %v3772 = vpop.permute.xlu0 %3771
      %3773 = vrot.lane.b32.xlu0 %v3734, 32
      %v3774 = vpop.permute.xlu0 %3773
      %3775 = vrot.lane.b32.xlu0 %v3735, 32
      %v3776 = vpop.permute.xlu0 %3775
      %3777 = vrot.lane.b32.xlu0 %v3736, 32
      %v3778 = vpop.permute.xlu0 %3777
      %3779 = vrot.lane.b32.xlu0 %v3737, 32
      %v3780 = vpop.permute.xlu0 %3779
      %3781 = vrot.lane.b32.xlu0 %v3738, 32
      %v3782 = vpop.permute.xlu0 %3781
      %3783 = vrot.lane.b32.xlu0 %v3739, 32
      %v3784 = vpop.permute.xlu0 %3783
      %3785 = vrot.lane.b32.xlu0 %v3740, 32
      %v3786 = vpop.permute.xlu0 %3785
      %3787 = vrot.lane.b32.xlu0 %v3741, 32
      %v3788 = vpop.permute.xlu0 %3787
      %3789 = vrot.lane.b32.xlu0 %v3742, 32
      %v3790 = vpop.permute.xlu0 %3789
      %v3807 = vadd.f32 %v3489, %v3760
      %v3808 = vadd.f32 %v3492, %v3762
      %v3809 = vadd.f32 %v3497, %v3764
      %v3810 = vadd.f32 %v3500, %v3766
      %v3811 = vadd.f32 %v3505, %v3768
      %v3812 = vadd.f32 %v3508, %v3770
      %v3813 = vadd.f32 %v3513, %v3772
      %v3814 = vadd.f32 %v3516, %v3774
      %v3815 = vadd.f32 %v3521, %v3776
      %v3816 = vadd.f32 %v3524, %v3778
      %v3817 = vadd.f32 %v3529, %v3780
      %v3818 = vadd.f32 %v3532, %v3782
      %v3819 = vadd.f32 %v3537, %v3784
      %v3820 = vadd.f32 %v3540, %v3786
      %v3821 = vadd.f32 %v3545, %v3788
      %v3822 = vadd.f32 %v3548, %v3790
      %v3823 = vxor.u32 %v3807, 2147483648
      %v3824 = vxor.u32 %v3808, 2147483648
      %v3825 = vxor.u32 %v3809, 2147483648
      %v3826 = vxor.u32 %v3810, 2147483648
      %v3827 = vxor.u32 %v3811, 2147483648
      %v3828 = vxor.u32 %v3812, 2147483648
      %v3829 = vxor.u32 %v3813, 2147483648
      %v3830 = vxor.u32 %v3814, 2147483648
      %v3831 = vxor.u32 %v3815, 2147483648
      %v3832 = vxor.u32 %v3816, 2147483648
      %v3833 = vxor.u32 %v3817, 2147483648
      %v3834 = vxor.u32 %v3818, 2147483648
      %v3835 = vxor.u32 %v3819, 2147483648
      %v3836 = vxor.u32 %v3820, 2147483648
      %v3837 = vxor.u32 %v3821, 2147483648
      %v3838 = vxor.u32 %v3822, 2147483648
      %v3839 = vmul.f32 %v3823, 1.442695
      %v3840 = vpow.pop %v3839
      %v3841 = vmul.f32 %v3824, 1.442695
      %v3842 = vpow.pop %v3841
      %v3843 = vmul.f32 %v3825, 1.442695
      %v3844 = vpow.pop %v3843
      %v3845 = vmul.f32 %v3826, 1.442695
      %v3846 = vpow.pop %v3845
      %v3847 = vmul.f32 %v3827, 1.442695
      %v3848 = vpow.pop %v3847
      %v3849 = vmul.f32 %v3828, 1.442695
      %v3850 = vpow.pop %v3849
      %v3851 = vmul.f32 %v3829, 1.442695
      %v3852 = vpow.pop %v3851
      %v3853 = vmul.f32 %v3830, 1.442695
      %v3854 = vpow.pop %v3853
      %v3855 = vmul.f32 %v3831, 1.442695
      %v3856 = vpow.pop %v3855
      %v3857 = vmul.f32 %v3832, 1.442695
      %v3858 = vpow.pop %v3857
      %v3859 = vmul.f32 %v3833, 1.442695
      %v3860 = vpow.pop %v3859
      %v3861 = vmul.f32 %v3834, 1.442695
      %v3862 = vpow.pop %v3861
      %v3863 = vmul.f32 %v3835, 1.442695
      %v3864 = vpow.pop %v3863
      %v3865 = vmul.f32 %v3836, 1.442695
      %v3866 = vpow.pop %v3865
      %v3867 = vmul.f32 %v3837, 1.442695
      %v3868 = vpow.pop %v3867
      %v3869 = vmul.f32 %v3838, 1.442695
      %v3870 = vpow.pop %v3869
      %v3871 = vadd.f32 %v3840, 1.0
      %v3872 = vadd.f32 %v3842, 1.0
      %v3873 = vadd.f32 %v3844, 1.0
      %v3874 = vadd.f32 %v3846, 1.0
      %v3875 = vadd.f32 %v3848, 1.0
      %v3876 = vadd.f32 %v3850, 1.0
      %v3877 = vadd.f32 %v3852, 1.0
      %v3878 = vadd.f32 %v3854, 1.0
      %v3879 = vadd.f32 %v3856, 1.0
      %v3880 = vadd.f32 %v3858, 1.0
      %v3881 = vadd.f32 %v3860, 1.0
      %v3882 = vadd.f32 %v3862, 1.0
      %v3883 = vadd.f32 %v3864, 1.0
      %v3884 = vadd.f32 %v3866, 1.0
      %v3885 = vadd.f32 %v3868, 1.0
      %v3886 = vadd.f32 %v3870, 1.0
      %v3887 = vrcp.pop %v3871
      %v3888 = vmul.f32 1.0, %v3887
      %v3889 = vrcp.pop %v3872
      %v3890 = vmul.f32 1.0, %v3889
      %v3891 = vrcp.pop %v3873
      %v3892 = vmul.f32 1.0, %v3891
      %v3893 = vrcp.pop %v3874
      %v3894 = vmul.f32 1.0, %v3893
      %v3895 = vrcp.pop %v3875
      %v3896 = vmul.f32 1.0, %v3895
      %v3897 = vrcp.pop %v3876
      %v3898 = vmul.f32 1.0, %v3897
      %v3899 = vrcp.pop %v3877
      %v3900 = vmul.f32 1.0, %v3899
      %v3901 = vrcp.pop %v3878
      %v3902 = vmul.f32 1.0, %v3901
      %v3903 = vrcp.pop %v3879
      %v3904 = vmul.f32 1.0, %v3903
      %v3905 = vrcp.pop %v3880
      %v3906 = vmul.f32 1.0, %v3905
      %v3907 = vrcp.pop %v3881
      %v3908 = vmul.f32 1.0, %v3907
      %v3909 = vrcp.pop %v3882
      %v3910 = vmul.f32 1.0, %v3909
      %v3911 = vrcp.pop %v3883
      %v3912 = vmul.f32 1.0, %v3911
      %v3913 = vrcp.pop %v3884
      %v3914 = vmul.f32 1.0, %v3913
      %v3915 = vrcp.pop %v3885
      %v3916 = vmul.f32 1.0, %v3915
      %v3917 = vrcp.pop %v3886
      %v3918 = vmul.f32 1.0, %v3917
      %3935 = vrot.lane.b32.xlu0 %v3551, 32
      %v3936 = vpop.permute.xlu0 %3935
      %3937 = vrot.lane.b32.xlu0 %v3552, 32
      %v3938 = vpop.permute.xlu0 %3937
      %3939 = vrot.lane.b32.xlu0 %v3553, 32
      %v3940 = vpop.permute.xlu0 %3939
      %3941 = vrot.lane.b32.xlu0 %v3554, 32
      %v3942 = vpop.permute.xlu0 %3941
      %3943 = vrot.lane.b32.xlu0 %v3555, 32
      %v3944 = vpop.permute.xlu0 %3943
      %3945 = vrot.lane.b32.xlu0 %v3556, 32
      %v3946 = vpop.permute.xlu0 %3945
      %3947 = vrot.lane.b32.xlu0 %v3557, 32
      %v3948 = vpop.permute.xlu0 %3947
      %3949 = vrot.lane.b32.xlu0 %v3558, 32
      %v3950 = vpop.permute.xlu0 %3949
      %3951 = vrot.lane.b32.xlu0 %v3559, 32
      %v3952 = vpop.permute.xlu0 %3951
      %3953 = vrot.lane.b32.xlu0 %v3560, 32
      %v3954 = vpop.permute.xlu0 %3953
      %3955 = vrot.lane.b32.xlu0 %v3561, 32
      %v3956 = vpop.permute.xlu0 %3955
      %3957 = vrot.lane.b32.xlu0 %v3562, 32
      %v3958 = vpop.permute.xlu0 %3957
      %3959 = vrot.lane.b32.xlu0 %v3563, 32
      %v3960 = vpop.permute.xlu0 %3959
      %3961 = vrot.lane.b32.xlu0 %v3564, 32
      %v3962 = vpop.permute.xlu0 %3961
      %3963 = vrot.lane.b32.xlu0 %v3565, 32
      %v3964 = vpop.permute.xlu0 %3963
      %3965 = vrot.lane.b32.xlu0 %v3566, 32
      %v3966 = vpop.permute.xlu0 %3965
      %v3983 = vmul.f32 %v3888, %v3936
      %v3984 = vmul.f32 %v3890, %v3938
      %v3985 = vmul.f32 %v3892, %v3940
      %v3986 = vmul.f32 %v3894, %v3942
      %v3987 = vmul.f32 %v3896, %v3944
      %v3988 = vmul.f32 %v3898, %v3946
      %v3989 = vmul.f32 %v3900, %v3948
      %v3990 = vmul.f32 %v3902, %v3950
      %v3991 = vmul.f32 %v3904, %v3952
      %v3992 = vmul.f32 %v3906, %v3954
      %v3993 = vmul.f32 %v3908, %v3956
      %v3994 = vmul.f32 %v3910, %v3958
      %v3995 = vmul.f32 %v3912, %v3960
      %v3996 = vmul.f32 %v3914, %v3962
      %v3997 = vmul.f32 %v3916, %v3964
      %v3998 = vmul.f32 %v3918, %v3966
      %v3999 = vtanh.pop %v3489
      %v4000 = vtanh.pop %v3492
      %v4001 = vtanh.pop %v3497
      %v4002 = vtanh.pop %v3500
      %v4003 = vtanh.pop %v3505
      %v4004 = vtanh.pop %v3508
      %v4005 = vtanh.pop %v3513
      %v4006 = vtanh.pop %v3516
      %v4007 = vtanh.pop %v3521
      %v4008 = vtanh.pop %v3524
      %v4009 = vtanh.pop %v3529
      %v4010 = vtanh.pop %v3532
      %v4011 = vtanh.pop %v3537
      %v4012 = vtanh.pop %v3540
      %v4013 = vtanh.pop %v3545
      %v4014 = vtanh.pop %v3548
      %4031 = vrot.lane.b32.xlu0 %v3999, 64
      %v4032 = vpop.permute.xlu0 %4031
      %4033 = vrot.lane.b32.xlu0 %v4000, 64
      %v4034 = vpop.permute.xlu0 %4033
      %4035 = vrot.lane.b32.xlu0 %v4001, 64
      %v4036 = vpop.permute.xlu0 %4035
      %4037 = vrot.lane.b32.xlu0 %v4002, 64
      %v4038 = vpop.permute.xlu0 %4037
      %4039 = vrot.lane.b32.xlu0 %v4003, 64
      %v4040 = vpop.permute.xlu0 %4039
      %4041 = vrot.lane.b32.xlu0 %v4004, 64
      %v4042 = vpop.permute.xlu0 %4041
      %4043 = vrot.lane.b32.xlu0 %v4005, 64
      %v4044 = vpop.permute.xlu0 %4043
      %4045 = vrot.lane.b32.xlu0 %v4006, 64
      %v4046 = vpop.permute.xlu0 %4045
      %4047 = vrot.lane.b32.xlu0 %v4007, 64
      %v4048 = vpop.permute.xlu0 %4047
      %4049 = vrot.lane.b32.xlu0 %v4008, 64
      %v4050 = vpop.permute.xlu0 %4049
      %4051 = vrot.lane.b32.xlu0 %v4009, 64
      %v4052 = vpop.permute.xlu0 %4051
      %4053 = vrot.lane.b32.xlu0 %v4010, 64
      %v4054 = vpop.permute.xlu0 %4053
      %4055 = vrot.lane.b32.xlu0 %v4011, 64
      %v4056 = vpop.permute.xlu0 %4055
      %4057 = vrot.lane.b32.xlu0 %v4012, 64
      %v4058 = vpop.permute.xlu0 %4057
      %4059 = vrot.lane.b32.xlu0 %v4013, 64
      %v4060 = vpop.permute.xlu0 %4059
      %4061 = vrot.lane.b32.xlu0 %v4014, 64
      %v4062 = vpop.permute.xlu0 %4061
      %v4079 = vmul.f32 %v3680, %v4032
      %v4080 = vmul.f32 %v3682, %v4034
      %v4081 = vmul.f32 %v3684, %v4036
      %v4082 = vmul.f32 %v3686, %v4038
      %v4083 = vmul.f32 %v3688, %v4040
      %v4084 = vmul.f32 %v3690, %v4042
      %v4085 = vmul.f32 %v3692, %v4044
      %v4086 = vmul.f32 %v3694, %v4046
      %v4087 = vmul.f32 %v3696, %v4048
      %v4088 = vmul.f32 %v3698, %v4050
      %v4089 = vmul.f32 %v3700, %v4052
      %v4090 = vmul.f32 %v3702, %v4054
      %v4091 = vmul.f32 %v3704, %v4056
      %v4092 = vmul.f32 %v3706, %v4058
      %v4093 = vmul.f32 %v3708, %v4060
      %v4094 = vmul.f32 %v3710, %v4062
      %4111 = vrot.lane.b32.xlu0 %v4079, 32
      %v4112 = vpop.permute.xlu0 %4111
      %4113 = vrot.lane.b32.xlu0 %v4080, 32
      %v4114 = vpop.permute.xlu0 %4113
      %4115 = vrot.lane.b32.xlu0 %v4081, 32
      %v4116 = vpop.permute.xlu0 %4115
      %4117 = vrot.lane.b32.xlu0 %v4082, 32
      %v4118 = vpop.permute.xlu0 %4117
      %4119 = vrot.lane.b32.xlu0 %v4083, 32
      %v4120 = vpop.permute.xlu0 %4119
      %4121 = vrot.lane.b32.xlu0 %v4084, 32
      %v4122 = vpop.permute.xlu0 %4121
      %4123 = vrot.lane.b32.xlu0 %v4085, 32
      %v4124 = vpop.permute.xlu0 %4123
      %4125 = vrot.lane.b32.xlu0 %v4086, 32
      %v4126 = vpop.permute.xlu0 %4125
      %4127 = vrot.lane.b32.xlu0 %v4087, 32
      %v4128 = vpop.permute.xlu0 %4127
      %4129 = vrot.lane.b32.xlu0 %v4088, 32
      %v4130 = vpop.permute.xlu0 %4129
      %4131 = vrot.lane.b32.xlu0 %v4089, 32
      %v4132 = vpop.permute.xlu0 %4131
      %4133 = vrot.lane.b32.xlu0 %v4090, 32
      %v4134 = vpop.permute.xlu0 %4133
      %4135 = vrot.lane.b32.xlu0 %v4091, 32
      %v4136 = vpop.permute.xlu0 %4135
      %4137 = vrot.lane.b32.xlu0 %v4092, 32
      %v4138 = vpop.permute.xlu0 %4137
      %4139 = vrot.lane.b32.xlu0 %v4093, 32
      %v4140 = vpop.permute.xlu0 %4139
      %4141 = vrot.lane.b32.xlu0 %v4094, 32
      %v4142 = vpop.permute.xlu0 %4141
      %v4159 = vadd.f32 %v3983, %v4112
      %v4160 = vadd.f32 %v3984, %v4114
      %v4161 = vadd.f32 %v3985, %v4116
      %v4162 = vadd.f32 %v3986, %v4118
      %v4163 = vadd.f32 %v3987, %v4120
      %v4164 = vadd.f32 %v3988, %v4122
      %v4165 = vadd.f32 %v3989, %v4124
      %v4166 = vadd.f32 %v3990, %v4126
      %v4167 = vadd.f32 %v3991, %v4128
      %v4168 = vadd.f32 %v3992, %v4130
      %v4169 = vadd.f32 %v3993, %v4132
      %v4170 = vadd.f32 %v3994, %v4134
      %v4171 = vadd.f32 %v3995, %v4136
      %v4172 = vadd.f32 %v3996, %v4138
      %v4173 = vadd.f32 %v3997, %v4140
      %v4174 = vadd.f32 %v3998, %v4142
      %v4175 = vld [vmem:[%s4 + $0x80] sm:$0xff]
      %v4176 = vld [vmem:[%s4 + $0x88] sm:$0xff]
      %v4177 = vld [vmem:[%s4 + $0x90] sm:$0xff]
      %v4178 = vld [vmem:[%s4 + $0x98] sm:$0xff]
      %v4179 = vld [vmem:[%s4 + $0xa0] sm:$0xff]
      %v4180 = vld [vmem:[%s4 + $0xa8] sm:$0xff]
      %v4181 = vld [vmem:[%s4 + $0xb0] sm:$0xff]
      %v4182 = vld [vmem:[%s4 + $0xb8] sm:$0xff]
      %v4183 = vld [vmem:[%s4 + $0xc0] sm:$0xff]
      %v4184 = vld [vmem:[%s4 + $0xc8] sm:$0xff]
      %v4185 = vld [vmem:[%s4 + $0xd0] sm:$0xff]
      %v4186 = vld [vmem:[%s4 + $0xd8] sm:$0xff]
      %v4187 = vld [vmem:[%s4 + $0xe0] sm:$0xff]
      %v4188 = vld [vmem:[%s4 + $0xe8] sm:$0xff]
      %v4189 = vld [vmem:[%s4 + $0xf0] sm:$0xff]
      %v4190 = vld [vmem:[%s4 + $0xf8] sm:$0xff]
      %4207 = vrot.lane.b32.xlu0 %v4159, 96
      %v4208 = vpop.permute.xlu0 %4207
      %4209 = vrot.lane.b32.xlu0 %v4160, 96
      %v4210 = vpop.permute.xlu0 %4209
      %4211 = vrot.lane.b32.xlu0 %v4161, 96
      %v4212 = vpop.permute.xlu0 %4211
      %4213 = vrot.lane.b32.xlu0 %v4162, 96
      %v4214 = vpop.permute.xlu0 %4213
      %4215 = vrot.lane.b32.xlu0 %v4163, 96
      %v4216 = vpop.permute.xlu0 %4215
      %4217 = vrot.lane.b32.xlu0 %v4164, 96
      %v4218 = vpop.permute.xlu0 %4217
      %4219 = vrot.lane.b32.xlu0 %v4165, 96
      %v4220 = vpop.permute.xlu0 %4219
      %4221 = vrot.lane.b32.xlu0 %v4166, 96
      %v4222 = vpop.permute.xlu0 %4221
      %4223 = vrot.lane.b32.xlu0 %v4167, 96
      %v4224 = vpop.permute.xlu0 %4223
      %4225 = vrot.lane.b32.xlu0 %v4168, 96
      %v4226 = vpop.permute.xlu0 %4225
      %4227 = vrot.lane.b32.xlu0 %v4169, 96
      %v4228 = vpop.permute.xlu0 %4227
      %4229 = vrot.lane.b32.xlu0 %v4170, 96
      %v4230 = vpop.permute.xlu0 %4229
      %4231 = vrot.lane.b32.xlu0 %v4171, 96
      %v4232 = vpop.permute.xlu0 %4231
      %4233 = vrot.lane.b32.xlu0 %v4172, 96
      %v4234 = vpop.permute.xlu0 %4233
      %4235 = vrot.lane.b32.xlu0 %v4173, 96
      %v4236 = vpop.permute.xlu0 %4235
      %4237 = vrot.lane.b32.xlu0 %v4174, 96
      %v4238 = vpop.permute.xlu0 %4237
      %v4255 = vmul.f32 %v4175, %v4208
      %v4256 = vmul.f32 %v4176, %v4210
      %v4257 = vmul.f32 %v4177, %v4212
      %v4258 = vmul.f32 %v4178, %v4214
      %v4259 = vmul.f32 %v4179, %v4216
      %v4260 = vmul.f32 %v4180, %v4218
      %v4261 = vmul.f32 %v4181, %v4220
      %v4262 = vmul.f32 %v4182, %v4222
      %v4263 = vmul.f32 %v4183, %v4224
      %v4264 = vmul.f32 %v4184, %v4226
      %v4265 = vmul.f32 %v4185, %v4228
      %v4266 = vmul.f32 %v4186, %v4230
      %v4267 = vmul.f32 %v4187, %v4232
      %v4268 = vmul.f32 %v4188, %v4234
      %v4269 = vmul.f32 %v4189, %v4236
      %v4270 = vmul.f32 %v4190, %v4238
      %4287 = vrot.lane.b32.xlu0 %v4255, 96
      %v4288 = vpop.permute.xlu0 %4287
      %4289 = vrot.lane.b32.xlu0 %v4256, 96
      %v4290 = vpop.permute.xlu0 %4289
      %4291 = vrot.lane.b32.xlu0 %v4257, 96
      %v4292 = vpop.permute.xlu0 %4291
      %4293 = vrot.lane.b32.xlu0 %v4258, 96
      %v4294 = vpop.permute.xlu0 %4293
      %4295 = vrot.lane.b32.xlu0 %v4259, 96
      %v4296 = vpop.permute.xlu0 %4295
      %4297 = vrot.lane.b32.xlu0 %v4260, 96
      %v4298 = vpop.permute.xlu0 %4297
      %4299 = vrot.lane.b32.xlu0 %v4261, 96
      %v4300 = vpop.permute.xlu0 %4299
      %4301 = vrot.lane.b32.xlu0 %v4262, 96
      %v4302 = vpop.permute.xlu0 %4301
      %4303 = vrot.lane.b32.xlu0 %v4263, 96
      %v4304 = vpop.permute.xlu0 %4303
      %4305 = vrot.lane.b32.xlu0 %v4264, 96
      %v4306 = vpop.permute.xlu0 %4305
      %4307 = vrot.lane.b32.xlu0 %v4265, 96
      %v4308 = vpop.permute.xlu0 %4307
      %4309 = vrot.lane.b32.xlu0 %v4266, 96
      %v4310 = vpop.permute.xlu0 %4309
      %4311 = vrot.lane.b32.xlu0 %v4267, 96
      %v4312 = vpop.permute.xlu0 %4311
      %4313 = vrot.lane.b32.xlu0 %v4268, 96
      %v4314 = vpop.permute.xlu0 %4313
      %4315 = vrot.lane.b32.xlu0 %v4269, 96
      %v4316 = vpop.permute.xlu0 %4315
      %4317 = vrot.lane.b32.xlu0 %v4270, 96
      %v4318 = vpop.permute.xlu0 %4317
      %v4335 = vadd.f32 %v3489, %v4288
      %v4336 = vadd.f32 %v3492, %v4290
      %v4337 = vadd.f32 %v3497, %v4292
      %v4338 = vadd.f32 %v3500, %v4294
      %v4339 = vadd.f32 %v3505, %v4296
      %v4340 = vadd.f32 %v3508, %v4298
      %v4341 = vadd.f32 %v3513, %v4300
      %v4342 = vadd.f32 %v3516, %v4302
      %v4343 = vadd.f32 %v3521, %v4304
      %v4344 = vadd.f32 %v3524, %v4306
      %v4345 = vadd.f32 %v3529, %v4308
      %v4346 = vadd.f32 %v3532, %v4310
      %v4347 = vadd.f32 %v3537, %v4312
      %v4348 = vadd.f32 %v3540, %v4314
      %v4349 = vadd.f32 %v3545, %v4316
      %v4350 = vadd.f32 %v3548, %v4318
      %v4351 = vxor.u32 %v4335, 2147483648
      %v4352 = vxor.u32 %v4336, 2147483648
      %v4353 = vxor.u32 %v4337, 2147483648
      %v4354 = vxor.u32 %v4338, 2147483648
      %v4355 = vxor.u32 %v4339, 2147483648
      %v4356 = vxor.u32 %v4340, 2147483648
      %v4357 = vxor.u32 %v4341, 2147483648
      %v4358 = vxor.u32 %v4342, 2147483648
      %v4359 = vxor.u32 %v4343, 2147483648
      %v4360 = vxor.u32 %v4344, 2147483648
      %v4361 = vxor.u32 %v4345, 2147483648
      %v4362 = vxor.u32 %v4346, 2147483648
      %v4363 = vxor.u32 %v4347, 2147483648
      %v4364 = vxor.u32 %v4348, 2147483648
      %v4365 = vxor.u32 %v4349, 2147483648
      %v4366 = vxor.u32 %v4350, 2147483648
      %v4367 = vmul.f32 %v4351, 1.442695
      %v4368 = vpow.pop %v4367
      %v4369 = vmul.f32 %v4352, 1.442695
      %v4370 = vpow.pop %v4369
      %v4371 = vmul.f32 %v4353, 1.442695
      %v4372 = vpow.pop %v4371
      %v4373 = vmul.f32 %v4354, 1.442695
      %v4374 = vpow.pop %v4373
      %v4375 = vmul.f32 %v4355, 1.442695
      %v4376 = vpow.pop %v4375
      %v4377 = vmul.f32 %v4356, 1.442695
      %v4378 = vpow.pop %v4377
      %v4379 = vmul.f32 %v4357, 1.442695
      %v4380 = vpow.pop %v4379
      %v4381 = vmul.f32 %v4358, 1.442695
      %v4382 = vpow.pop %v4381
      %v4383 = vmul.f32 %v4359, 1.442695
      %v4384 = vpow.pop %v4383
      %v4385 = vmul.f32 %v4360, 1.442695
      %v4386 = vpow.pop %v4385
      %v4387 = vmul.f32 %v4361, 1.442695
      %v4388 = vpow.pop %v4387
      %v4389 = vmul.f32 %v4362, 1.442695
      %v4390 = vpow.pop %v4389
      %v4391 = vmul.f32 %v4363, 1.442695
      %v4392 = vpow.pop %v4391
      %v4393 = vmul.f32 %v4364, 1.442695
      %v4394 = vpow.pop %v4393
      %v4395 = vmul.f32 %v4365, 1.442695
      %v4396 = vpow.pop %v4395
      %v4397 = vmul.f32 %v4366, 1.442695
      %v4398 = vpow.pop %v4397
      %v4399 = vadd.f32 %v4368, 1.0
      %v4400 = vadd.f32 %v4370, 1.0
      %v4401 = vadd.f32 %v4372, 1.0
      %v4402 = vadd.f32 %v4374, 1.0
      %v4403 = vadd.f32 %v4376, 1.0
      %v4404 = vadd.f32 %v4378, 1.0
      %v4405 = vadd.f32 %v4380, 1.0
      %v4406 = vadd.f32 %v4382, 1.0
      %v4407 = vadd.f32 %v4384, 1.0
      %v4408 = vadd.f32 %v4386, 1.0
      %v4409 = vadd.f32 %v4388, 1.0
      %v4410 = vadd.f32 %v4390, 1.0
      %v4411 = vadd.f32 %v4392, 1.0
      %v4412 = vadd.f32 %v4394, 1.0
      %v4413 = vadd.f32 %v4396, 1.0
      %v4414 = vadd.f32 %v4398, 1.0
      %v4415 = vrcp.pop %v4399
      %v4416 = vmul.f32 1.0, %v4415
      %v4417 = vrcp.pop %v4400
      %v4418 = vmul.f32 1.0, %v4417
      %v4419 = vrcp.pop %v4401
      %v4420 = vmul.f32 1.0, %v4419
      %v4421 = vrcp.pop %v4402
      %v4422 = vmul.f32 1.0, %v4421
      %v4423 = vrcp.pop %v4403
      %v4424 = vmul.f32 1.0, %v4423
      %v4425 = vrcp.pop %v4404
      %v4426 = vmul.f32 1.0, %v4425
      %v4427 = vrcp.pop %v4405
      %v4428 = vmul.f32 1.0, %v4427
      %v4429 = vrcp.pop %v4406
      %v4430 = vmul.f32 1.0, %v4429
      %v4431 = vrcp.pop %v4407
      %v4432 = vmul.f32 1.0, %v4431
      %v4433 = vrcp.pop %v4408
      %v4434 = vmul.f32 1.0, %v4433
      %v4435 = vrcp.pop %v4409
      %v4436 = vmul.f32 1.0, %v4435
      %v4437 = vrcp.pop %v4410
      %v4438 = vmul.f32 1.0, %v4437
      %v4439 = vrcp.pop %v4411
      %v4440 = vmul.f32 1.0, %v4439
      %v4441 = vrcp.pop %v4412
      %v4442 = vmul.f32 1.0, %v4441
      %v4443 = vrcp.pop %v4413
      %v4444 = vmul.f32 1.0, %v4443
      %v4445 = vrcp.pop %v4414
      %v4446 = vmul.f32 1.0, %v4445
      %v4447 = vtanh.pop %v4159
      %v4448 = vtanh.pop %v4160
      %v4449 = vtanh.pop %v4161
      %v4450 = vtanh.pop %v4162
      %v4451 = vtanh.pop %v4163
      %v4452 = vtanh.pop %v4164
      %v4453 = vtanh.pop %v4165
      %v4454 = vtanh.pop %v4166
      %v4455 = vtanh.pop %v4167
      %v4456 = vtanh.pop %v4168
      %v4457 = vtanh.pop %v4169
      %v4458 = vtanh.pop %v4170
      %v4459 = vtanh.pop %v4171
      %v4460 = vtanh.pop %v4172
      %v4461 = vtanh.pop %v4173
      %v4462 = vtanh.pop %v4174
      %4479 = vrot.lane.b32.xlu0 %v4447, 64
      %v4480 = vpop.permute.xlu0 %4479
      %4481 = vrot.lane.b32.xlu0 %v4448, 64
      %v4482 = vpop.permute.xlu0 %4481
      %4483 = vrot.lane.b32.xlu0 %v4449, 64
      %v4484 = vpop.permute.xlu0 %4483
      %4485 = vrot.lane.b32.xlu0 %v4450, 64
      %v4486 = vpop.permute.xlu0 %4485
      %4487 = vrot.lane.b32.xlu0 %v4451, 64
      %v4488 = vpop.permute.xlu0 %4487
      %4489 = vrot.lane.b32.xlu0 %v4452, 64
      %v4490 = vpop.permute.xlu0 %4489
      %4491 = vrot.lane.b32.xlu0 %v4453, 64
      %v4492 = vpop.permute.xlu0 %4491
      %4493 = vrot.lane.b32.xlu0 %v4454, 64
      %v4494 = vpop.permute.xlu0 %4493
      %4495 = vrot.lane.b32.xlu0 %v4455, 64
      %v4496 = vpop.permute.xlu0 %4495
      %4497 = vrot.lane.b32.xlu0 %v4456, 64
      %v4498 = vpop.permute.xlu0 %4497
      %4499 = vrot.lane.b32.xlu0 %v4457, 64
      %v4500 = vpop.permute.xlu0 %4499
      %4501 = vrot.lane.b32.xlu0 %v4458, 64
      %v4502 = vpop.permute.xlu0 %4501
      %4503 = vrot.lane.b32.xlu0 %v4459, 64
      %v4504 = vpop.permute.xlu0 %4503
      %4505 = vrot.lane.b32.xlu0 %v4460, 64
      %v4506 = vpop.permute.xlu0 %4505
      %4507 = vrot.lane.b32.xlu0 %v4461, 64
      %v4508 = vpop.permute.xlu0 %4507
      %4509 = vrot.lane.b32.xlu0 %v4462, 64
      %v4510 = vpop.permute.xlu0 %4509
      %v4527 = vmul.f32 %v4416, %v4480
      %v4528 = vmul.f32 %v4418, %v4482
      %v4529 = vmul.f32 %v4420, %v4484
      %v4530 = vmul.f32 %v4422, %v4486
      %v4531 = vmul.f32 %v4424, %v4488
      %v4532 = vmul.f32 %v4426, %v4490
      %v4533 = vmul.f32 %v4428, %v4492
      %v4534 = vmul.f32 %v4430, %v4494
      %v4535 = vmul.f32 %v4432, %v4496
      %v4536 = vmul.f32 %v4434, %v4498
      %v4537 = vmul.f32 %v4436, %v4500
      %v4538 = vmul.f32 %v4438, %v4502
      %v4539 = vmul.f32 %v4440, %v4504
      %v4540 = vmul.f32 %v4442, %v4506
      %v4541 = vmul.f32 %v4444, %v4508
      %v4542 = vmul.f32 %v4446, %v4510
      %4543 = vst.msk [vmem:[#allocation3 + $0x80] sm:$0xff] %vm406, %v4208
      %4544 = vst.msk [vmem:[#allocation3 + $0x88] sm:$0xff] %vm406, %v4210
      %4545 = vst.msk [vmem:[#allocation3 + $0x90] sm:$0xff] %vm406, %v4212
      %4546 = vst.msk [vmem:[#allocation3 + $0x98] sm:$0xff] %vm406, %v4214
      %4547 = vst.msk [vmem:[#allocation3 + $0xa0] sm:$0xff] %vm406, %v4216
      %4548 = vst.msk [vmem:[#allocation3 + $0xa8] sm:$0xff] %vm406, %v4218
      %4549 = vst.msk [vmem:[#allocation3 + $0xb0] sm:$0xff] %vm406, %v4220
      %4550 = vst.msk [vmem:[#allocation3 + $0xb8] sm:$0xff] %vm406, %v4222
      %4551 = vst.msk [vmem:[#allocation3 + $0xc0] sm:$0xff] %vm406, %v4224
      %4552 = vst.msk [vmem:[#allocation3 + $0xc8] sm:$0xff] %vm406, %v4226
      %4553 = vst.msk [vmem:[#allocation3 + $0xd0] sm:$0xff] %vm406, %v4228
      %4554 = vst.msk [vmem:[#allocation3 + $0xd8] sm:$0xff] %vm406, %v4230
      %4555 = vst.msk [vmem:[#allocation3 + $0xe0] sm:$0xff] %vm406, %v4232
      %4556 = vst.msk [vmem:[#allocation3 + $0xe8] sm:$0xff] %vm406, %v4234
      %4557 = vst.msk [vmem:[#allocation3 + $0xf0] sm:$0xff] %vm406, %v4236
      %4558 = vst.msk [vmem:[#allocation3 + $0xf8] sm:$0xff] %vm406, %v4238
      %4575 = vrot.lane.b32.xlu0 %v4527, 32
      %v4576 = vpop.permute.xlu0 %4575
      %4577 = vrot.lane.b32.xlu0 %v4528, 32
      %v4578 = vpop.permute.xlu0 %4577
      %4579 = vrot.lane.b32.xlu0 %v4529, 32
      %v4580 = vpop.permute.xlu0 %4579
      %4581 = vrot.lane.b32.xlu0 %v4530, 32
      %v4582 = vpop.permute.xlu0 %4581
      %4583 = vrot.lane.b32.xlu0 %v4531, 32
      %v4584 = vpop.permute.xlu0 %4583
      %4585 = vrot.lane.b32.xlu0 %v4532, 32
      %v4586 = vpop.permute.xlu0 %4585
      %4587 = vrot.lane.b32.xlu0 %v4533, 32
      %v4588 = vpop.permute.xlu0 %4587
      %4589 = vrot.lane.b32.xlu0 %v4534, 32
      %v4590 = vpop.permute.xlu0 %4589
      %4591 = vrot.lane.b32.xlu0 %v4535, 32
      %v4592 = vpop.permute.xlu0 %4591
      %4593 = vrot.lane.b32.xlu0 %v4536, 32
      %v4594 = vpop.permute.xlu0 %4593
      %4595 = vrot.lane.b32.xlu0 %v4537, 32
      %v4596 = vpop.permute.xlu0 %4595
      %4597 = vrot.lane.b32.xlu0 %v4538, 32
      %v4598 = vpop.permute.xlu0 %4597
      %4599 = vrot.lane.b32.xlu0 %v4539, 32
      %v4600 = vpop.permute.xlu0 %4599
      %4601 = vrot.lane.b32.xlu0 %v4540, 32
      %v4602 = vpop.permute.xlu0 %4601
      %4603 = vrot.lane.b32.xlu0 %v4541, 32
      %v4604 = vpop.permute.xlu0 %4603
      %4605 = vrot.lane.b32.xlu0 %v4542, 32
      %v4606 = vpop.permute.xlu0 %4605
      %4623 = vst.msk [vmem:[%s260 + $0x80] sm:$0xff] %vm406, %v4576
      %4624 = vst.msk [vmem:[%s260 + $0x88] sm:$0xff] %vm406, %v4578
      %4625 = vst.msk [vmem:[%s260 + $0x90] sm:$0xff] %vm406, %v4580
      %4626 = vst.msk [vmem:[%s260 + $0x98] sm:$0xff] %vm406, %v4582
      %4627 = vst.msk [vmem:[%s260 + $0xa0] sm:$0xff] %vm406, %v4584
      %4628 = vst.msk [vmem:[%s260 + $0xa8] sm:$0xff] %vm406, %v4586
      %4629 = vst.msk [vmem:[%s260 + $0xb0] sm:$0xff] %vm406, %v4588
      %4630 = vst.msk [vmem:[%s260 + $0xb8] sm:$0xff] %vm406, %v4590
      %4631 = vst.msk [vmem:[%s260 + $0xc0] sm:$0xff] %vm406, %v4592
      %4632 = vst.msk [vmem:[%s260 + $0xc8] sm:$0xff] %vm406, %v4594
      %4633 = vst.msk [vmem:[%s260 + $0xd0] sm:$0xff] %vm406, %v4596
      %4634 = vst.msk [vmem:[%s260 + $0xd8] sm:$0xff] %vm406, %v4598
      %4635 = vst.msk [vmem:[%s260 + $0xe0] sm:$0xff] %vm406, %v4600
      %4636 = vst.msk [vmem:[%s260 + $0xe8] sm:$0xff] %vm406, %v4602
      %4637 = vst.msk [vmem:[%s260 + $0xf0] sm:$0xff] %vm406, %v4604
      %4638 = vst.msk [vmem:[%s260 + $0xf8] sm:$0xff] %vm406, %v4606
      %v4639 = vld [vmem:[%s260] sm:$0xff]
      %v4640 = vld [vmem:[%s260 + $0x8] sm:$0xff]
      %v4641 = vld [vmem:[%s260 + $0x10] sm:$0xff]
      %v4642 = vld [vmem:[%s260 + $0x18] sm:$0xff]
      %v4643 = vld [vmem:[%s260 + $0x20] sm:$0xff]
      %v4644 = vld [vmem:[%s260 + $0x28] sm:$0xff]
      %v4645 = vld [vmem:[%s260 + $0x30] sm:$0xff]
      %v4646 = vld [vmem:[%s260 + $0x38] sm:$0xff]
      %v4647 = vld [vmem:[%s260 + $0x40] sm:$0xff]
      %v4648 = vld [vmem:[%s260 + $0x48] sm:$0xff]
      %v4649 = vld [vmem:[%s260 + $0x50] sm:$0xff]
      %v4650 = vld [vmem:[%s260 + $0x58] sm:$0xff]
      %v4651 = vld [vmem:[%s260 + $0x60] sm:$0xff]
      %v4652 = vld [vmem:[%s260 + $0x68] sm:$0xff]
      %v4653 = vld [vmem:[%s260 + $0x70] sm:$0xff]
      %v4654 = vld [vmem:[%s260 + $0x78] sm:$0xff]
      %v4655 = vld [vmem:[%s260 + $0x80] sm:$0xff]
      %v4656 = vld [vmem:[%s260 + $0x88] sm:$0xff]
      %v4657 = vld [vmem:[%s260 + $0x90] sm:$0xff]
      %v4658 = vld [vmem:[%s260 + $0x98] sm:$0xff]
      %v4659 = vld [vmem:[%s260 + $0xa0] sm:$0xff]
      %v4660 = vld [vmem:[%s260 + $0xa8] sm:$0xff]
      %v4661 = vld [vmem:[%s260 + $0xb0] sm:$0xff]
      %v4662 = vld [vmem:[%s260 + $0xb8] sm:$0xff]
      %v4663 = vld [vmem:[%s260 + $0xc0] sm:$0xff]
      %v4664 = vld [vmem:[%s260 + $0xc8] sm:$0xff]
      %v4665 = vld [vmem:[%s260 + $0xd0] sm:$0xff]
      %v4666 = vld [vmem:[%s260 + $0xd8] sm:$0xff]
      %v4667 = vld [vmem:[%s260 + $0xe0] sm:$0xff]
      %v4668 = vld [vmem:[%s260 + $0xe8] sm:$0xff]
      %v4669 = vld [vmem:[%s260 + $0xf0] sm:$0xff]
      %v4670 = vld [vmem:[%s260 + $0xf8] sm:$0xff]
      %4671 = vst.msk [vmem:[%s617 + $0x1] sm:$0xff] %vm406, %v4639
      %4672 = vst.msk [vmem:[%s617 + $0x9] sm:$0xff] %vm406, %v4640
      %4673 = vst.msk [vmem:[%s617 + $0x19] sm:$0xff] %vm406, %v4641
      %4674 = vst.msk [vmem:[%s617 + $0x21] sm:$0xff] %vm406, %v4642
      %4675 = vst.msk [vmem:[%s617 + $0x31] sm:$0xff] %vm406, %v4643
      %4676 = vst.msk [vmem:[%s617 + $0x39] sm:$0xff] %vm406, %v4644
      %4677 = vst.msk [vmem:[%s617 + $0x49] sm:$0xff] %vm406, %v4645
      %4678 = vst.msk [vmem:[%s617 + $0x51] sm:$0xff] %vm406, %v4646
      %4679 = vst.msk [vmem:[%s617 + $0x61] sm:$0xff] %vm406, %v4647
      %4680 = vst.msk [vmem:[%s617 + $0x69] sm:$0xff] %vm406, %v4648
      %4681 = vst.msk [vmem:[%s617 + $0x79] sm:$0xff] %vm406, %v4649
      %4682 = vst.msk [vmem:[%s617 + $0x81] sm:$0xff] %vm406, %v4650
      %4683 = vst.msk [vmem:[%s617 + $0x91] sm:$0xff] %vm406, %v4651
      %4684 = vst.msk [vmem:[%s617 + $0x99] sm:$0xff] %vm406, %v4652
      %4685 = vst.msk [vmem:[%s617 + $0xa9] sm:$0xff] %vm406, %v4653
      %4686 = vst.msk [vmem:[%s617 + $0xb1] sm:$0xff] %vm406, %v4654
      %4687 = vst.msk [vmem:[%s617 + $0xc1] sm:$0xff] %vm406, %v4655
      %4688 = vst.msk [vmem:[%s617 + $0xc9] sm:$0xff] %vm406, %v4656
      %4689 = vst.msk [vmem:[%s617 + $0xd9] sm:$0xff] %vm406, %v4657
      %4690 = vst.msk [vmem:[%s617 + $0xe1] sm:$0xff] %vm406, %v4658
      %4691 = vst.msk [vmem:[%s617 + $0xf1] sm:$0xff] %vm406, %v4659
      %4692 = vst.msk [vmem:[%s617 + $0xf9] sm:$0xff] %vm406, %v4660
      %4693 = vst.msk [vmem:[%s617 + $0x109] sm:$0xff] %vm406, %v4661
      %4694 = vst.msk [vmem:[%s617 + $0x111] sm:$0xff] %vm406, %v4662
      %4695 = vst.msk [vmem:[%s617 + $0x121] sm:$0xff] %vm406, %v4663
      %4696 = vst.msk [vmem:[%s617 + $0x129] sm:$0xff] %vm406, %v4664
      %4697 = vst.msk [vmem:[%s617 + $0x139] sm:$0xff] %vm406, %v4665
      %4698 = vst.msk [vmem:[%s617 + $0x141] sm:$0xff] %vm406, %v4666
      %4699 = vst.msk [vmem:[%s617 + $0x151] sm:$0xff] %vm406, %v4667
      %4700 = vst.msk [vmem:[%s617 + $0x159] sm:$0xff] %vm406, %v4668
      %4701 = vst.msk [vmem:[%s617 + $0x169] sm:$0xff] %vm406, %v4669
      %4702 = vst.msk [vmem:[%s617 + $0x171] sm:$0xff] %vm406, %v4670
      %p4703 = scmp.lt.s32.totalorder %s21, 7
      %s4704 = scalar_select %p4703, %s21, 7
      %p4705 = scmp.lt.s32.totalorder %s20, 1
      %s4706 = scalar_select %p4705, %s20, 1
      %s4707 = smul.addr %s4706, 32
      %s4708 = smul.addr %s4704, 64
      %s4709 = sadd.s32 %s4707, %s4708
      %s4710 = smul.addr %s4709, 8
      %s4711 = scalar_lea.vmem %s5, %s4710
      // Predicated region
      $region45: #{conv_lstm_forward.3} parent=39 // pred_check
        %p4712 = pneg %p160
      $region46: #{conv_lstm_forward.3} parent=39 // pred_check_branch
        %4714 = sbr.rel (%p4712) target = $region48
      $region47: #{conv_lstm_forward.3} parent=39 // pred_region
        _
      $region48: #{conv_lstm_forward.3} parent=39 // pred_fallthru
        _
    $region40: #{conv_lstm_forward.3} parent=5 // pred_fallthru
      _
    %p4715 = scmp.le.s32.totalorder 2, %s11
    // Predicated region
    $region49: #{conv_lstm_forward.3} parent=5 // pred_check
      %p4716 = pneg %p4715
    $region50: #{conv_lstm_forward.3} parent=5 // pred_check_branch
      %4718 = sbr.rel (%p4716) target = $region52
    $region51: #{conv_lstm_forward.3} parent=5 // pred_region
      %s4719 = ssub.s32 %s11, 2
      // Predicated region
      $region53: #{conv_lstm_forward.3} parent=51 // pred_check
        %p4720 = pneg %p166
      $region54: #{conv_lstm_forward.3} parent=51 // pred_check_branch
        %4722 = sbr.rel (%p4720) target = $region56
      $region55: #{conv_lstm_forward.3} parent=51 // pred_region
        %p4723 = scmp.lt.s32.totalorder %s23, 7
        %s4724 = scalar_select %p4723, %s23, 7
        %p4725 = scmp.lt.s32.totalorder %s22, 1
        %s4726 = scalar_select %p4725, %s22, 1
        %s4727 = smul.addr %s4726, 32
        %s4728 = smul.addr %s4724, 64
        %s4729 = sadd.s32 %s4727, %s4728
        %s4730 = smul.addr %s4729, 8
        %s4731 = scalar_lea.vmem %s5, %s4730
      $region56: #{conv_lstm_forward.3} parent=51 // pred_fallthru
        _
    $region52: #{conv_lstm_forward.3} parent=5 // pred_fallthru
      _
  $region6: #{conv_lstm_forward.3} parent=0 // loop_footer
    %s15 = sadd.s32 1, %s11
  $region7: #{conv_lstm_forward.3} parent=0 // loop_footer_branch
    %10 = sbr.rel target = $region3
  $region8: #{conv_lstm_forward.3} parent=0 // loop_exit
    _

</llo_original>
